<compile_context>
chip_gen: v7x
topology: tpu7x:2x2x1
jax: 0.10.0
libtpu: 0.0.40
codegen_flags: <defaults>
</compile_context>

<pallas_src>
import functools
import types

import numpy as np
import jax
import jax.numpy as jnp
from jax.experimental import pallas as pl
from jax.experimental.pallas import tpu as pltpu


# ----------------------------------------------------------------------------
# In-kernel math helpers
# ----------------------------------------------------------------------------
def _swish(y):
    return y * jax.nn.sigmoid(y)


def _mxu(a, b):
    # bf16 operands, f32 accumulate (fast MXU path on v6e/v7x, fine on v5e).
    # Weights are already bf16 (pre-cast in prepare_params) -> cast is a no-op.
    return jnp.dot(a.astype(jnp.bfloat16), b.astype(jnp.bfloat16),
                   preferred_element_type=jnp.float32)


_VMEM_LIMIT_BYTES = 48 * 1024 * 1024   # below scoped/physical VMEM on v5e/v6e/v7x


def _pcall(kernel, out_shape, *args, input_output_aliases=None):
    multi = isinstance(out_shape, (tuple, list))
    vmem = lambda: pl.BlockSpec(memory_space=pltpu.MemorySpace.VMEM)
    out_specs = tuple(vmem() for _ in out_shape) if multi else vmem()
    kwargs = {}
    if input_output_aliases is not None:
        kwargs["input_output_aliases"] = input_output_aliases
    return pl.pallas_call(
        kernel,
        out_shape=tuple(out_shape) if multi else out_shape,
        in_specs=[vmem() for _ in args],
        out_specs=out_specs,
        compiler_params=pltpu.CompilerParams(
            vmem_limit_bytes=_VMEM_LIMIT_BYTES),
        **kwargs,
    )(*args)


# ----------------------------------------------------------------------------
# Shared trace-time helper: OutputBlock math (inlined into both fused kernels)
# ----------------------------------------------------------------------------
def _output_block_compute(x_edges, rbf, iidx, bidx, wrbf_ref, layer_refs,
                          wout_ref, num_nodes, num_graphs):
    E = x_edges.shape[0]
    h = _mxu(rbf, wrbf_ref[...]) * x_edges                            # (E, H)
    # scatter-add edge -> node i: lane-dense exact one-hot matmul (N, E)@(E, H)
    n_iota = jax.lax.broadcasted_iota(jnp.int32, (num_nodes, E), 0)
    onehot_n = (n_iota == iidx).astype(jnp.bfloat16)                  # iidx: (1, E)
    s = _mxu(onehot_n, h)                                             # (N, H)
    for k in range(0, len(layer_refs), 2):
        s = _swish(_mxu(s, layer_refs[k][...]) + layer_refs[k + 1][...])
    p = _mxu(s, wout_ref[...])                                        # (N, out_ch)
    # node -> graph batch scatter folded into the same kernel
    g_iota = jax.lax.broadcasted_iota(jnp.int32, (num_graphs, num_nodes), 0)
    onehot_g = (g_iota == bidx).astype(jnp.bfloat16)                  # bidx: (1, N)
    return _mxu(onehot_g, p)                                          # (G, out_ch)


# ----------------------------------------------------------------------------
# Fused Pallas kernels (3 per forward for this config)
# ----------------------------------------------------------------------------
def _emb_out0_kernel(xi_ref, xj_ref, rbf_ref, iidx_ref, bidx_ref,
                     ewrbf_ref, ebrbf_ref, ewlin_ref, eblin_ref,
                     ob_wrbf_ref, *rest):
    # rest = (ob_w1, ob_b1, ..., ob_wL, ob_bL, ob_wout, x_out_ref, p_out_ref)
    x_out_ref, p_out_ref = rest[-2], rest[-1]
    ob_wout_ref = rest[-3]
    ob_layer_refs = rest[:-3]

    rbf = rbf_ref[...]
    # EmbeddingBlock: swish([x_i | x_j | swish(rbf @ Wrbf + b)] @ Wlin + b)
    rbf_h = _swish(_mxu(rbf, ewrbf_ref[...]) + ebrbf_ref[...])        # (E, H)
    feat = jnp.concatenate([xi_ref[...], xj_ref[...], rbf_h], axis=1)  # (E, 3H)
    x = _swish(_mxu(feat, ewlin_ref[...]) + eblin_ref[...])           # (E, H)
    x_out_ref[...] = x

    # OutputBlock 0
    p_out_ref[...] = _output_block_compute(
        x, rbf, iidx_ref[...], bidx_ref[...],
        ob_wrbf_ref, ob_layer_refs, ob_wout_ref,
        bidx_ref.shape[1], p_out_ref.shape[0])


def _inter_out_kernel(x_ref, rbf_ref, sbf_ref, kj_ref, ji_ref, iidx_ref,
                      bidx_ref, p_in_ref,
                      wrbf_ref, wsbf_rep_ref, wjikj_ref, bjikj_ref,
                      tile_ref, wbil_ref, wlin_ref, blin_ref,
                      ob_wrbf_ref, *rest):
    # rest = (ob_w1, ob_b1, ..., ob_wL, ob_bL, ob_wout, x_out_ref, p_out_ref)
    x_out_ref, p_out_ref = rest[-2], rest[-1]
    ob_wout_ref = rest[-3]
    ob_layer_refs = rest[:-3]

    E, H = x_ref.shape
    T = sbf_ref.shape[0]

    x = x_ref[...]
    rbf = rbf_ref[...]
    rbf_h = _mxu(rbf, wrbf_ref[...])                                  # (E, H)

    # lin_ji / lin_kj fused into a single (H, 2H) matmul; split lanes after.
    jikj = _swish(_mxu(x, wjikj_ref[...]) + bjikj_ref[...])           # (E, 2H)
    x_ji = jikj[:, :H]
    x_kj = jikj[:, H:] * rbf_h                                        # (E, H)

    # gather x_kj[idx_kj] as exact one-hot matmul: (T, E) @ (E, H)
    e_iota = jax.lax.broadcasted_iota(jnp.int32, (T, E), 1)
    onehot_g = (e_iota == kj_ref[...]).astype(jnp.bfloat16)           # kj: (T, 1)
    x_kj_g = _mxu(onehot_g, x_kj)                                     # (T, H)

    # bilinear einsum 'wj,wl,ijl->wi' as ONE K = NB*H contraction:
    #   sbf_rep[t, j*H+c] = (lin_sbf(sbf))[t, j]  (column replication folded
    #                                              into wsbf_rep in prep)
    #   x_rep[t, j*H+l]   = x_kj_g[t, l]          (exact 0/1 tiling matmul)
    sbf_rep = _mxu(sbf_ref[...], wsbf_rep_ref[...])                   # (T, NB*H)
    x_rep = _mxu(x_kj_g, tile_ref[...])                               # (T, NB*H)
    t = _mxu(sbf_rep * x_rep, wbil_ref[...])                          # (T, H)

    # scatter-add over idx_ji back to edges: lane-dense (E, T) @ (T, H)
    t_iota = jax.lax.broadcasted_iota(jnp.int32, (E, T), 0)
    onehot_s = (t_iota == ji_ref[...]).astype(jnp.bfloat16)           # ji: (1, T)
    x_kj2 = _mxu(onehot_s, t)                                         # (E, H)

    x_new = _swish(_mxu(x_ji + x_kj2, wlin_ref[...]) + blin_ref[...])
    x_out_ref[...] = x_new

    # fused OutputBlock + running-P accumulation (P buffer aliased in/out).
    p_out_ref[...] = p_in_ref[...] + _output_block_compute(
        x_new, rbf, iidx_ref[...], bidx_ref[...],
        ob_wrbf_ref, ob_layer_refs, ob_wout_ref,
        bidx_ref.shape[1], p_out_ref.shape[0])


def _vae_head_kernel(h_ref, eps_ref, *refs, num_enc, num_dec, zdim):
    # refs = enc (w,b)*num_enc, enc_head w,b, dec (w,b)*num_dec, dec_head w,b,
    #        out_ref   (single lane-dense slab [mu_enc|logvar_enc|mu_dec|logvar_dec])
    out_ref = refs[-1]
    wrefs = refs[:-1]
    pos = 0
    h = h_ref[...]
    for _ in range(num_enc):
        w, b = wrefs[pos], wrefs[pos + 1]
        pos += 2
        h = jnp.tanh(_mxu(h, w[...]) + b[...])
    ew, eb = wrefs[pos], wrefs[pos + 1]
    pos += 2
    enc_out = _mxu(h, ew[...]) + eb[...]               # (G, 2*zdim) = [mu|logvar]
    mu_enc = enc_out[:, :zdim]
    logvar_enc = enc_out[:, zdim:]
    # reparameterize (training=True)
    z = mu_enc + jnp.exp(0.5 * logvar_enc) * eps_ref[...]
    hd = z
    for _ in range(num_dec):
        w, b = wrefs[pos], wrefs[pos + 1]
        pos += 2
        hd = jnp.tanh(_mxu(hd, w[...]) + b[...])
    dw, db = wrefs[pos], wrefs[pos + 1]
    dec_out = _mxu(hd, dw[...]) + db[...]              # (G, 2*xdim) = [mu|logvar]
    out_ref[...] = jnp.concatenate([enc_out, dec_out], axis=1)


# ----------------------------------------------------------------------------
# pallas_call wrappers (traced inside jit)
# ----------------------------------------------------------------------------
def emb_out_call(emb_p, ob_p, xi, xj, rbf, i2, b2, num_graphs, out_ch):
    E, H = xi.shape
    args = [xi, xj, rbf, i2, b2,
            emb_p["wrbf"], emb_p["brbf"], emb_p["wlin"], emb_p["blin"],
            ob_p["wrbf"]]
    for w, b in ob_p["lins"]:
        args += [w, b]
    args.append(ob_p["wout"])
    out_shapes = (jax.ShapeDtypeStruct((E, H), jnp.float32),
                  jax.ShapeDtypeStruct((num_graphs, out_ch), jnp.float32))
    return _pcall(_emb_out0_kernel, out_shapes, *args)


def inter_out_call(ib_p, ob_p, x, rbf, sbf, kj2, ji2, i2, b2, p_in,
                   num_graphs, out_ch):
    E, H = x.shape
    args = [x, rbf, sbf, kj2, ji2, i2, b2, p_in,
            ib_p["wrbf"], ib_p["wsbf_rep"], ib_p["wjikj"], ib_p["bjikj"],
            ib_p["tile_eye"], ib_p["wbil"], ib_p["wlin"], ib_p["blin"],
            ob_p["wrbf"]]
    for w, b in ob_p["lins"]:
        args += [w, b]
    args.append(ob_p["wout"])
    out_shapes = (jax.ShapeDtypeStruct((E, H), jnp.float32),
                  jax.ShapeDtypeStruct((num_graphs, out_ch), jnp.float32))
    # p_in is args[7]; alias it to output 1 (P) so accumulation reuses the buffer
    return _pcall(_inter_out_kernel, out_shapes, *args,
                  input_output_aliases={7: 1})


def vae_head_call(p, h, eps, cfg):
    args = [h, eps]
    for w, b in p["enc_lins"]:
        args += [w, b]
    args += [p["enc_head_w"], p["enc_head_b"]]
    for w, b in p["dec_lins"]:
        args += [w, b]
    args += [p["dec_head_w"], p["dec_head_b"]]
    G = h.shape[0]
    out_shape = jax.ShapeDtypeStruct((G, 2 * cfg.zdim + 2 * cfg.xdim),
                                     jnp.float32)
    return _pcall(functools.partial(_vae_head_kernel,
                                    num_enc=len(p["enc_lins"]),
                                    num_dec=len(p["dec_lins"]),
                                    zdim=cfg.zdim),
                  out_shape, *args)


# ----------------------------------------------------------------------------
# Basis layers (elementwise glue under jit, DimeNet semantics)
# ----------------------------------------------------------------------------
def envelope(x, exponent):
    p = exponent + 1
    a = -(p + 1) * (p + 2) / 2.0
    b = p * (p + 2)
    c = -p * (p + 1) / 2.0
    xp0 = x ** (p - 1)
    xp1 = xp0 * x
    xp2 = xp1 * x
    return 1.0 / x + a * xp0 + b * xp1 + c * xp2


def bessel_rbf(dist, freq, cutoff, exponent):
    d = (dist / cutoff)[:, None]                          # (E, 1)
    return envelope(d, exponent) * jnp.sin(freq[None, :] * d)


def _sph_jn(n, x):
    sx, cx = jnp.sin(x), jnp.cos(x)
    if n == 0:
        return sx / x
    if n == 1:
        return sx / x ** 2 - cx / x
    if n == 2:
        return (3.0 / x ** 3 - 1.0 / x) * sx - 3.0 / x ** 2 * cx
    raise NotImplementedError


_SPH_C0 = 0.28209479177387814      # 1/(2 sqrt(pi))
_SPH_C1 = 0.48860251190291992      # sqrt(3/(4 pi))
_SPH_C2 = 0.31539156525252005      # sqrt(5/(16 pi))


def spherical_sbf(dist, angle, idx_kj, cutoff, exponent, zeros, norms, ns, nr):
    d = dist / cutoff                                     # (E,)
    env = envelope(d, exponent)                           # (E,)
    cols = []
    for n in range(ns):
        for k in range(nr):
            cols.append(norms[n, k] * _sph_jn(n, zeros[n, k] * d))
    rbf = env[:, None] * jnp.stack(cols, axis=1)          # (E, ns*nr)
    c = jnp.cos(angle)
    sph = [jnp.full_like(angle, _SPH_C0)]
    if ns > 1:
        sph.append(_SPH_C1 * c)
    if ns > 2:
        sph.append(_SPH_C2 * (3.0 * c ** 2 - 1.0))
    cbf = jnp.stack(sph, axis=1)                          # (T, ns)
    rbf_g = rbf[idx_kj].reshape(-1, ns, nr)
    return (rbf_g * cbf[:, :, None]).reshape(-1, ns * nr)


_J1_ZEROS = np.array([4.493409457909064, 7.725251836937707, 10.904121659428899,
                      14.066193912831473, 17.220755271930770, 20.371302959287561])
_J2_ZEROS = np.array([5.763459196894550, 9.095011330476355, 12.322940970566582,
                      15.514603010886749, 18.689036355362822, 21.853874222709714])


def _np_sph_jn(n, x):
    sx, cx = np.sin(x), np.cos(x)
    if n == 1:
        return sx / x ** 2 - cx / x
    if n == 2:
        return (3.0 / x ** 3 - 1.0 / x) * sx - 3.0 / x ** 2 * cx
    if n == 3:
        return (15.0 / x ** 4 - 6.0 / x ** 2) * sx - (15.0 / x ** 3 - 1.0 / x) * cx
    raise NotImplementedError


def sph_basis_constants(ns, nr):
    assert ns <= 3 and nr <= 6
    zeros = np.zeros((ns, nr))
    zeros[0] = np.arange(1, nr + 1) * np.pi
    if ns > 1:
        zeros[1] = _J1_ZEROS[:nr]
    if ns > 2:
        zeros[2] = _J2_ZEROS[:nr]
    norms = np.zeros((ns, nr))
    for n in range(ns):
        for k in range(nr):
            norms[n, k] = 1.0 / np.sqrt(0.5 * _np_sph_jn(n + 1, zeros[n, k]) ** 2)
    return jnp.asarray(zeros, jnp.float32), jnp.asarray(norms, jnp.float32)


# ----------------------------------------------------------------------------
# Host-side graph construction (radius_graph + triplets; dynamic-shape glue)
# ----------------------------------------------------------------------------
def build_graph(pos_np, batch_np, cutoff):
    N = pos_np.shape[0]
    rows, cols = [], []        # row = source j, col = target i (torch_cluster conv.)
    for i_dst in range(N):
        for j_src in range(N):
            if i_dst == j_src or batch_np[i_dst] != batch_np[j_src]:
                continue
            if np.linalg.norm(pos_np[i_dst] - pos_np[j_src]) < cutoff:
                rows.append(j_src)
                cols.append(i_dst)
    row = np.asarray(rows, np.int32)
    col = np.asarray(cols, np.int32)
    E = row.shape[0]
    in_edges = [[] for _ in range(N)]      # edges e with col[e] == node
    for e in range(E):
        in_edges[col[e]].append(e)
    idx_i, idx_j, idx_k, idx_kj, idx_ji = [], [], [], [], []
    for ep in range(E):
        j, i = row[ep], col[ep]
        for e in in_edges[j]:
            k = row[e]
            if i == k:
                continue
            idx_i.append(i); idx_j.append(j); idx_k.append(k)
            idx_kj.append(e); idx_ji.append(ep)
    g = dict(row=row, col=col,
             idx_i=np.asarray(idx_i, np.int32), idx_j=np.asarray(idx_j, np.int32),
             idx_k=np.asarray(idx_k, np.int32), idx_kj=np.asarray(idx_kj, np.int32),
             idx_ji=np.asarray(idx_ji, np.int32))
    return {k: jnp.asarray(v) for k, v in g.items()}


# ----------------------------------------------------------------------------
# Forward (jit-compiled; 3 fused pallas_calls total for this config)
# ----------------------------------------------------------------------------
def mpn_forward(p, cfg, z, pos, batch, graph):
    i, j = graph["col"], graph["row"]                    # i = col, j = row
    dist = jnp.sqrt(jnp.sum((pos[i] - pos[j]) ** 2, axis=-1))
    pos_i = pos[graph["idx_i"]]
    pos_ji = pos[graph["idx_j"]] - pos_i
    pos_ki = pos[graph["idx_k"]] - pos_i
    a = jnp.sum(pos_ji * pos_ki, axis=-1)
    b = jnp.sqrt(jnp.sum(jnp.cross(pos_ji, pos_ki) ** 2, axis=-1))
    angle = jnp.arctan2(b, a)

    rbf = bessel_rbf(dist, p["rbf_freq"], cfg.cutoff, cfg.env_exp)
    sbf = spherical_sbf(dist, angle, graph["idx_kj"], cfg.cutoff, cfg.env_exp,
                        p["sbf_zeros"], p["sbf_norms"], cfg.ns, cfg.nr)

    # index arrays in the layouts the fused kernels consume
    i2 = i.reshape(1, -1).astype(jnp.int32)              # (1, E) edge -> node i
    b2 = batch.reshape(1, -1).astype(jnp.int32)          # (1, N) node -> graph
    kj2 = graph["idx_kj"].reshape(-1, 1).astype(jnp.int32)   # (T, 1)
    ji2 = graph["idx_ji"].reshape(1, -1).astype(jnp.int32)   # (1, T)

    x_emb = p["emb_block"]["emb"][z]                     # embedding gather (glue)
    # NOTE: torch uses scatter dim_size=None in later output blocks; the dense
    # synthetic graph gives max(i)+1 == num_nodes so this is equivalent.
    x, P = emb_out_call(p["emb_block"], p["output_blocks"][0],
                        x_emb[i], x_emb[j], rbf, i2, b2,
                        cfg.num_graphs, cfg.out_ch)
    for ib, ob in zip(p["interaction_blocks"], p["output_blocks"][1:]):
        x, P = inter_out_call(ib, ob, x, rbf, sbf, kj2, ji2, i2, b2, P,
                              cfg.num_graphs, cfg.out_ch)
    return P                                             # (num_graphs, out_ch)


def vae_forward(params, cfg, z_atoms, pos, batch, graph, eps_key):
    h = mpn_forward(params, cfg, z_atoms, pos, batch, graph)
    eps = jax.random.normal(eps_key, (cfg.num_graphs, cfg.zdim), jnp.float32)
    out = vae_head_call(params["head"], h, eps, cfg)     # (G, 2*zdim + 2*xdim)
    zd = cfg.zdim
    mu_enc = out[:, :zd]
    logvar_enc = out[:, zd:2 * zd]
    mu_dec = out[:, 2 * zd:2 * zd + cfg.xdim]
    logvar_dec = out[:, 2 * zd + cfg.xdim:]
    return (mu_dec, logvar_dec), mu_enc, logvar_enc


def make_forward(cfg):
    def fwd(params, z_atoms, pos, batch, graph, eps_key):
        return vae_forward(params, cfg, z_atoms, pos, batch, graph, eps_key)
    return jax.jit(fwd)


# ----------------------------------------------------------------------------
# Parameter init (torch layout) + one-time kernel-layout / bf16 preparation
# ----------------------------------------------------------------------------
def init_params(key, cfg):
    ks = iter(jax.random.split(key, 128))

    def lin(in_f, out_f, bias=True, zero_bias=False, scale=0.1):
        w = scale * jax.random.normal(next(ks), (out_f, in_f), jnp.float32)
        if not bias:
            return {"w": w, "b": None}
        b = (jnp.zeros((out_f,), jnp.float32) if zero_bias
             else 0.05 * jax.random.normal(next(ks), (out_f,), jnp.float32))
        return {"w": w, "b": b}

    H, nr, ns, NB = cfg.H, cfg.nr, cfg.ns, cfg.NB
    zeros, norms = sph_basis_constants(ns, nr)
    mpn = {
        "rbf_freq": jnp.arange(1, nr + 1, dtype=jnp.float32) * np.pi,
        "sbf_zeros": zeros,
        "sbf_norms": norms,
        "emb_block": {
            "emb": jax.random.uniform(next(ks), (95, H), jnp.float32,
                                      -np.sqrt(3.0), np.sqrt(3.0)),
            "lin_rbf": lin(nr, H, zero_bias=True),
            "lin": lin(3 * H, H, zero_bias=True),
        },
        "output_blocks": [],
        "interaction_blocks": [],
    }
    for _ in range(cfg.num_blocks + 1):
        mpn["output_blocks"].append({
            "lin_rbf": lin(nr, H, bias=False),
            "lins": [lin(H, H, zero_bias=True) for _ in range(cfg.num_layers)],
            # torch zero-inits this final lin; use small random values so the
            # synthetic forward produces a nontrivial signal (deterministic).
            "lin": lin(H, cfg.out_ch, bias=False),
        })
    for _ in range(cfg.num_blocks):
        mpn["interaction_blocks"].append({
            "lin_rbf": lin(nr, H, bias=False),
            "lin_sbf": lin(ns * nr, NB, bias=False),
            "lin_kj": lin(H, H, zero_bias=True),
            "lin_ji": lin(H, H, zero_bias=True),
            "W": (2.0 / H) * jax.random.normal(next(ks), (H, NB, H), jnp.float32),
            "lin": lin(H, H, zero_bias=True),
        })
    return {"mpn": mpn,
            "enc_lins": [lin(cfg.out_ch, cfg.out_ch) for _ in range(cfg.num_enc_lins)],
            "enc_mu": lin(cfg.out_ch, cfg.zdim),
            "enc_logvar": lin(cfg.out_ch, cfg.zdim),
            "dec_lins": [lin(cfg.zdim if l == 0 else cfg.dec_hidden, cfg.dec_hidden)
                         for l in range(cfg.num_dec_lins)],
            "dec_mu": lin(cfg.dec_hidden, cfg.xdim),
            "dec_logvar": lin(cfg.dec_hidden, cfg.xdim)}


def _lin_t(lp):
    """torch (out,in) weight -> (in,out) bf16 (pre-cast once) + (1,out) f32 bias."""
    w = jnp.asarray(lp["w"], jnp.float32).T.astype(jnp.bfloat16)
    b = lp.get("b")
    if b is None:
        b = jnp.zeros((lp["w"].shape[0],), jnp.float32)
    return w, jnp.asarray(b, jnp.float32).reshape(1, -1)


def prepare_params(raw, cfg):
    H, NB = cfg.H, cfg.NB
    mpn = raw["mpn"]

    emb = mpn["emb_block"]
    wrbf, brbf = _lin_t(emb["lin_rbf"])
    wlin, blin = _lin_t(emb["lin"])                      # (3H, H) bf16, kept fused
    emb_p = dict(emb=jnp.asarray(emb["emb"], jnp.float32),
                 wrbf=wrbf, brbf=brbf, wlin=wlin, blin=blin)

    out_blocks = []
    for ob in mpn["output_blocks"]:
        wr, _ = _lin_t(ob["lin_rbf"])
        lins = [_lin_t(lp) for lp in ob["lins"]]
        wo, _ = _lin_t(ob["lin"])
        out_blocks.append(dict(wrbf=wr, lins=lins, wout=wo))

    # exact 0/1 tiling matrix for x_kj replication inside the bilinear stage
    tile_eye = jnp.tile(jnp.eye(H, dtype=jnp.float32), (1, NB)).astype(jnp.bfloat16)

    inter_blocks = []
    for ib in mpn["interaction_blocks"]:
        wr, _ = _lin_t(ib["lin_rbf"])
        # lin_sbf folded with the j -> [j*H, (j+1)*H) column replication so the
        # kernel gets sbf_rep with a single matmul.
        wsbf = jnp.asarray(ib["lin_sbf"]["w"], jnp.float32).T        # (ns*nr, NB)
        wsbf_rep = jnp.repeat(wsbf, H, axis=1).astype(jnp.bfloat16)  # (ns*nr, NB*H)
        wji, bji = _lin_t(ib["lin_ji"])
        wkj, bkj = _lin_t(ib["lin_kj"])
        wjikj = jnp.concatenate([wji, wkj], axis=1)                  # (H, 2H) bf16
        bjikj = jnp.concatenate([bji, bkj], axis=1)                  # (1, 2H) f32
        wl, bl = _lin_t(ib["lin"])
        W = jnp.asarray(ib["W"], jnp.float32)                        # (H_out, NB, H_in)
        wbil = jnp.transpose(W, (1, 2, 0)).reshape(NB * H, H).astype(jnp.bfloat16)
        inter_blocks.append(dict(wrbf=wr, wsbf_rep=wsbf_rep, wjikj=wjikj,
                                 bjikj=bjikj, tile_eye=tile_eye, wbil=wbil,
                                 wlin=wl, blin=bl))

    enc_lins = [_lin_t(lp) for lp in raw["enc_lins"]]
    emu_w, emu_b = _lin_t(raw["enc_mu"])
    elv_w, elv_b = _lin_t(raw["enc_logvar"])
    dec_lins = [_lin_t(lp) for lp in raw["dec_lins"]]
    dmu_w, dmu_b = _lin_t(raw["dec_mu"])
    dlv_w, dlv_b = _lin_t(raw["dec_logvar"])
    head = dict(enc_lins=enc_lins,
                enc_head_w=jnp.concatenate([emu_w, elv_w], axis=1),
                enc_head_b=jnp.concatenate([emu_b, elv_b], axis=1),
                dec_lins=dec_lins,
                dec_head_w=jnp.concatenate([dmu_w, dlv_w], axis=1),
                dec_head_b=jnp.concatenate([dmu_b, dlv_b], axis=1))

    return dict(rbf_freq=mpn["rbf_freq"], sbf_zeros=mpn["sbf_zeros"],
                sbf_norms=mpn["sbf_norms"], emb_block=emb_p,
                output_blocks=out_blocks, interaction_blocks=inter_blocks,
                head=head)


# ----------------------------------------------------------------------------
if __name__ == "__main__":
    cfg = types.SimpleNamespace(
        ns=3, nr=4, H=32, NB=4, out_ch=16, num_layers=2, num_blocks=1,
        num_enc_lins=2, num_dec_lins=2, dec_hidden=64, zdim=2, xdim=66,
        cutoff=5.0, env_exp=5, num_graphs=2)

    key = jax.random.PRNGKey(0)
    k_par, k_pos, k_z, k_eps = jax.random.split(key, 4)

    nodes_per_graph = 6
    N = nodes_per_graph * cfg.num_graphs
    pos = jax.random.uniform(k_pos, (N, 3), jnp.float32, 0.0, 1.5)
    z_atoms = jax.random.randint(k_z, (N,), 1, 10)
    batch = jnp.asarray(np.repeat(np.arange(cfg.num_graphs), nodes_per_graph),
                        jnp.int32)

    graph = build_graph(np.asarray(pos), np.asarray(batch), cfg.cutoff)
    raw_params = init_params(k_par, cfg)
    params = prepare_params(raw_params, cfg)     # one-time layout / bf16 prep

    fwd = make_forward(cfg)                      # jit-compiled forward
    (mu_dec, logvar_dec), mu_enc, logvar_enc = fwd(
        params, z_atoms, pos, batch, graph, k_eps)

    jax.block_until_ready((mu_dec, logvar_dec, mu_enc, logvar_enc))
    assert mu_dec.shape == (cfg.num_graphs, cfg.xdim)
    assert logvar_dec.shape == (cfg.num_graphs, cfg.xdim)
    assert mu_enc.shape == (cfg.num_graphs, cfg.zdim)
    assert logvar_enc.shape == (cfg.num_graphs, cfg.zdim)
    assert np.all(np.isfinite(np.asarray(mu_dec)))
    assert np.all(np.isfinite(np.asarray(logvar_dec)))
    print("KERNEL_OK")
</pallas_src>

<mosaic_0001>
module attributes {stable_mosaic.version = 11 : i64} {
  func.func @_emb_out0_kernel(%arg0: memref<60x32xf32, #tpu.memory_space<vmem>>, %arg1: memref<60x32xf32, #tpu.memory_space<vmem>>, %arg2: memref<60x4xf32, #tpu.memory_space<vmem>>, %arg3: memref<1x60xi32, #tpu.memory_space<vmem>>, %arg4: memref<1x12xi32, #tpu.memory_space<vmem>>, %arg5: memref<4x32xbf16, #tpu.memory_space<vmem>>, %arg6: memref<1x32xf32, #tpu.memory_space<vmem>>, %arg7: memref<96x32xbf16, #tpu.memory_space<vmem>>, %arg8: memref<1x32xf32, #tpu.memory_space<vmem>>, %arg9: memref<4x32xbf16, #tpu.memory_space<vmem>>, %arg10: memref<32x32xbf16, #tpu.memory_space<vmem>>, %arg11: memref<1x32xf32, #tpu.memory_space<vmem>>, %arg12: memref<32x32xbf16, #tpu.memory_space<vmem>>, %arg13: memref<1x32xf32, #tpu.memory_space<vmem>>, %arg14: memref<32x16xbf16, #tpu.memory_space<vmem>>, %arg15: memref<60x32xf32, #tpu.memory_space<vmem>>, %arg16: memref<2x16xf32, #tpu.memory_space<vmem>>) attributes {dimension_semantics = [], scalar_prefetch = 0 : i64, scratch_operands = 0 : i64, tpu.core_type = #tpu.core_type<tc>} {
    %c0 = arith.constant 0 : index
    %c0_0 = arith.constant 0 : index
    %0 = vector.load %arg2[%c0, %c0_0] : memref<60x4xf32, #tpu.memory_space<vmem>>, vector<60x4xf32>
    %c0_1 = arith.constant 0 : index
    %c0_2 = arith.constant 0 : index
    %1 = vector.load %arg5[%c0_1, %c0_2] : memref<4x32xbf16, #tpu.memory_space<vmem>>, vector<4x32xbf16>
    %2 = arith.truncf %0 : vector<60x4xf32> to vector<60x4xbf16>
    %cst = arith.constant dense<0.000000e+00> : vector<60x32xf32>
    %3 = tpu.matmul %2, %1, %cst {dimension_numbers = #tpu.dot_dimension_numbers<[1], [0], [0], [1], [0, 0, 1, 1], [], []>} : vector<60x4xbf16>, vector<4x32xbf16>, vector<60x32xf32> -> vector<60x32xf32>
    %c0_3 = arith.constant 0 : index
    %c0_4 = arith.constant 0 : index
    %4 = vector.load %arg6[%c0_3, %c0_4] : memref<1x32xf32, #tpu.memory_space<vmem>>, vector<1x32xf32>
    %5 = vector.broadcast %4 : vector<1x32xf32> to vector<60x32xf32>
    %6 = arith.addf %3, %5 : vector<60x32xf32>
    %7 = arith.negf %6 : vector<60x32xf32>
    %8 = math.exp %7 : vector<60x32xf32>
    %cst_5 = arith.constant 1.000000e+00 : f32
    %9 = vector.broadcast %cst_5 : f32 to vector<60x32xf32>
    %10 = arith.addf %9, %8 : vector<60x32xf32>
    %11 = arith.divf %9, %10 : vector<60x32xf32>
    %12 = arith.mulf %6, %11 : vector<60x32xf32>
    %c0_6 = arith.constant 0 : index
    %c0_7 = arith.constant 0 : index
    %13 = vector.load %arg0[%c0_6, %c0_7] : memref<60x32xf32, #tpu.memory_space<vmem>>, vector<60x32xf32>
    %c0_8 = arith.constant 0 : index
    %c0_9 = arith.constant 0 : index
    %14 = vector.load %arg1[%c0_8, %c0_9] : memref<60x32xf32, #tpu.memory_space<vmem>>, vector<60x32xf32>
    %15 = tpu.concatenate %13, %14, %12 in 1 : vector<60x32xf32>, vector<60x32xf32>, vector<60x32xf32> -> vector<60x96xf32>
    %c0_10 = arith.constant 0 : index
    %c0_11 = arith.constant 0 : index
    %16 = vector.load %arg7[%c0_10, %c0_11] : memref<96x32xbf16, #tpu.memory_space<vmem>>, vector<96x32xbf16>
    %17 = arith.truncf %15 : vector<60x96xf32> to vector<60x96xbf16>
    %cst_12 = arith.constant dense<0.000000e+00> : vector<60x32xf32>
    %18 = tpu.matmul %17, %16, %cst_12 {dimension_numbers = #tpu.dot_dimension_numbers<[1], [0], [0], [1], [0, 0, 1, 1], [], []>} : vector<60x96xbf16>, vector<96x32xbf16>, vector<60x32xf32> -> vector<60x32xf32>
    %c0_13 = arith.constant 0 : index
    %c0_14 = arith.constant 0 : index
    %19 = vector.load %arg8[%c0_13, %c0_14] : memref<1x32xf32, #tpu.memory_space<vmem>>, vector<1x32xf32>
    %20 = vector.broadcast %19 : vector<1x32xf32> to vector<60x32xf32>
    %21 = arith.addf %18, %20 : vector<60x32xf32>
    %22 = arith.negf %21 : vector<60x32xf32>
    %23 = math.exp %22 : vector<60x32xf32>
    %cst_15 = arith.constant 1.000000e+00 : f32
    %24 = vector.broadcast %cst_15 : f32 to vector<60x32xf32>
    %25 = arith.addf %24, %23 : vector<60x32xf32>
    %26 = arith.divf %24, %25 : vector<60x32xf32>
    %27 = arith.mulf %21, %26 : vector<60x32xf32>
    %c0_16 = arith.constant 0 : index
    %c0_17 = arith.constant 0 : index
    %28 = vector.load %arg15[%c0_16, %c0_17] : memref<60x32xf32, #tpu.memory_space<vmem>>, vector<60x32xf32>
    tpu.vector_store %arg15[%c0_16, %c0_17], %27 {strides = array<i32>} : memref<60x32xf32, #tpu.memory_space<vmem>>, vector<60x32xf32>,
    %c0_18 = arith.constant 0 : index
    %c0_19 = arith.constant 0 : index
    %29 = vector.load %arg3[%c0_18, %c0_19] : memref<1x60xi32, #tpu.memory_space<vmem>>, vector<1x60xi32>
    %c0_20 = arith.constant 0 : index
    %c0_21 = arith.constant 0 : index
    %30 = vector.load %arg4[%c0_20, %c0_21] : memref<1x12xi32, #tpu.memory_space<vmem>>, vector<1x12xi32>
    %c0_22 = arith.constant 0 : index
    %c0_23 = arith.constant 0 : index
    %31 = vector.load %arg9[%c0_22, %c0_23] : memref<4x32xbf16, #tpu.memory_space<vmem>>, vector<4x32xbf16>
    %32 = arith.truncf %0 : vector<60x4xf32> to vector<60x4xbf16>
    %cst_24 = arith.constant dense<0.000000e+00> : vector<60x32xf32>
    %33 = tpu.matmul %32, %31, %cst_24 {dimension_numbers = #tpu.dot_dimension_numbers<[1], [0], [0], [1], [0, 0, 1, 1], [], []>} : vector<60x4xbf16>, vector<4x32xbf16>, vector<60x32xf32> -> vector<60x32xf32>
    %34 = arith.mulf %33, %27 : vector<60x32xf32>
    %35 = tpu.iota {dimensions = array<i32: 0>} : vector<12x60xi32>
    %36 = vector.broadcast %29 : vector<1x60xi32> to vector<12x60xi32>
    %37 = arith.cmpi eq, %35, %36 : vector<12x60xi32>
    %38 = arith.extui %37 : vector<12x60xi1> to vector<12x60xi32>
    %39 = arith.sitofp %38 : vector<12x60xi32> to vector<12x60xf32>
    %40 = arith.truncf %39 : vector<12x60xf32> to vector<12x60xbf16>
    %41 = arith.truncf %34 : vector<60x32xf32> to vector<60x32xbf16>
    %cst_25 = arith.constant dense<0.000000e+00> : vector<12x32xf32>
    %42 = tpu.matmul %40, %41, %cst_25 {dimension_numbers = #tpu.dot_dimension_numbers<[1], [0], [0], [1], [0, 0, 1, 1], [], []>} : vector<12x60xbf16>, vector<60x32xbf16>, vector<12x32xf32> -> vector<12x32xf32>
    %c0_26 = arith.constant 0 : index
    %c0_27 = arith.constant 0 : index
    %43 = vector.load %arg10[%c0_26, %c0_27] : memref<32x32xbf16, #tpu.memory_space<vmem>>, vector<32x32xbf16>
    %44 = arith.truncf %42 : vector<12x32xf32> to vector<12x32xbf16>
    %cst_28 = arith.constant dense<0.000000e+00> : vector<12x32xf32>
    %45 = tpu.matmul %44, %43, %cst_28 {dimension_numbers = #tpu.dot_dimension_numbers<[1], [0], [0], [1], [0, 0, 1, 1], [], []>} : vector<12x32xbf16>, vector<32x32xbf16>, vector<12x32xf32> -> vector<12x32xf32>
    %c0_29 = arith.constant 0 : index
    %c0_30 = arith.constant 0 : index
    %46 = vector.load %arg11[%c0_29, %c0_30] : memref<1x32xf32, #tpu.memory_space<vmem>>, vector<1x32xf32>
    %47 = vector.broadcast %46 : vector<1x32xf32> to vector<12x32xf32>
    %48 = arith.addf %45, %47 : vector<12x32xf32>
    %49 = arith.negf %48 : vector<12x32xf32>
    %50 = math.exp %49 : vector<12x32xf32>
    %cst_31 = arith.constant 1.000000e+00 : f32
    %51 = vector.broadcast %cst_31 : f32 to vector<12x32xf32>
    %52 = arith.addf %51, %50 : vector<12x32xf32>
    %53 = arith.divf %51, %52 : vector<12x32xf32>
    %54 = arith.mulf %48, %53 : vector<12x32xf32>
    %c0_32 = arith.constant 0 : index
    %c0_33 = arith.constant 0 : index
    %55 = vector.load %arg12[%c0_32, %c0_33] : memref<32x32xbf16, #tpu.memory_space<vmem>>, vector<32x32xbf16>
    %56 = arith.truncf %54 : vector<12x32xf32> to vector<12x32xbf16>
    %cst_34 = arith.constant dense<0.000000e+00> : vector<12x32xf32>
    %57 = tpu.matmul %56, %55, %cst_34 {dimension_numbers = #tpu.dot_dimension_numbers<[1], [0], [0], [1], [0, 0, 1, 1], [], []>} : vector<12x32xbf16>, vector<32x32xbf16>, vector<12x32xf32> -> vector<12x32xf32>
    %c0_35 = arith.constant 0 : index
    %c0_36 = arith.constant 0 : index
    %58 = vector.load %arg13[%c0_35, %c0_36] : memref<1x32xf32, #tpu.memory_space<vmem>>, vector<1x32xf32>
    %59 = vector.broadcast %58 : vector<1x32xf32> to vector<12x32xf32>
    %60 = arith.addf %57, %59 : vector<12x32xf32>
    %61 = arith.negf %60 : vector<12x32xf32>
    %62 = math.exp %61 : vector<12x32xf32>
    %cst_37 = arith.constant 1.000000e+00 : f32
    %63 = vector.broadcast %cst_37 : f32 to vector<12x32xf32>
    %64 = arith.addf %63, %62 : vector<12x32xf32>
    %65 = arith.divf %63, %64 : vector<12x32xf32>
    %66 = arith.mulf %60, %65 : vector<12x32xf32>
    %c0_38 = arith.constant 0 : index
    %c0_39 = arith.constant 0 : index
    %67 = vector.load %arg14[%c0_38, %c0_39] : memref<32x16xbf16, #tpu.memory_space<vmem>>, vector<32x16xbf16>
    %68 = arith.truncf %66 : vector<12x32xf32> to vector<12x32xbf16>
    %cst_40 = arith.constant dense<0.000000e+00> : vector<12x16xf32>
    %69 = tpu.matmul %68, %67, %cst_40 {dimension_numbers = #tpu.dot_dimension_numbers<[1], [0], [0], [1], [0, 0, 1, 1], [], []>} : vector<12x32xbf16>, vector<32x16xbf16>, vector<12x16xf32> -> vector<12x16xf32>
    %70 = tpu.iota {dimensions = array<i32: 0>} : vector<2x12xi32>
    %71 = vector.broadcast %30 : vector<1x12xi32> to vector<2x12xi32>
    %72 = arith.cmpi eq, %70, %71 : vector<2x12xi32>
    %73 = arith.extui %72 : vector<2x12xi1> to vector<2x12xi32>
    %74 = arith.sitofp %73 : vector<2x12xi32> to vector<2x12xf32>
    %75 = arith.truncf %74 : vector<2x12xf32> to vector<2x12xbf16>
    %76 = arith.truncf %69 : vector<12x16xf32> to vector<12x16xbf16>
    %cst_41 = arith.constant dense<0.000000e+00> : vector<2x16xf32>
    %77 = tpu.matmul %75, %76, %cst_41 {dimension_numbers = #tpu.dot_dimension_numbers<[1], [0], [0], [1], [0, 0, 1, 1], [], []>} : vector<2x12xbf16>, vector<12x16xbf16>, vector<2x16xf32> -> vector<2x16xf32>
    %c0_42 = arith.constant 0 : index
    %c0_43 = arith.constant 0 : index
    %78 = vector.load %arg16[%c0_42, %c0_43] : memref<2x16xf32, #tpu.memory_space<vmem>>, vector<2x16xf32>
    tpu.vector_store %arg16[%c0_42, %c0_43], %77 {strides = array<i32>} : memref<2x16xf32, #tpu.memory_space<vmem>>, vector<2x16xf32>,
    return
  }
}

module attributes {stable_mosaic.version = 11 : i64} {
  func.func @_inter_out_kernel(%arg0: memref<60x32xf32, #tpu.memory_space<vmem>>, %arg1: memref<60x4xf32, #tpu.memory_space<vmem>>, %arg2: memref<240x12xf32, #tpu.memory_space<vmem>>, %arg3: memref<240x1xi32, #tpu.memory_space<vmem>>, %arg4: memref<1x240xi32, #tpu.memory_space<vmem>>, %arg5: memref<1x60xi32, #tpu.memory_space<vmem>>, %arg6: memref<1x12xi32, #tpu.memory_space<vmem>>, %arg7: memref<2x16xf32, #tpu.memory_space<vmem>>, %arg8: memref<4x32xbf16, #tpu.memory_space<vmem>>, %arg9: memref<12x128xbf16, #tpu.memory_space<vmem>>, %arg10: memref<32x64xbf16, #tpu.memory_space<vmem>>, %arg11: memref<1x64xf32, #tpu.memory_space<vmem>>, %arg12: memref<32x128xbf16, #tpu.memory_space<vmem>>, %arg13: memref<128x32xbf16, #tpu.memory_space<vmem>>, %arg14: memref<32x32xbf16, #tpu.memory_space<vmem>>, %arg15: memref<1x32xf32, #tpu.memory_space<vmem>>, %arg16: memref<4x32xbf16, #tpu.memory_space<vmem>>, %arg17: memref<32x32xbf16, #tpu.memory_space<vmem>>, %arg18: memref<1x32xf32, #tpu.memory_space<vmem>>, %arg19: memref<32x32xbf16, #tpu.memory_space<vmem>>, %arg20: memref<1x32xf32, #tpu.memory_space<vmem>>, %arg21: memref<32x16xbf16, #tpu.memory_space<vmem>>, %arg22: memref<60x32xf32, #tpu.memory_space<vmem>>, %arg23: memref<2x16xf32, #tpu.memory_space<vmem>>) attributes {dimension_semantics = [], scalar_prefetch = 0 : i64, scratch_operands = 0 : i64, tpu.core_type = #tpu.core_type<tc>} {
    %c0 = arith.constant 0 : index
    %c0_0 = arith.constant 0 : index
    %0 = vector.load %arg0[%c0, %c0_0] : memref<60x32xf32, #tpu.memory_space<vmem>>, vector<60x32xf32>
    %c0_1 = arith.constant 0 : index
    %c0_2 = arith.constant 0 : index
    %1 = vector.load %arg1[%c0_1, %c0_2] : memref<60x4xf32, #tpu.memory_space<vmem>>, vector<60x4xf32>
    %c0_3 = arith.constant 0 : index
    %c0_4 = arith.constant 0 : index
    %2 = vector.load %arg8[%c0_3, %c0_4] : memref<4x32xbf16, #tpu.memory_space<vmem>>, vector<4x32xbf16>
    %3 = arith.truncf %1 : vector<60x4xf32> to vector<60x4xbf16>
    %cst = arith.constant dense<0.000000e+00> : vector<60x32xf32>
    %4 = tpu.matmul %3, %2, %cst {dimension_numbers = #tpu.dot_dimension_numbers<[1], [0], [0], [1], [0, 0, 1, 1], [], []>} : vector<60x4xbf16>, vector<4x32xbf16>, vector<60x32xf32> -> vector<60x32xf32>
    %c0_5 = arith.constant 0 : index
    %c0_6 = arith.constant 0 : index
    %5 = vector.load %arg10[%c0_5, %c0_6] : memref<32x64xbf16, #tpu.memory_space<vmem>>, vector<32x64xbf16>
    %6 = arith.truncf %0 : vector<60x32xf32> to vector<60x32xbf16>
    %cst_7 = arith.constant dense<0.000000e+00> : vector<60x64xf32>
    %7 = tpu.matmul %6, %5, %cst_7 {dimension_numbers = #tpu.dot_dimension_numbers<[1], [0], [0], [1], [0, 0, 1, 1], [], []>} : vector<60x32xbf16>, vector<32x64xbf16>, vector<60x64xf32> -> vector<60x64xf32>
    %c0_8 = arith.constant 0 : index
    %c0_9 = arith.constant 0 : index
    %8 = vector.load %arg11[%c0_8, %c0_9] : memref<1x64xf32, #tpu.memory_space<vmem>>, vector<1x64xf32>
    %9 = vector.broadcast %8 : vector<1x64xf32> to vector<60x64xf32>
    %10 = arith.addf %7, %9 : vector<60x64xf32>
    %11 = arith.negf %10 : vector<60x64xf32>
    %12 = math.exp %11 : vector<60x64xf32>
    %cst_10 = arith.constant 1.000000e+00 : f32
    %13 = vector.broadcast %cst_10 : f32 to vector<60x64xf32>
    %14 = arith.addf %13, %12 : vector<60x64xf32>
    %15 = arith.divf %13, %14 : vector<60x64xf32>
    %16 = arith.mulf %10, %15 : vector<60x64xf32>
    %17 = vector.extract_strided_slice %16 {offsets = [0, 0], sizes = [60, 32], strides = [1, 1]} : vector<60x64xf32> to vector<60x32xf32>
    %18 = vector.extract_strided_slice %16 {offsets = [0, 32], sizes = [60, 32], strides = [1, 1]} : vector<60x64xf32> to vector<60x32xf32>
    %19 = arith.mulf %18, %4 : vector<60x32xf32>
    %20 = tpu.iota {dimensions = array<i32: 1>} : vector<240x60xi32>
    %c0_11 = arith.constant 0 : index
    %c0_12 = arith.constant 0 : index
    %21 = vector.load %arg3[%c0_11, %c0_12] : memref<240x1xi32, #tpu.memory_space<vmem>>, vector<240x1xi32>
    %22 = vector.broadcast %21 : vector<240x1xi32> to vector<240x60xi32>
    %23 = arith.cmpi eq, %20, %22 : vector<240x60xi32>
    %24 = arith.extui %23 : vector<240x60xi1> to vector<240x60xi32>
    %25 = arith.sitofp %24 : vector<240x60xi32> to vector<240x60xf32>
    %26 = arith.truncf %25 : vector<240x60xf32> to vector<240x60xbf16>
    %27 = arith.truncf %19 : vector<60x32xf32> to vector<60x32xbf16>
    %cst_13 = arith.constant dense<0.000000e+00> : vector<240x32xf32>
    %28 = tpu.matmul %26, %27, %cst_13 {dimension_numbers = #tpu.dot_dimension_numbers<[1], [0], [0], [1], [0, 0, 1, 1], [], []>} : vector<240x60xbf16>, vector<60x32xbf16>, vector<240x32xf32> -> vector<240x32xf32>
    %c0_14 = arith.constant 0 : index
    %c0_15 = arith.constant 0 : index
    %29 = vector.load %arg2[%c0_14, %c0_15] : memref<240x12xf32, #tpu.memory_space<vmem>>, vector<240x12xf32>
    %c0_16 = arith.constant 0 : index
    %c0_17 = arith.constant 0 : index
    %30 = vector.load %arg9[%c0_16, %c0_17] : memref<12x128xbf16, #tpu.memory_space<vmem>>, vector<12x128xbf16>
    %31 = arith.truncf %29 : vector<240x12xf32> to vector<240x12xbf16>
    %cst_18 = arith.constant dense<0.000000e+00> : vector<240x128xf32>
    %32 = tpu.matmul %31, %30, %cst_18 {dimension_numbers = #tpu.dot_dimension_numbers<[1], [0], [0], [1], [0, 0, 1, 1], [], []>} : vector<240x12xbf16>, vector<12x128xbf16>, vector<240x128xf32> -> vector<240x128xf32>
    %c0_19 = arith.constant 0 : index
    %c0_20 = arith.constant 0 : index
    %33 = vector.load %arg12[%c0_19, %c0_20] : memref<32x128xbf16, #tpu.memory_space<vmem>>, vector<32x128xbf16>
    %34 = arith.truncf %28 : vector<240x32xf32> to vector<240x32xbf16>
    %cst_21 = arith.constant dense<0.000000e+00> : vector<240x128xf32>
    %35 = tpu.matmul %34, %33, %cst_21 {dimension_numbers = #tpu.dot_dimension_numbers<[1], [0], [0], [1], [0, 0, 1, 1], [], []>} : vector<240x32xbf16>, vector<32x128xbf16>, vector<240x128xf32> -> vector<240x128xf32>
    %36 = arith.mulf %32, %35 : vector<240x128xf32>
    %c0_22 = arith.constant 0 : index
    %c0_23 = arith.constant 0 : index
    %37 = vector.load %arg13[%c0_22, %c0_23] : memref<128x32xbf16, #tpu.memory_space<vmem>>, vector<128x32xbf16>
    %38 = arith.truncf %36 : vector<240x128xf32> to vector<240x128xbf16>
    %cst_24 = arith.constant dense<0.000000e+00> : vector<240x32xf32>
    %39 = tpu.matmul %38, %37, %cst_24 {dimension_numbers = #tpu.dot_dimension_numbers<[1], [0], [0], [1], [0, 0, 1, 1], [], []>} : vector<240x128xbf16>, vector<128x32xbf16>, vector<240x32xf32> -> vector<240x32xf32>
    %40 = tpu.iota {dimensions = array<i32: 0>} : vector<60x240xi32>
    %c0_25 = arith.constant 0 : index
    %c0_26 = arith.constant 0 : index
    %41 = vector.load %arg4[%c0_25, %c0_26] : memref<1x240xi32, #tpu.memory_space<vmem>>, vector<1x240xi32>
    %42 = vector.broadcast %41 : vector<1x240xi32> to vector<60x240xi32>
    %43 = arith.cmpi eq, %40, %42 : vector<60x240xi32>
    %44 = arith.extui %43 : vector<60x240xi1> to vector<60x240xi32>
    %45 = arith.sitofp %44 : vector<60x240xi32> to vector<60x240xf32>
    %46 = arith.truncf %45 : vector<60x240xf32> to vector<60x240xbf16>
    %47 = arith.truncf %39 : vector<240x32xf32> to vector<240x32xbf16>
    %cst_27 = arith.constant dense<0.000000e+00> : vector<60x32xf32>
    %48 = tpu.matmul %46, %47, %cst_27 {dimension_numbers = #tpu.dot_dimension_numbers<[1], [0], [0], [1], [0, 0, 1, 1], [], []>} : vector<60x240xbf16>, vector<240x32xbf16>, vector<60x32xf32> -> vector<60x32xf32>
    %49 = arith.addf %17, %48 : vector<60x32xf32>
    %c0_28 = arith.constant 0 : index
    %c0_29 = arith.constant 0 : index
    %50 = vector.load %arg14[%c0_28, %c0_29] : memref<32x32xbf16, #tpu.memory_space<vmem>>, vector<32x32xbf16>
    %51 = arith.truncf %49 : vector<60x32xf32> to vector<60x32xbf16>
    %cst_30 = arith.constant dense<0.000000e+00> : vector<60x32xf32>
    %52 = tpu.matmul %51, %50, %cst_30 {dimension_numbers = #tpu.dot_dimension_numbers<[1], [0], [0], [1], [0, 0, 1, 1], [], []>} : vector<60x32xbf16>, vector<32x32xbf16>, vector<60x32xf32> -> vector<60x32xf32>
    %c0_31 = arith.constant 0 : index
    %c0_32 = arith.constant 0 : index
    %53 = vector.load %arg15[%c0_31, %c0_32] : memref<1x32xf32, #tpu.memory_space<vmem>>, vector<1x32xf32>
    %54 = vector.broadcast %53 : vector<1x32xf32> to vector<60x32xf32>
    %55 = arith.addf %52, %54 : vector<60x32xf32>
    %56 = arith.negf %55 : vector<60x32xf32>
    %57 = math.exp %56 : vector<60x32xf32>
    %cst_33 = arith.constant 1.000000e+00 : f32
    %58 = vector.broadcast %cst_33 : f32 to vector<60x32xf32>
    %59 = arith.addf %58, %57 : vector<60x32xf32>
    %60 = arith.divf %58, %59 : vector<60x32xf32>
    %61 = arith.mulf %55, %60 : vector<60x32xf32>
    %c0_34 = arith.constant 0 : index
    %c0_35 = arith.constant 0 : index
    %62 = vector.load %arg22[%c0_34, %c0_35] : memref<60x32xf32, #tpu.memory_space<vmem>>, vector<60x32xf32>
    tpu.vector_store %arg22[%c0_34, %c0_35], %61 {strides = array<i32>} : memref<60x32xf32, #tpu.memory_space<vmem>>, vector<60x32xf32>,
    %c0_36 = arith.constant 0 : index
    %c0_37 = arith.constant 0 : index
    %63 = vector.load %arg7[%c0_36, %c0_37] : memref<2x16xf32, #tpu.memory_space<vmem>>, vector<2x16xf32>
    %c0_38 = arith.constant 0 : index
    %c0_39 = arith.constant 0 : index
    %64 = vector.load %arg5[%c0_38, %c0_39] : memref<1x60xi32, #tpu.memory_space<vmem>>, vector<1x60xi32>
    %c0_40 = arith.constant 0 : index
    %c0_41 = arith.constant 0 : index
    %65 = vector.load %arg6[%c0_40, %c0_41] : memref<1x12xi32, #tpu.memory_space<vmem>>, vector<1x12xi32>
    %c0_42 = arith.constant 0 : index
    %c0_43 = arith.constant 0 : index
    %66 = vector.load %arg16[%c0_42, %c0_43] : memref<4x32xbf16, #tpu.memory_space<vmem>>, vector<4x32xbf16>
    %67 = arith.truncf %1 : vector<60x4xf32> to vector<60x4xbf16>
    %cst_44 = arith.constant dense<0.000000e+00> : vector<60x32xf32>
    %68 = tpu.matmul %67, %66, %cst_44 {dimension_numbers = #tpu.dot_dimension_numbers<[1], [0], [0], [1], [0, 0, 1, 1], [], []>} : vector<60x4xbf16>, vector<4x32xbf16>, vector<60x32xf32> -> vector<60x32xf32>
    %69 = arith.mulf %68, %61 : vector<60x32xf32>
    %70 = tpu.iota {dimensions = array<i32: 0>} : vector<12x60xi32>
    %71 = vector.broadcast %64 : vector<1x60xi32> to vector<12x60xi32>
    %72 = arith.cmpi eq, %70, %71 : vector<12x60xi32>
    %73 = arith.extui %72 : vector<12x60xi1> to vector<12x60xi32>
    %74 = arith.sitofp %73 : vector<12x60xi32> to vector<12x60xf32>
    %75 = arith.truncf %74 : vector<12x60xf32> to vector<12x60xbf16>
    %76 = arith.truncf %69 : vector<60x32xf32> to vector<60x32xbf16>
    %cst_45 = arith.constant dense<0.000000e+00> : vector<12x32xf32>
    %77 = tpu.matmul %75, %76, %cst_45 {dimension_numbers = #tpu.dot_dimension_numbers<[1], [0], [0], [1], [0, 0, 1, 1], [], []>} : vector<12x60xbf16>, vector<60x32xbf16>, vector<12x32xf32> -> vector<12x32xf32>
    %c0_46 = arith.constant 0 : index
    %c0_47 = arith.constant 0 : index
    %78 = vector.load %arg17[%c0_46, %c0_47] : memref<32x32xbf16, #tpu.memory_space<vmem>>, vector<32x32xbf16>
    %79 = arith.truncf %77 : vector<12x32xf32> to vector<12x32xbf16>
    %cst_48 = arith.constant dense<0.000000e+00> : vector<12x32xf32>
    %80 = tpu.matmul %79, %78, %cst_48 {dimension_numbers = #tpu.dot_dimension_numbers<[1], [0], [0], [1], [0, 0, 1, 1], [], []>} : vector<12x32xbf16>, vector<32x32xbf16>, vector<12x32xf32> -> vector<12x32xf32>
    %c0_49 = arith.constant 0 : index
    %c0_50 = arith.constant 0 : index
    %81 = vector.load %arg18[%c0_49, %c0_50] : memref<1x32xf32, #tpu.memory_space<vmem>>, vector<1x32xf32>
    %82 = vector.broadcast %81 : vector<1x32xf32> to vector<12x32xf32>
    %83 = arith.addf %80, %82 : vector<12x32xf32>
    %84 = arith.negf %83 : vector<12x32xf32>
    %85 = math.exp %84 : vector<12x32xf32>
    %cst_51 = arith.constant 1.000000e+00 : f32
    %86 = vector.broadcast %cst_51 : f32 to vector<12x32xf32>
    %87 = arith.addf %86, %85 : vector<12x32xf32>
    %88 = arith.divf %86, %87 : vector<12x32xf32>
    %89 = arith.mulf %83, %88 : vector<12x32xf32>
    %c0_52 = arith.constant 0 : index
    %c0_53 = arith.constant 0 : index
    %90 = vector.load %arg19[%c0_52, %c0_53] : memref<32x32xbf16, #tpu.memory_space<vmem>>, vector<32x32xbf16>
    %91 = arith.truncf %89 : vector<12x32xf32> to vector<12x32xbf16>
    %cst_54 = arith.constant dense<0.000000e+00> : vector<12x32xf32>
    %92 = tpu.matmul %91, %90, %cst_54 {dimension_numbers = #tpu.dot_dimension_numbers<[1], [0], [0], [1], [0, 0, 1, 1], [], []>} : vector<12x32xbf16>, vector<32x32xbf16>, vector<12x32xf32> -> vector<12x32xf32>
    %c0_55 = arith.constant 0 : index
    %c0_56 = arith.constant 0 : index
    %93 = vector.load %arg20[%c0_55, %c0_56] : memref<1x32xf32, #tpu.memory_space<vmem>>, vector<1x32xf32>
    %94 = vector.broadcast %93 : vector<1x32xf32> to vector<12x32xf32>
    %95 = arith.addf %92, %94 : vector<12x32xf32>
    %96 = arith.negf %95 : vector<12x32xf32>
    %97 = math.exp %96 : vector<12x32xf32>
    %cst_57 = arith.constant 1.000000e+00 : f32
    %98 = vector.broadcast %cst_57 : f32 to vector<12x32xf32>
    %99 = arith.addf %98, %97 : vector<12x32xf32>
    %100 = arith.divf %98, %99 : vector<12x32xf32>
    %101 = arith.mulf %95, %100 : vector<12x32xf32>
    %c0_58 = arith.constant 0 : index
    %c0_59 = arith.constant 0 : index
    %102 = vector.load %arg21[%c0_58, %c0_59] : memref<32x16xbf16, #tpu.memory_space<vmem>>, vector<32x16xbf16>
    %103 = arith.truncf %101 : vector<12x32xf32> to vector<12x32xbf16>
    %cst_60 = arith.constant dense<0.000000e+00> : vector<12x16xf32>
    %104 = tpu.matmul %103, %102, %cst_60 {dimension_numbers = #tpu.dot_dimension_numbers<[1], [0], [0], [1], [0, 0, 1, 1], [], []>} : vector<12x32xbf16>, vector<32x16xbf16>, vector<12x16xf32> -> vector<12x16xf32>
    %105 = tpu.iota {dimensions = array<i32: 0>} : vector<2x12xi32>
    %106 = vector.broadcast %65 : vector<1x12xi32> to vector<2x12xi32>
    %107 = arith.cmpi eq, %105, %106 : vector<2x12xi32>
    %108 = arith.extui %107 : vector<2x12xi1> to vector<2x12xi32>
    %109 = arith.sitofp %108 : vector<2x12xi32> to vector<2x12xf32>
    %110 = arith.truncf %109 : vector<2x12xf32> to vector<2x12xbf16>
    %111 = arith.truncf %104 : vector<12x16xf32> to vector<12x16xbf16>
    %cst_61 = arith.constant dense<0.000000e+00> : vector<2x16xf32>
    %112 = tpu.matmul %110, %111, %cst_61 {dimension_numbers = #tpu.dot_dimension_numbers<[1], [0], [0], [1], [0, 0, 1, 1], [], []>} : vector<2x12xbf16>, vector<12x16xbf16>, vector<2x16xf32> -> vector<2x16xf32>
    %113 = arith.addf %63, %112 : vector<2x16xf32>
    %c0_62 = arith.constant 0 : index
    %c0_63 = arith.constant 0 : index
    %114 = vector.load %arg23[%c0_62, %c0_63] : memref<2x16xf32, #tpu.memory_space<vmem>>, vector<2x16xf32>
    tpu.vector_store %arg23[%c0_62, %c0_63], %113 {strides = array<i32>} : memref<2x16xf32, #tpu.memory_space<vmem>>, vector<2x16xf32>,
    return
  }
}

module attributes {stable_mosaic.version = 11 : i64} {
  func.func @_vae_head_kernel(%arg0: memref<2x16xf32, #tpu.memory_space<vmem>>, %arg1: memref<2x2xf32, #tpu.memory_space<vmem>>, %arg2: memref<16x16xbf16, #tpu.memory_space<vmem>>, %arg3: memref<1x16xf32, #tpu.memory_space<vmem>>, %arg4: memref<16x16xbf16, #tpu.memory_space<vmem>>, %arg5: memref<1x16xf32, #tpu.memory_space<vmem>>, %arg6: memref<16x4xbf16, #tpu.memory_space<vmem>>, %arg7: memref<1x4xf32, #tpu.memory_space<vmem>>, %arg8: memref<2x64xbf16, #tpu.memory_space<vmem>>, %arg9: memref<1x64xf32, #tpu.memory_space<vmem>>, %arg10: memref<64x64xbf16, #tpu.memory_space<vmem>>, %arg11: memref<1x64xf32, #tpu.memory_space<vmem>>, %arg12: memref<64x132xbf16, #tpu.memory_space<vmem>>, %arg13: memref<1x132xf32, #tpu.memory_space<vmem>>, %arg14: memref<2x136xf32, #tpu.memory_space<vmem>>) attributes {dimension_semantics = [], scalar_prefetch = 0 : i64, scratch_operands = 0 : i64, tpu.core_type = #tpu.core_type<tc>} {
    %c0 = arith.constant 0 : index
    %c0_0 = arith.constant 0 : index
    %0 = vector.load %arg0[%c0, %c0_0] : memref<2x16xf32, #tpu.memory_space<vmem>>, vector<2x16xf32>
    %c0_1 = arith.constant 0 : index
    %c0_2 = arith.constant 0 : index
    %1 = vector.load %arg2[%c0_1, %c0_2] : memref<16x16xbf16, #tpu.memory_space<vmem>>, vector<16x16xbf16>
    %2 = arith.truncf %0 : vector<2x16xf32> to vector<2x16xbf16>
    %cst = arith.constant dense<0.000000e+00> : vector<2x16xf32>
    %3 = tpu.matmul %2, %1, %cst {dimension_numbers = #tpu.dot_dimension_numbers<[1], [0], [0], [1], [0, 0, 1, 1], [], []>} : vector<2x16xbf16>, vector<16x16xbf16>, vector<2x16xf32> -> vector<2x16xf32>
    %c0_3 = arith.constant 0 : index
    %c0_4 = arith.constant 0 : index
    %4 = vector.load %arg3[%c0_3, %c0_4] : memref<1x16xf32, #tpu.memory_space<vmem>>, vector<1x16xf32>
    %5 = vector.broadcast %4 : vector<1x16xf32> to vector<2x16xf32>
    %6 = arith.addf %3, %5 : vector<2x16xf32>
    %7 = math.tanh %6 : vector<2x16xf32>
    %c0_5 = arith.constant 0 : index
    %c0_6 = arith.constant 0 : index
    %8 = vector.load %arg4[%c0_5, %c0_6] : memref<16x16xbf16, #tpu.memory_space<vmem>>, vector<16x16xbf16>
    %9 = arith.truncf %7 : vector<2x16xf32> to vector<2x16xbf16>
    %cst_7 = arith.constant dense<0.000000e+00> : vector<2x16xf32>
    %10 = tpu.matmul %9, %8, %cst_7 {dimension_numbers = #tpu.dot_dimension_numbers<[1], [0], [0], [1], [0, 0, 1, 1], [], []>} : vector<2x16xbf16>, vector<16x16xbf16>, vector<2x16xf32> -> vector<2x16xf32>
    %c0_8 = arith.constant 0 : index
    %c0_9 = arith.constant 0 : index
    %11 = vector.load %arg5[%c0_8, %c0_9] : memref<1x16xf32, #tpu.memory_space<vmem>>, vector<1x16xf32>
    %12 = vector.broadcast %11 : vector<1x16xf32> to vector<2x16xf32>
    %13 = arith.addf %10, %12 : vector<2x16xf32>
    %14 = math.tanh %13 : vector<2x16xf32>
    %c0_10 = arith.constant 0 : index
    %c0_11 = arith.constant 0 : index
    %15 = vector.load %arg6[%c0_10, %c0_11] : memref<16x4xbf16, #tpu.memory_space<vmem>>, vector<16x4xbf16>
    %16 = arith.truncf %14 : vector<2x16xf32> to vector<2x16xbf16>
    %cst_12 = arith.constant dense<0.000000e+00> : vector<2x4xf32>
    %17 = tpu.matmul %16, %15, %cst_12 {dimension_numbers = #tpu.dot_dimension_numbers<[1], [0], [0], [1], [0, 0, 1, 1], [], []>} : vector<2x16xbf16>, vector<16x4xbf16>, vector<2x4xf32> -> vector<2x4xf32>
    %c0_13 = arith.constant 0 : index
    %c0_14 = arith.constant 0 : index
    %18 = vector.load %arg7[%c0_13, %c0_14] : memref<1x4xf32, #tpu.memory_space<vmem>>, vector<1x4xf32>
    %19 = vector.broadcast %18 : vector<1x4xf32> to vector<2x4xf32>
    %20 = arith.addf %17, %19 : vector<2x4xf32>
    %21 = vector.extract_strided_slice %20 {offsets = [0, 0], sizes = [2, 2], strides = [1, 1]} : vector<2x4xf32> to vector<2x2xf32>
    %22 = vector.extract_strided_slice %20 {offsets = [0, 2], sizes = [2, 2], strides = [1, 1]} : vector<2x4xf32> to vector<2x2xf32>
    %cst_15 = arith.constant 5.000000e-01 : f32
    %23 = vector.broadcast %cst_15 : f32 to vector<2x2xf32>
    %24 = arith.mulf %23, %22 : vector<2x2xf32>
    %25 = math.exp %24 : vector<2x2xf32>
    %c0_16 = arith.constant 0 : index
    %c0_17 = arith.constant 0 : index
    %26 = vector.load %arg1[%c0_16, %c0_17] : memref<2x2xf32, #tpu.memory_space<vmem>>, vector<2x2xf32>
    %27 = arith.mulf %25, %26 : vector<2x2xf32>
    %28 = arith.addf %21, %27 : vector<2x2xf32>
    %c0_18 = arith.constant 0 : index
    %c0_19 = arith.constant 0 : index
    %29 = vector.load %arg8[%c0_18, %c0_19] : memref<2x64xbf16, #tpu.memory_space<vmem>>, vector<2x64xbf16>
    %30 = arith.truncf %28 : vector<2x2xf32> to vector<2x2xbf16>
    %cst_20 = arith.constant dense<0.000000e+00> : vector<2x64xf32>
    %31 = tpu.matmul %30, %29, %cst_20 {dimension_numbers = #tpu.dot_dimension_numbers<[1], [0], [0], [1], [0, 0, 1, 1], [], []>} : vector<2x2xbf16>, vector<2x64xbf16>, vector<2x64xf32> -> vector<2x64xf32>
    %c0_21 = arith.constant 0 : index
    %c0_22 = arith.constant 0 : index
    %32 = vector.load %arg9[%c0_21, %c0_22] : memref<1x64xf32, #tpu.memory_space<vmem>>, vector<1x64xf32>
    %33 = vector.broadcast %32 : vector<1x64xf32> to vector<2x64xf32>
    %34 = arith.addf %31, %33 : vector<2x64xf32>
    %35 = math.tanh %34 : vector<2x64xf32>
    %c0_23 = arith.constant 0 : index
    %c0_24 = arith.constant 0 : index
    %36 = vector.load %arg10[%c0_23, %c0_24] : memref<64x64xbf16, #tpu.memory_space<vmem>>, vector<64x64xbf16>
    %37 = arith.truncf %35 : vector<2x64xf32> to vector<2x64xbf16>
    %cst_25 = arith.constant dense<0.000000e+00> : vector<2x64xf32>
    %38 = tpu.matmul %37, %36, %cst_25 {dimension_numbers = #tpu.dot_dimension_numbers<[1], [0], [0], [1], [0, 0, 1, 1], [], []>} : vector<2x64xbf16>, vector<64x64xbf16>, vector<2x64xf32> -> vector<2x64xf32>
    %c0_26 = arith.constant 0 : index
    %c0_27 = arith.constant 0 : index
    %39 = vector.load %arg11[%c0_26, %c0_27] : memref<1x64xf32, #tpu.memory_space<vmem>>, vector<1x64xf32>
    %40 = vector.broadcast %39 : vector<1x64xf32> to vector<2x64xf32>
    %41 = arith.addf %38, %40 : vector<2x64xf32>
    %42 = math.tanh %41 : vector<2x64xf32>
    %c0_28 = arith.constant 0 : index
    %c0_29 = arith.constant 0 : index
    %43 = vector.load %arg12[%c0_28, %c0_29] : memref<64x132xbf16, #tpu.memory_space<vmem>>, vector<64x132xbf16>
    %44 = arith.truncf %42 : vector<2x64xf32> to vector<2x64xbf16>
    %cst_30 = arith.constant dense<0.000000e+00> : vector<2x132xf32>
    %45 = tpu.matmul %44, %43, %cst_30 {dimension_numbers = #tpu.dot_dimension_numbers<[1], [0], [0], [1], [0, 0, 1, 1], [], []>} : vector<2x64xbf16>, vector<64x132xbf16>, vector<2x132xf32> -> vector<2x132xf32>
    %c0_31 = arith.constant 0 : index
    %c0_32 = arith.constant 0 : index
    %46 = vector.load %arg13[%c0_31, %c0_32] : memref<1x132xf32, #tpu.memory_space<vmem>>, vector<1x132xf32>
    %47 = vector.broadcast %46 : vector<1x132xf32> to vector<2x132xf32>
    %48 = arith.addf %45, %47 : vector<2x132xf32>
    %49 = tpu.concatenate %20, %48 in 1 : vector<2x4xf32>, vector<2x132xf32> -> vector<2x136xf32>
    %c0_33 = arith.constant 0 : index
    %c0_34 = arith.constant 0 : index
    %50 = vector.load %arg14[%c0_33, %c0_34] : memref<2x136xf32, #tpu.memory_space<vmem>>, vector<2x136xf32>
    tpu.vector_store %arg14[%c0_33, %c0_34], %49 {strides = array<i32>} : memref<2x136xf32, #tpu.memory_space<vmem>>, vector<2x136xf32>,
    return
  }
}

</mosaic_0001>

<llo_original>
// kernel: mul.76
$region0: #{mul.76}
  #allocation0 [shape = 's32[1]{0}', space=sflag, size = 0x4, scoped, tag = 'scoped memory for mul.76']
  %s0 = inlined_call_operand.vmem [shape: f32[240,12], index: 0, kind: input, shape index: {}]
  %s1 = inlined_call_operand.vmem [shape: f32[240,12], index: 1, kind: input, shape index: {}]
  %s2 = inlined_call_operand.vmem [shape: f32[240,12], index: 2, kind: output, shape index: {}]
  %v3 = vld [vmem:[%s0] sm:$0xff]
  %v4 = vld [vmem:[%s1] sm:$0xff]
  %5 = xla_tuple %v3, %v4
  %6 = xla_tuple %5
  %v7 = vmul.f32 %v3, %v4
  %8 = xla_tuple %v7
  %9 = vst [vmem:[%s2] sm:$0xff] %v7
  %s10 = scalar_lea.vmem %s0, 8
  %v11 = vld [vmem:[%s10] sm:$0xff]
  %s12 = scalar_lea.vmem %s1, 8
  %v13 = vld [vmem:[%s12] sm:$0xff]
  %14 = xla_tuple %v11, %v13
  %15 = xla_tuple %14
  %v16 = vmul.f32 %v11, %v13
  %17 = xla_tuple %v16
  %s18 = scalar_lea.vmem %s2, 8
  %19 = vst [vmem:[%s18] sm:$0xff] %v16
  %s20 = scalar_lea.vmem %s0, 16
  %v21 = vld [vmem:[%s20] sm:$0xff]
  %s22 = scalar_lea.vmem %s1, 16
  %v23 = vld [vmem:[%s22] sm:$0xff]
  %24 = xla_tuple %v21, %v23
  %25 = xla_tuple %24
  %v26 = vmul.f32 %v21, %v23
  %27 = xla_tuple %v26
  %s28 = scalar_lea.vmem %s2, 16
  %29 = vst [vmem:[%s28] sm:$0xff] %v26
  %s30 = scalar_lea.vmem %s0, 24
  %v31 = vld [vmem:[%s30] sm:$0xff]
  %s32 = scalar_lea.vmem %s1, 24
  %v33 = vld [vmem:[%s32] sm:$0xff]
  %34 = xla_tuple %v31, %v33
  %35 = xla_tuple %34
  %v36 = vmul.f32 %v31, %v33
  %37 = xla_tuple %v36
  %s38 = scalar_lea.vmem %s2, 24
  %39 = vst [vmem:[%s38] sm:$0xff] %v36
  %s40 = scalar_lea.vmem %s0, 32
  %v41 = vld [vmem:[%s40] sm:$0xff]
  %s42 = scalar_lea.vmem %s1, 32
  %v43 = vld [vmem:[%s42] sm:$0xff]
  %44 = xla_tuple %v41, %v43
  %45 = xla_tuple %44
  %v46 = vmul.f32 %v41, %v43
  %47 = xla_tuple %v46
  %s48 = scalar_lea.vmem %s2, 32
  %49 = vst [vmem:[%s48] sm:$0xff] %v46
  %s50 = scalar_lea.vmem %s0, 40
  %v51 = vld [vmem:[%s50] sm:$0xff]
  %s52 = scalar_lea.vmem %s1, 40
  %v53 = vld [vmem:[%s52] sm:$0xff]
  %54 = xla_tuple %v51, %v53
  %55 = xla_tuple %54
  %v56 = vmul.f32 %v51, %v53
  %57 = xla_tuple %v56
  %s58 = scalar_lea.vmem %s2, 40
  %59 = vst [vmem:[%s58] sm:$0xff] %v56
  %s60 = scalar_lea.vmem %s0, 48
  %v61 = vld [vmem:[%s60] sm:$0xff]
  %s62 = scalar_lea.vmem %s1, 48
  %v63 = vld [vmem:[%s62] sm:$0xff]
  %64 = xla_tuple %v61, %v63
  %65 = xla_tuple %64
  %v66 = vmul.f32 %v61, %v63
  %67 = xla_tuple %v66
  %s68 = scalar_lea.vmem %s2, 48
  %69 = vst [vmem:[%s68] sm:$0xff] %v66
  %s70 = scalar_lea.vmem %s0, 56
  %v71 = vld [vmem:[%s70] sm:$0xff]
  %s72 = scalar_lea.vmem %s1, 56
  %v73 = vld [vmem:[%s72] sm:$0xff]
  %74 = xla_tuple %v71, %v73
  %75 = xla_tuple %74
  %v76 = vmul.f32 %v71, %v73
  %77 = xla_tuple %v76
  %s78 = scalar_lea.vmem %s2, 56
  %79 = vst [vmem:[%s78] sm:$0xff] %v76
  %s80 = scalar_lea.vmem %s0, 64
  %v81 = vld [vmem:[%s80] sm:$0xff]
  %s82 = scalar_lea.vmem %s1, 64
  %v83 = vld [vmem:[%s82] sm:$0xff]
  %84 = xla_tuple %v81, %v83
  %85 = xla_tuple %84
  %v86 = vmul.f32 %v81, %v83
  %87 = xla_tuple %v86
  %s88 = scalar_lea.vmem %s2, 64
  %89 = vst [vmem:[%s88] sm:$0xff] %v86
  %s90 = scalar_lea.vmem %s0, 72
  %v91 = vld [vmem:[%s90] sm:$0xff]
  %s92 = scalar_lea.vmem %s1, 72
  %v93 = vld [vmem:[%s92] sm:$0xff]
  %94 = xla_tuple %v91, %v93
  %95 = xla_tuple %94
  %v96 = vmul.f32 %v91, %v93
  %97 = xla_tuple %v96
  %s98 = scalar_lea.vmem %s2, 72
  %99 = vst [vmem:[%s98] sm:$0xff] %v96
  %s100 = scalar_lea.vmem %s0, 80
  %v101 = vld [vmem:[%s100] sm:$0xff]
  %s102 = scalar_lea.vmem %s1, 80
  %v103 = vld [vmem:[%s102] sm:$0xff]
  %104 = xla_tuple %v101, %v103
  %105 = xla_tuple %104
  %v106 = vmul.f32 %v101, %v103
  %107 = xla_tuple %v106
  %s108 = scalar_lea.vmem %s2, 80
  %109 = vst [vmem:[%s108] sm:$0xff] %v106
  %s110 = scalar_lea.vmem %s0, 88
  %v111 = vld [vmem:[%s110] sm:$0xff]
  %s112 = scalar_lea.vmem %s1, 88
  %v113 = vld [vmem:[%s112] sm:$0xff]
  %114 = xla_tuple %v111, %v113
  %115 = xla_tuple %114
  %v116 = vmul.f32 %v111, %v113
  %117 = xla_tuple %v116
  %s118 = scalar_lea.vmem %s2, 88
  %119 = vst [vmem:[%s118] sm:$0xff] %v116
  %s120 = scalar_lea.vmem %s0, 96
  %v121 = vld [vmem:[%s120] sm:$0xff]
  %s122 = scalar_lea.vmem %s1, 96
  %v123 = vld [vmem:[%s122] sm:$0xff]
  %124 = xla_tuple %v121, %v123
  %125 = xla_tuple %124
  %v126 = vmul.f32 %v121, %v123
  %127 = xla_tuple %v126
  %s128 = scalar_lea.vmem %s2, 96
  %129 = vst [vmem:[%s128] sm:$0xff] %v126
  %s130 = scalar_lea.vmem %s0, 104
  %v131 = vld [vmem:[%s130] sm:$0xff]
  %s132 = scalar_lea.vmem %s1, 104
  %v133 = vld [vmem:[%s132] sm:$0xff]
  %134 = xla_tuple %v131, %v133
  %135 = xla_tuple %134
  %v136 = vmul.f32 %v131, %v133
  %137 = xla_tuple %v136
  %s138 = scalar_lea.vmem %s2, 104
  %139 = vst [vmem:[%s138] sm:$0xff] %v136
  %s140 = scalar_lea.vmem %s0, 112
  %v141 = vld [vmem:[%s140] sm:$0xff]
  %s142 = scalar_lea.vmem %s1, 112
  %v143 = vld [vmem:[%s142] sm:$0xff]
  %144 = xla_tuple %v141, %v143
  %145 = xla_tuple %144
  %v146 = vmul.f32 %v141, %v143
  %147 = xla_tuple %v146
  %s148 = scalar_lea.vmem %s2, 112
  %149 = vst [vmem:[%s148] sm:$0xff] %v146
  %s150 = scalar_lea.vmem %s0, 120
  %v151 = vld [vmem:[%s150] sm:$0xff]
  %s152 = scalar_lea.vmem %s1, 120
  %v153 = vld [vmem:[%s152] sm:$0xff]
  %154 = xla_tuple %v151, %v153
  %155 = xla_tuple %154
  %v156 = vmul.f32 %v151, %v153
  %157 = xla_tuple %v156
  %s158 = scalar_lea.vmem %s2, 120
  %159 = vst [vmem:[%s158] sm:$0xff] %v156
  %s160 = scalar_lea.vmem %s0, 128
  %v161 = vld [vmem:[%s160] sm:$0xff]
  %s162 = scalar_lea.vmem %s1, 128
  %v163 = vld [vmem:[%s162] sm:$0xff]
  %164 = xla_tuple %v161, %v163
  %165 = xla_tuple %164
  %v166 = vmul.f32 %v161, %v163
  %167 = xla_tuple %v166
  %s168 = scalar_lea.vmem %s2, 128
  %169 = vst [vmem:[%s168] sm:$0xff] %v166
  %s170 = scalar_lea.vmem %s0, 136
  %v171 = vld [vmem:[%s170] sm:$0xff]
  %s172 = scalar_lea.vmem %s1, 136
  %v173 = vld [vmem:[%s172] sm:$0xff]
  %174 = xla_tuple %v171, %v173
  %175 = xla_tuple %174
  %v176 = vmul.f32 %v171, %v173
  %177 = xla_tuple %v176
  %s178 = scalar_lea.vmem %s2, 136
  %179 = vst [vmem:[%s178] sm:$0xff] %v176
  %s180 = scalar_lea.vmem %s0, 144
  %v181 = vld [vmem:[%s180] sm:$0xff]
  %s182 = scalar_lea.vmem %s1, 144
  %v183 = vld [vmem:[%s182] sm:$0xff]
  %184 = xla_tuple %v181, %v183
  %185 = xla_tuple %184
  %v186 = vmul.f32 %v181, %v183
  %187 = xla_tuple %v186
  %s188 = scalar_lea.vmem %s2, 144
  %189 = vst [vmem:[%s188] sm:$0xff] %v186
  %s190 = scalar_lea.vmem %s0, 152
  %v191 = vld [vmem:[%s190] sm:$0xff]
  %s192 = scalar_lea.vmem %s1, 152
  %v193 = vld [vmem:[%s192] sm:$0xff]
  %194 = xla_tuple %v191, %v193
  %195 = xla_tuple %194
  %v196 = vmul.f32 %v191, %v193
  %197 = xla_tuple %v196
  %s198 = scalar_lea.vmem %s2, 152
  %199 = vst [vmem:[%s198] sm:$0xff] %v196
  %s200 = scalar_lea.vmem %s0, 160
  %v201 = vld [vmem:[%s200] sm:$0xff]
  %s202 = scalar_lea.vmem %s1, 160
  %v203 = vld [vmem:[%s202] sm:$0xff]
  %204 = xla_tuple %v201, %v203
  %205 = xla_tuple %204
  %v206 = vmul.f32 %v201, %v203
  %207 = xla_tuple %v206
  %s208 = scalar_lea.vmem %s2, 160
  %209 = vst [vmem:[%s208] sm:$0xff] %v206
  %s210 = scalar_lea.vmem %s0, 168
  %v211 = vld [vmem:[%s210] sm:$0xff]
  %s212 = scalar_lea.vmem %s1, 168
  %v213 = vld [vmem:[%s212] sm:$0xff]
  %214 = xla_tuple %v211, %v213
  %215 = xla_tuple %214
  %v216 = vmul.f32 %v211, %v213
  %217 = xla_tuple %v216
  %s218 = scalar_lea.vmem %s2, 168
  %219 = vst [vmem:[%s218] sm:$0xff] %v216
  %s220 = scalar_lea.vmem %s0, 176
  %v221 = vld [vmem:[%s220] sm:$0xff]
  %s222 = scalar_lea.vmem %s1, 176
  %v223 = vld [vmem:[%s222] sm:$0xff]
  %224 = xla_tuple %v221, %v223
  %225 = xla_tuple %224
  %v226 = vmul.f32 %v221, %v223
  %227 = xla_tuple %v226
  %s228 = scalar_lea.vmem %s2, 176
  %229 = vst [vmem:[%s228] sm:$0xff] %v226
  %s230 = scalar_lea.vmem %s0, 184
  %v231 = vld [vmem:[%s230] sm:$0xff]
  %s232 = scalar_lea.vmem %s1, 184
  %v233 = vld [vmem:[%s232] sm:$0xff]
  %234 = xla_tuple %v231, %v233
  %235 = xla_tuple %234
  %v236 = vmul.f32 %v231, %v233
  %237 = xla_tuple %v236
  %s238 = scalar_lea.vmem %s2, 184
  %239 = vst [vmem:[%s238] sm:$0xff] %v236
  %s240 = scalar_lea.vmem %s0, 192
  %v241 = vld [vmem:[%s240] sm:$0xff]
  %s242 = scalar_lea.vmem %s1, 192
  %v243 = vld [vmem:[%s242] sm:$0xff]
  %244 = xla_tuple %v241, %v243
  %245 = xla_tuple %244
  %v246 = vmul.f32 %v241, %v243
  %247 = xla_tuple %v246
  %s248 = scalar_lea.vmem %s2, 192
  %249 = vst [vmem:[%s248] sm:$0xff] %v246
  %s250 = scalar_lea.vmem %s0, 200
  %v251 = vld [vmem:[%s250] sm:$0xff]
  %s252 = scalar_lea.vmem %s1, 200
  %v253 = vld [vmem:[%s252] sm:$0xff]
  %254 = xla_tuple %v251, %v253
  %255 = xla_tuple %254
  %v256 = vmul.f32 %v251, %v253
  %257 = xla_tuple %v256
  %s258 = scalar_lea.vmem %s2, 200
  %259 = vst [vmem:[%s258] sm:$0xff] %v256
  %s260 = scalar_lea.vmem %s0, 208
  %v261 = vld [vmem:[%s260] sm:$0xff]
  %s262 = scalar_lea.vmem %s1, 208
  %v263 = vld [vmem:[%s262] sm:$0xff]
  %264 = xla_tuple %v261, %v263
  %265 = xla_tuple %264
  %v266 = vmul.f32 %v261, %v263
  %267 = xla_tuple %v266
  %s268 = scalar_lea.vmem %s2, 208
  %269 = vst [vmem:[%s268] sm:$0xff] %v266
  %s270 = scalar_lea.vmem %s0, 216
  %v271 = vld [vmem:[%s270] sm:$0xff]
  %s272 = scalar_lea.vmem %s1, 216
  %v273 = vld [vmem:[%s272] sm:$0xff]
  %274 = xla_tuple %v271, %v273
  %275 = xla_tuple %274
  %v276 = vmul.f32 %v271, %v273
  %277 = xla_tuple %v276
  %s278 = scalar_lea.vmem %s2, 216
  %279 = vst [vmem:[%s278] sm:$0xff] %v276
  %s280 = scalar_lea.vmem %s0, 224
  %v281 = vld [vmem:[%s280] sm:$0xff]
  %s282 = scalar_lea.vmem %s1, 224
  %v283 = vld [vmem:[%s282] sm:$0xff]
  %284 = xla_tuple %v281, %v283
  %285 = xla_tuple %284
  %v286 = vmul.f32 %v281, %v283
  %287 = xla_tuple %v286
  %s288 = scalar_lea.vmem %s2, 224
  %289 = vst [vmem:[%s288] sm:$0xff] %v286
  %s290 = scalar_lea.vmem %s0, 232
  %v291 = vld [vmem:[%s290] sm:$0xff]
  %s292 = scalar_lea.vmem %s1, 232
  %v293 = vld [vmem:[%s292] sm:$0xff]
  %294 = xla_tuple %v291, %v293
  %295 = xla_tuple %294
  %v296 = vmul.f32 %v291, %v293
  %297 = xla_tuple %v296
  %s298 = scalar_lea.vmem %s2, 232
  %299 = vst [vmem:[%s298] sm:$0xff] %v296

// kernel: fwd.3
$region0: #{fwd.3}
  #allocation0 [shape = 'u32[]', space=smem, size = 0x4, offset = 0x4, fixed_abs, tag = 'smem constant byte address 0x4 - core index']
  #allocation1 [shape = 'u32[144,128]{1,0:T(1,128)}', space=vmem, size = 0x12000, scoped, tag = 'internal scratch']
  %s0 = inlined_call_operand.vmem [shape: f32[60,32], index: 0, kind: input, shape index: {}]
  %s1 = inlined_call_operand.vmem [shape: f32[60,32], index: 1, kind: input, shape index: {}]
  %s2 = inlined_call_operand.vmem [shape: f32[60,4], index: 2, kind: input, shape index: {}]
  %s3 = inlined_call_operand.vmem [shape: s32[1,60], index: 3, kind: input, shape index: {}]
  %s4 = inlined_call_operand.vmem [shape: s32[1,12], index: 4, kind: input, shape index: {}]
  %s5 = inlined_call_operand.vmem [shape: bf16[4,32], index: 5, kind: input, shape index: {}]
  %s6 = inlined_call_operand.vmem [shape: f32[1,32], index: 6, kind: input, shape index: {}]
  %s7 = inlined_call_operand.vmem [shape: bf16[96,32], index: 7, kind: input, shape index: {}]
  %s8 = inlined_call_operand.vmem [shape: f32[1,32], index: 8, kind: input, shape index: {}]
  %s9 = inlined_call_operand.vmem [shape: bf16[4,32], index: 9, kind: input, shape index: {}]
  %s10 = inlined_call_operand.vmem [shape: bf16[32,32], index: 10, kind: input, shape index: {}]
  %s11 = inlined_call_operand.vmem [shape: f32[1,32], index: 11, kind: input, shape index: {}]
  %s12 = inlined_call_operand.vmem [shape: bf16[32,32], index: 12, kind: input, shape index: {}]
  %s13 = inlined_call_operand.vmem [shape: f32[1,32], index: 13, kind: input, shape index: {}]
  %s14 = inlined_call_operand.vmem [shape: bf16[32,16], index: 14, kind: input, shape index: {}]
  %s15 = inlined_call_operand.vmem [shape: f32[60,32], index: 15, kind: output, shape index: {0}]
  %s16 = inlined_call_operand.vmem [shape: f32[2,16], index: 16, kind: output, shape index: {1}]
  %17 = xla_tuple %s15, %s16
  %s18 = sld [smem:[#allocation0]]
  $region78: #{fwd.3} parent=0
    _
  %s20 = ssub.s32 1, %s18
  %s21 = scalar_select 0, %s20, %s18
  // Predicated region
  $region2: #{fwd.3} parent=0 // pred_check
    _
  $region3: #{fwd.3} parent=0 // pred_check_branch
    %23 = sbr.rel (0) target = $region5
  $region4: #{fwd.3} parent=0 // pred_region
    _
  $region5: #{fwd.3} parent=0 // pred_fallthru
    _
  // Predicated region
  $region6: #{fwd.3} parent=0 // pred_check
    _
  $region7: #{fwd.3} parent=0 // pred_check_branch
    %25 = sbr.rel (0) target = $region9
  $region8: #{fwd.3} parent=0 // pred_region
    _
  $region9: #{fwd.3} parent=0 // pred_fallthru
    _
  // Predicated region
  $region10: #{fwd.3} parent=0 // pred_check
    _
  $region11: #{fwd.3} parent=0 // pred_check_branch
    %27 = sbr.rel (0) target = $region13
  $region12: #{fwd.3} parent=0 // pred_region
    _
  $region13: #{fwd.3} parent=0 // pred_fallthru
    _
  // Predicated region
  $region14: #{fwd.3} parent=0 // pred_check
    _
  $region15: #{fwd.3} parent=0 // pred_check_branch
    %29 = sbr.rel (0) target = $region17
  $region16: #{fwd.3} parent=0 // pred_region
    _
  $region17: #{fwd.3} parent=0 // pred_fallthru
    _
  // Predicated region
  $region18: #{fwd.3} parent=0 // pred_check
    _
  $region19: #{fwd.3} parent=0 // pred_check_branch
    %31 = sbr.rel (0) target = $region21
  $region20: #{fwd.3} parent=0 // pred_region
    _
  $region21: #{fwd.3} parent=0 // pred_fallthru
    _
  // Predicated region
  $region22: #{fwd.3} parent=0 // pred_check
    _
  $region23: #{fwd.3} parent=0 // pred_check_branch
    %33 = sbr.rel (0) target = $region25
  $region24: #{fwd.3} parent=0 // pred_region
    _
  $region25: #{fwd.3} parent=0 // pred_fallthru
    _
  // Predicated region
  $region26: #{fwd.3} parent=0 // pred_check
    _
  $region27: #{fwd.3} parent=0 // pred_check_branch
    %35 = sbr.rel (0) target = $region29
  $region28: #{fwd.3} parent=0 // pred_region
    _
  $region29: #{fwd.3} parent=0 // pred_fallthru
    _
  // Predicated region
  $region30: #{fwd.3} parent=0 // pred_check
    _
  $region31: #{fwd.3} parent=0 // pred_check_branch
    %37 = sbr.rel (0) target = $region33
  $region32: #{fwd.3} parent=0 // pred_region
    _
  $region33: #{fwd.3} parent=0 // pred_fallthru
    _
  // Predicated region
  $region34: #{fwd.3} parent=0 // pred_check
    _
  $region35: #{fwd.3} parent=0 // pred_check_branch
    %39 = sbr.rel (0) target = $region37
  $region36: #{fwd.3} parent=0 // pred_region
    _
  $region37: #{fwd.3} parent=0 // pred_fallthru
    _
  // Predicated region
  $region38: #{fwd.3} parent=0 // pred_check
    _
  $region39: #{fwd.3} parent=0 // pred_check_branch
    %41 = sbr.rel (0) target = $region41
  $region40: #{fwd.3} parent=0 // pred_region
    _
  $region41: #{fwd.3} parent=0 // pred_fallthru
    _
  // Predicated region
  $region42: #{fwd.3} parent=0 // pred_check
    _
  $region43: #{fwd.3} parent=0 // pred_check_branch
    %43 = sbr.rel (0) target = $region45
  $region44: #{fwd.3} parent=0 // pred_region
    _
  $region45: #{fwd.3} parent=0 // pred_fallthru
    _
  // Predicated region
  $region46: #{fwd.3} parent=0 // pred_check
    _
  $region47: #{fwd.3} parent=0 // pred_check_branch
    %45 = sbr.rel (0) target = $region49
  $region48: #{fwd.3} parent=0 // pred_region
    _
  $region49: #{fwd.3} parent=0 // pred_fallthru
    _
  // Predicated region
  $region50: #{fwd.3} parent=0 // pred_check
    _
  $region51: #{fwd.3} parent=0 // pred_check_branch
    %47 = sbr.rel (0) target = $region53
  $region52: #{fwd.3} parent=0 // pred_region
    _
  $region53: #{fwd.3} parent=0 // pred_fallthru
    _
  // Predicated region
  $region54: #{fwd.3} parent=0 // pred_check
    _
  $region55: #{fwd.3} parent=0 // pred_check_branch
    %49 = sbr.rel (0) target = $region57
  $region56: #{fwd.3} parent=0 // pred_region
    _
  $region57: #{fwd.3} parent=0 // pred_fallthru
    _
  // Predicated region
  $region58: #{fwd.3} parent=0 // pred_check
    _
  $region59: #{fwd.3} parent=0 // pred_check_branch
    %51 = sbr.rel (0) target = $region61
  $region60: #{fwd.3} parent=0 // pred_region
    _
  $region61: #{fwd.3} parent=0 // pred_fallthru
    _
  %v53 = vld [vmem:[%s2] sm:$0xff]
  %v54 = vld [vmem:[%s2 + $0x8] sm:$0xff]
  %v55 = vld [vmem:[%s2 + $0x10] sm:$0xff]
  %v56 = vld [vmem:[%s2 + $0x18] sm:$0xff]
  %v57 = vld [vmem:[%s2 + $0x20] sm:$0xff]
  %v58 = vld [vmem:[%s2 + $0x28] sm:$0xff]
  %v59 = vld [vmem:[%s2 + $0x30] sm:$0xff]
  %v60 = vld [vmem:[%s2 + $0x38] sm:$0xf]
  %v61 = vld [vmem:[%s5] sm:$0x3]
  %v62 = vpack.c.bf16 %v54, %v53
  %v63 = vpack.c.bf16 %v56, %v55
  %v64 = vpack.c.bf16 %v58, %v57
  %v65 = vpack.c.bf16 %v60, %v59
  %v66 = vld [vmem:[%s6] sm:$0x1]
  %v68 = vlaneseq
  %v69 = vshrl.u32 %v68, 7
  %v70 = vsub.s32 0, %v69
  %v71 = vrot.slane %v66, %v70
  %vm73 = vcmask 31744
  %v75 = vsel %vm73, %v62, 0
  %v78 = vsel %vm73, %v63, 0
  %v81 = vsel %vm73, %v64, 0
  %v84 = vsel %vm73, %v65, 0
  %vm86 = vcmask 1041408
  %v88 = vsel %vm86, %v61, 0
  %90 = vmatprep.subr.bf16.mxu0 0
  %91 = vmatpush1.bf16.msra.mxu0 %v88
  %92 = vmatprep.subr.bf16.mxu0 0
  %93 = vmatpush1.bf16.msra.mxu0 0
  %94 = vmatprep.subr.bf16.mxu0 0
  %95 = vmatpush1.bf16.msra.mxu0 0
  %96 = vmatprep.subr.bf16.mxu0 0
  %97 = vmatpush1.bf16.msra.mxu0 0
  %98 = vmatprep.subr.bf16.mxu0 0
  %99 = vmatpush1.bf16.msra.mxu0 0
  %100 = vmatprep.subr.bf16.mxu0 0
  %101 = vmatpush1.bf16.msra.mxu0 0
  %102 = vmatprep.subr.bf16.mxu0 0
  %103 = vmatpush1.bf16.msra.mxu0 0
  %104 = vmatprep.subr.bf16.mxu0 0
  %105 = vmatpush1.bf16.msra.mxu0 0
  %106 = vmatprep.subr.bf16.mxu0 0
  %107 = vmatpush1.bf16.msra.mxu0 0
  %108 = vmatprep.subr.bf16.mxu0 0
  %109 = vmatpush1.bf16.msra.mxu0 0
  %110 = vmatprep.subr.bf16.mxu0 0
  %111 = vmatpush1.bf16.msra.mxu0 0
  %112 = vmatprep.subr.bf16.mxu0 0
  %113 = vmatpush1.bf16.msra.mxu0 0
  %114 = vmatprep.subr.bf16.mxu0 0
  %115 = vmatpush1.bf16.msra.mxu0 0
  %116 = vmatprep.subr.bf16.mxu0 0
  %117 = vmatpush1.bf16.msra.mxu0 0
  %118 = vmatprep.subr.bf16.mxu0 0
  %119 = vmatpush1.bf16.msra.mxu0 0
  %120 = vmatprep.subr.bf16.mxu0 0
  %121 = vmatpush1.bf16.msra.mxu0 0
  %122 = vmatprep.mubr.bf16.mxu0 0
  %123 = vmatmul.mubr.bf16.gmra.mrb[0].mxu0 %v75
  %v124 = vpop.f32.mrb[0].mxu0
  %v125 = vadd.f32 %v71, %v124
  %v126 = vpop.f32.mrb[0].mxu0
  %v127 = vpop.f32.mrb[0].mxu0
  %v128 = vadd.f32 %v71, %v127
  %v129 = vpop.f32.mrb[0].mxu0
  %130 = vmatprep.mubr.bf16.mxu0 0
  %131 = vmatmul.mubr.bf16.gmra.mrb[0].mxu0 %v78
  %v132 = vpop.f32.mrb[0].mxu0
  %v133 = vadd.f32 %v71, %v132
  %v134 = vpop.f32.mrb[0].mxu0
  %v135 = vpop.f32.mrb[0].mxu0
  %v136 = vadd.f32 %v71, %v135
  %v137 = vpop.f32.mrb[0].mxu0
  %138 = vmatprep.mubr.bf16.mxu0 0
  %139 = vmatmul.mubr.bf16.gmra.mrb[0].mxu0 %v81
  %v140 = vpop.f32.mrb[0].mxu0
  %v141 = vadd.f32 %v71, %v140
  %v142 = vpop.f32.mrb[0].mxu0
  %v143 = vpop.f32.mrb[0].mxu0
  %v144 = vadd.f32 %v71, %v143
  %v145 = vpop.f32.mrb[0].mxu0
  %146 = vmatprep.mubr.bf16.mxu0 0
  %147 = vmatmul.mubr.bf16.gmra.mrb[0].mxu0 %v84
  %v148 = vpop.f32.mrb[0].mxu0
  %v149 = vadd.f32 %v71, %v148
  %v150 = vpop.f32.mrb[0].mxu0
  %v151 = vpop.f32.mrb[0].mxu0
  %v152 = vadd.f32 %v71, %v151
  %v153 = vpop.f32.mrb[0].mxu0
  %154 = vdwg.mxu0
  %v155 = vxor.u32 %v125, 2147483648
  %v156 = vxor.u32 %v128, 2147483648
  %v157 = vxor.u32 %v133, 2147483648
  %v158 = vxor.u32 %v136, 2147483648
  %v159 = vxor.u32 %v141, 2147483648
  %v160 = vxor.u32 %v144, 2147483648
  %v161 = vxor.u32 %v149, 2147483648
  %v162 = vxor.u32 %v152, 2147483648
  %v163 = vmul.f32 %v155, 1.442695
  %v164 = vpow.pop %v163
  %v165 = vmul.f32 %v156, 1.442695
  %v166 = vpow.pop %v165
  %v167 = vmul.f32 %v157, 1.442695
  %v168 = vpow.pop %v167
  %v169 = vmul.f32 %v158, 1.442695
  %v170 = vpow.pop %v169
  %v171 = vmul.f32 %v159, 1.442695
  %v172 = vpow.pop %v171
  %v173 = vmul.f32 %v160, 1.442695
  %v174 = vpow.pop %v173
  %v175 = vmul.f32 %v161, 1.442695
  %v176 = vpow.pop %v175
  %v177 = vmul.f32 %v162, 1.442695
  %v178 = vpow.pop %v177
  %v179 = vadd.f32 %v164, 1.0
  %v180 = vadd.f32 %v166, 1.0
  %v181 = vadd.f32 %v168, 1.0
  %v182 = vadd.f32 %v170, 1.0
  %v183 = vadd.f32 %v172, 1.0
  %v184 = vadd.f32 %v174, 1.0
  %v185 = vadd.f32 %v176, 1.0
  %v186 = vadd.f32 %v178, 1.0
  %v187 = vrcp.pop %v179
  %v188 = vmul.f32 1.0, %v187
  %v189 = vrcp.pop %v180
  %v190 = vmul.f32 1.0, %v189
  %v191 = vrcp.pop %v181
  %v192 = vmul.f32 1.0, %v191
  %v193 = vrcp.pop %v182
  %v194 = vmul.f32 1.0, %v193
  %v195 = vrcp.pop %v183
  %v196 = vmul.f32 1.0, %v195
  %v197 = vrcp.pop %v184
  %v198 = vmul.f32 1.0, %v197
  %v199 = vrcp.pop %v185
  %v200 = vmul.f32 1.0, %v199
  %v201 = vrcp.pop %v186
  %v202 = vmul.f32 1.0, %v201
  %v203 = vmul.f32 %v125, %v188
  %v204 = vmul.f32 %v128, %v190
  %v205 = vmul.f32 %v133, %v192
  %v206 = vmul.f32 %v136, %v194
  %v207 = vmul.f32 %v141, %v196
  %v208 = vmul.f32 %v144, %v198
  %v209 = vmul.f32 %v149, %v200
  %v210 = vmul.f32 %v152, %v202
  %v211 = vld [vmem:[%s0] sm:$0xff]
  %v212 = vld [vmem:[%s0 + $0x8] sm:$0xff]
  %v213 = vld [vmem:[%s0 + $0x10] sm:$0xff]
  %v214 = vld [vmem:[%s0 + $0x18] sm:$0xff]
  %v215 = vld [vmem:[%s0 + $0x20] sm:$0xff]
  %v216 = vld [vmem:[%s0 + $0x28] sm:$0xff]
  %v217 = vld [vmem:[%s0 + $0x30] sm:$0xff]
  %v218 = vld [vmem:[%s0 + $0x38] sm:$0xf]
  %v219 = vld [vmem:[%s1] sm:$0xff]
  %v220 = vld [vmem:[%s1 + $0x8] sm:$0xff]
  %v221 = vld [vmem:[%s1 + $0x10] sm:$0xff]
  %v222 = vld [vmem:[%s1 + $0x18] sm:$0xff]
  %v223 = vld [vmem:[%s1 + $0x20] sm:$0xff]
  %v224 = vld [vmem:[%s1 + $0x28] sm:$0xff]
  %v225 = vld [vmem:[%s1 + $0x30] sm:$0xff]
  %v226 = vld [vmem:[%s1 + $0x38] sm:$0xf]
  %235 = vrot.lane.b32.xlu0 %v219, 32
  %v236 = vpop.permute.xlu0 %235
  %237 = vrot.lane.b32.xlu0 %v220, 32
  %v238 = vpop.permute.xlu0 %237
  %239 = vrot.lane.b32.xlu0 %v221, 32
  %v240 = vpop.permute.xlu0 %239
  %241 = vrot.lane.b32.xlu0 %v222, 32
  %v242 = vpop.permute.xlu0 %241
  %243 = vrot.lane.b32.xlu0 %v223, 32
  %v244 = vpop.permute.xlu0 %243
  %245 = vrot.lane.b32.xlu0 %v224, 32
  %v246 = vpop.permute.xlu0 %245
  %247 = vrot.lane.b32.xlu0 %v225, 32
  %v248 = vpop.permute.xlu0 %247
  %249 = vrot.lane.b32.xlu0 %v226, 32
  %v250 = vpop.permute.xlu0 %249
  %267 = vrot.lane.b32.xlu0 %v203, 64
  %v268 = vpop.permute.xlu0 %267
  %269 = vrot.lane.b32.xlu0 %v204, 64
  %v270 = vpop.permute.xlu0 %269
  %271 = vrot.lane.b32.xlu0 %v205, 64
  %v272 = vpop.permute.xlu0 %271
  %273 = vrot.lane.b32.xlu0 %v206, 64
  %v274 = vpop.permute.xlu0 %273
  %275 = vrot.lane.b32.xlu0 %v207, 64
  %v276 = vpop.permute.xlu0 %275
  %277 = vrot.lane.b32.xlu0 %v208, 64
  %v278 = vpop.permute.xlu0 %277
  %279 = vrot.lane.b32.xlu0 %v209, 64
  %v280 = vpop.permute.xlu0 %279
  %281 = vrot.lane.b32.xlu0 %v210, 64
  %v282 = vpop.permute.xlu0 %281
  %vm291 = vcmask 261120
  %v292 = vsel %vm291, %v211, %v236
  %v293 = vsel %vm291, %v212, %v238
  %v294 = vsel %vm291, %v213, %v240
  %v295 = vsel %vm291, %v214, %v242
  %v296 = vsel %vm291, %v215, %v244
  %v297 = vsel %vm291, %v216, %v246
  %v298 = vsel %vm291, %v217, %v248
  %v299 = vsel %vm291, %v218, %v250
  %vm300 = vcmask 523264
  %v301 = vsel %vm300, %v292, %v268
  %v302 = vsel %vm300, %v293, %v270
  %v303 = vsel %vm300, %v294, %v272
  %v304 = vsel %vm300, %v295, %v274
  %v305 = vsel %vm300, %v296, %v276
  %v306 = vsel %vm300, %v297, %v278
  %v307 = vsel %vm300, %v298, %v280
  %v308 = vsel %vm300, %v299, %v282
  %v309 = vld [vmem:[%s7] sm:$0xf]
  %v310 = vld [vmem:[%s7 + $0x4] sm:$0xf]
  %v311 = vld [vmem:[%s7 + $0x8] sm:$0xf]
  %v312 = vld [vmem:[%s7 + $0xc] sm:$0xf]
  %v313 = vld [vmem:[%s7 + $0x10] sm:$0xf]
  %v314 = vld [vmem:[%s7 + $0x14] sm:$0xf]
  %v315 = vld [vmem:[%s7 + $0x18] sm:$0xf]
  %v316 = vld [vmem:[%s7 + $0x1c] sm:$0xf]
  %v317 = vld [vmem:[%s7 + $0x20] sm:$0xf]
  %v318 = vld [vmem:[%s7 + $0x24] sm:$0xf]
  %v319 = vld [vmem:[%s7 + $0x28] sm:$0xf]
  %v320 = vld [vmem:[%s7 + $0x2c] sm:$0xf]
  %v321 = vpack.c.bf16 %v302, %v301
  %v322 = vpack.c.bf16 %v304, %v303
  %v323 = vpack.c.bf16 %v306, %v305
  %v324 = vpack.c.bf16 %v308, %v307
  %v325 = vld [vmem:[%s8] sm:$0x1]
  %v327 = vlaneseq
  %v328 = vshrl.u32 %v327, 7
  %v329 = vsub.s32 0, %v328
  %v330 = vrot.slane %v325, %v329
  %v344 = vunpack.c.l.b16 %v309
  %v345 = vunpack.c.l.b16 %v310
  %v346 = vunpack.c.l.b16 %v311
  %v347 = vunpack.c.l.b16 %v312
  %v348 = vunpack.c.l.b16 %v313
  %v349 = vunpack.c.l.b16 %v314
  %v350 = vunpack.c.l.b16 %v315
  %v351 = vunpack.c.l.b16 %v316
  %v352 = vunpack.c.l.b16 %v317
  %v353 = vunpack.c.l.b16 %v318
  %v354 = vunpack.c.l.b16 %v319
  %v355 = vunpack.c.l.b16 %v320
  %v356 = vpack.c.b16 %v345, %v344
  %v357 = vpack.c.b16 %v347, %v346
  %v358 = vpack.c.b16 %v349, %v348
  %v359 = vpack.c.b16 %v351, %v350
  %v360 = vpack.c.b16 %v353, %v352
  %v361 = vpack.c.b16 %v355, %v354
  %vm368 = vcmask 785408
  %v370 = vsel %vm368, %v321, 0
  %v373 = vsel %vm368, %v322, 0
  %v376 = vsel %vm368, %v323, 0
  %v379 = vsel %vm368, %v324, 0
  %381 = vmatprep.subr.bf16.mxu0 0
  %382 = vmatpush1.bf16.msra.mxu0 %v356
  %383 = vmatprep.subr.bf16.mxu0 0
  %384 = vmatpush1.bf16.msra.mxu0 %v357
  %385 = vmatprep.subr.bf16.mxu0 0
  %386 = vmatpush1.bf16.msra.mxu0 %v358
  %387 = vmatprep.subr.bf16.mxu0 0
  %388 = vmatpush1.bf16.msra.mxu0 %v359
  %389 = vmatprep.subr.bf16.mxu0 0
  %390 = vmatpush1.bf16.msra.mxu0 %v360
  %391 = vmatprep.subr.bf16.mxu0 0
  %392 = vmatpush1.bf16.msra.mxu0 %v361
  %393 = vmatprep.subr.bf16.mxu0 0
  %394 = vmatpush1.bf16.msra.mxu0 0
  %395 = vmatprep.subr.bf16.mxu0 0
  %396 = vmatpush1.bf16.msra.mxu0 0
  %397 = vmatprep.subr.bf16.mxu0 0
  %398 = vmatpush1.bf16.msra.mxu0 0
  %399 = vmatprep.subr.bf16.mxu0 0
  %400 = vmatpush1.bf16.msra.mxu0 0
  %401 = vmatprep.subr.bf16.mxu0 0
  %402 = vmatpush1.bf16.msra.mxu0 0
  %403 = vmatprep.subr.bf16.mxu0 0
  %404 = vmatpush1.bf16.msra.mxu0 0
  %405 = vmatprep.subr.bf16.mxu0 0
  %406 = vmatpush1.bf16.msra.mxu0 0
  %407 = vmatprep.subr.bf16.mxu0 0
  %408 = vmatpush1.bf16.msra.mxu0 0
  %409 = vmatprep.subr.bf16.mxu0 0
  %410 = vmatpush1.bf16.msra.mxu0 0
  %411 = vmatprep.subr.bf16.mxu0 0
  %412 = vmatpush1.bf16.msra.mxu0 0
  %413 = vmatprep.mubr.bf16.mxu0 0
  %414 = vmatmul.mubr.bf16.gmra.mrb[0].mxu0 %v370
  %v415 = vpop.f32.mrb[0].mxu0
  %v416 = vadd.f32 %v330, %v415
  %v417 = vpop.f32.mrb[0].mxu0
  %v418 = vpop.f32.mrb[0].mxu0
  %v419 = vadd.f32 %v330, %v418
  %v420 = vpop.f32.mrb[0].mxu0
  %421 = vmatprep.mubr.bf16.mxu0 0
  %422 = vmatmul.mubr.bf16.gmra.mrb[0].mxu0 %v373
  %v423 = vpop.f32.mrb[0].mxu0
  %v424 = vadd.f32 %v330, %v423
  %v425 = vpop.f32.mrb[0].mxu0
  %v426 = vpop.f32.mrb[0].mxu0
  %v427 = vadd.f32 %v330, %v426
  %v428 = vpop.f32.mrb[0].mxu0
  %429 = vmatprep.mubr.bf16.mxu0 0
  %430 = vmatmul.mubr.bf16.gmra.mrb[0].mxu0 %v376
  %v431 = vpop.f32.mrb[0].mxu0
  %v432 = vadd.f32 %v330, %v431
  %v433 = vpop.f32.mrb[0].mxu0
  %v434 = vpop.f32.mrb[0].mxu0
  %v435 = vadd.f32 %v330, %v434
  %v436 = vpop.f32.mrb[0].mxu0
  %437 = vmatprep.mubr.bf16.mxu0 0
  %438 = vmatmul.mubr.bf16.gmra.mrb[0].mxu0 %v379
  %v439 = vpop.f32.mrb[0].mxu0
  %v440 = vadd.f32 %v330, %v439
  %v441 = vpop.f32.mrb[0].mxu0
  %v442 = vpop.f32.mrb[0].mxu0
  %v443 = vadd.f32 %v330, %v442
  %v444 = vpop.f32.mrb[0].mxu0
  %445 = vdwg.mxu0
  %v446 = vxor.u32 %v416, 2147483648
  %v447 = vxor.u32 %v419, 2147483648
  %v448 = vxor.u32 %v424, 2147483648
  %v449 = vxor.u32 %v427, 2147483648
  %v450 = vxor.u32 %v432, 2147483648
  %v451 = vxor.u32 %v435, 2147483648
  %v452 = vxor.u32 %v440, 2147483648
  %v453 = vxor.u32 %v443, 2147483648
  %v454 = vmul.f32 %v446, 1.442695
  %v455 = vpow.pop %v454
  %v456 = vmul.f32 %v447, 1.442695
  %v457 = vpow.pop %v456
  %v458 = vmul.f32 %v448, 1.442695
  %v459 = vpow.pop %v458
  %v460 = vmul.f32 %v449, 1.442695
  %v461 = vpow.pop %v460
  %v462 = vmul.f32 %v450, 1.442695
  %v463 = vpow.pop %v462
  %v464 = vmul.f32 %v451, 1.442695
  %v465 = vpow.pop %v464
  %v466 = vmul.f32 %v452, 1.442695
  %v467 = vpow.pop %v466
  %v468 = vmul.f32 %v453, 1.442695
  %v469 = vpow.pop %v468
  %v470 = vadd.f32 %v455, 1.0
  %v471 = vadd.f32 %v457, 1.0
  %v472 = vadd.f32 %v459, 1.0
  %v473 = vadd.f32 %v461, 1.0
  %v474 = vadd.f32 %v463, 1.0
  %v475 = vadd.f32 %v465, 1.0
  %v476 = vadd.f32 %v467, 1.0
  %v477 = vadd.f32 %v469, 1.0
  %v478 = vrcp.pop %v470
  %v479 = vmul.f32 1.0, %v478
  %v480 = vrcp.pop %v471
  %v481 = vmul.f32 1.0, %v480
  %v482 = vrcp.pop %v472
  %v483 = vmul.f32 1.0, %v482
  %v484 = vrcp.pop %v473
  %v485 = vmul.f32 1.0, %v484
  %v486 = vrcp.pop %v474
  %v487 = vmul.f32 1.0, %v486
  %v488 = vrcp.pop %v475
  %v489 = vmul.f32 1.0, %v488
  %v490 = vrcp.pop %v476
  %v491 = vmul.f32 1.0, %v490
  %v492 = vrcp.pop %v477
  %v493 = vmul.f32 1.0, %v492
  %v494 = vmul.f32 %v416, %v479
  %v495 = vmul.f32 %v419, %v481
  %v496 = vmul.f32 %v424, %v483
  %v497 = vmul.f32 %v427, %v485
  %v498 = vmul.f32 %v432, %v487
  %v499 = vmul.f32 %v435, %v489
  %v500 = vmul.f32 %v440, %v491
  %v501 = vmul.f32 %v443, %v493
  %502 = vst.msk [vmem:[%s15] sm:$0xff] %vm291, %v494
  %503 = vst.msk [vmem:[%s15 + $0x8] sm:$0xff] %vm291, %v495
  %504 = vst.msk [vmem:[%s15 + $0x10] sm:$0xff] %vm291, %v496
  %505 = vst.msk [vmem:[%s15 + $0x18] sm:$0xff] %vm291, %v497
  %506 = vst.msk [vmem:[%s15 + $0x20] sm:$0xff] %vm291, %v498
  %507 = vst.msk [vmem:[%s15 + $0x28] sm:$0xff] %vm291, %v499
  %508 = vst.msk [vmem:[%s15 + $0x30] sm:$0xff] %vm291, %v500
  %vm509 = vcmask 257024
  %510 = vst.msk [vmem:[%s15 + $0x38] sm:$0xf] %vm509, %v501
  %v511 = vld [vmem:[%s3] sm:$0x1]
  %v512 = vld [vmem:[%s4] sm:$0x1]
  %v513 = vld [vmem:[%s9] sm:$0x3]
  %v515 = vsel %vm86, %v513, 0
  %517 = vmatprep.subr.bf16.mxu0 0
  %518 = vmatpush1.bf16.msra.mxu0 %v515
  %519 = vmatprep.subr.bf16.mxu0 0
  %520 = vmatpush1.bf16.msra.mxu0 0
  %521 = vmatprep.subr.bf16.mxu0 0
  %522 = vmatpush1.bf16.msra.mxu0 0
  %523 = vmatprep.subr.bf16.mxu0 0
  %524 = vmatpush1.bf16.msra.mxu0 0
  %525 = vmatprep.subr.bf16.mxu0 0
  %526 = vmatpush1.bf16.msra.mxu0 0
  %527 = vmatprep.subr.bf16.mxu0 0
  %528 = vmatpush1.bf16.msra.mxu0 0
  %529 = vmatprep.subr.bf16.mxu0 0
  %530 = vmatpush1.bf16.msra.mxu0 0
  %531 = vmatprep.subr.bf16.mxu0 0
  %532 = vmatpush1.bf16.msra.mxu0 0
  %533 = vmatprep.subr.bf16.mxu0 0
  %534 = vmatpush1.bf16.msra.mxu0 0
  %535 = vmatprep.subr.bf16.mxu0 0
  %536 = vmatpush1.bf16.msra.mxu0 0
  %537 = vmatprep.subr.bf16.mxu0 0
  %538 = vmatpush1.bf16.msra.mxu0 0
  %539 = vmatprep.subr.bf16.mxu0 0
  %540 = vmatpush1.bf16.msra.mxu0 0
  %541 = vmatprep.subr.bf16.mxu0 0
  %542 = vmatpush1.bf16.msra.mxu0 0
  %543 = vmatprep.subr.bf16.mxu0 0
  %544 = vmatpush1.bf16.msra.mxu0 0
  %545 = vmatprep.subr.bf16.mxu0 0
  %546 = vmatpush1.bf16.msra.mxu0 0
  %547 = vmatprep.subr.bf16.mxu0 0
  %548 = vmatpush1.bf16.msra.mxu0 0
  %549 = vmatprep.mubr.bf16.mxu0 0
  %550 = vmatmul.mubr.bf16.gmra.mrb[0].mxu0 %v75
  %v551 = vpop.f32.mrb[0].mxu0
  %v552 = vadd.f32 0.0, %v551
  %v553 = vpop.f32.mrb[0].mxu0
  %v554 = vpop.f32.mrb[0].mxu0
  %v555 = vadd.f32 0.0, %v554
  %v556 = vpop.f32.mrb[0].mxu0
  %557 = vmatprep.mubr.bf16.mxu0 0
  %558 = vmatmul.mubr.bf16.gmra.mrb[0].mxu0 %v78
  %v559 = vpop.f32.mrb[0].mxu0
  %v560 = vadd.f32 0.0, %v559
  %v561 = vpop.f32.mrb[0].mxu0
  %v562 = vpop.f32.mrb[0].mxu0
  %v563 = vadd.f32 0.0, %v562
  %v564 = vpop.f32.mrb[0].mxu0
  %565 = vmatprep.mubr.bf16.mxu0 0
  %566 = vmatmul.mubr.bf16.gmra.mrb[0].mxu0 %v81
  %v567 = vpop.f32.mrb[0].mxu0
  %v568 = vadd.f32 0.0, %v567
  %v569 = vpop.f32.mrb[0].mxu0
  %v570 = vpop.f32.mrb[0].mxu0
  %v571 = vadd.f32 0.0, %v570
  %v572 = vpop.f32.mrb[0].mxu0
  %573 = vmatprep.mubr.bf16.mxu0 0
  %574 = vmatmul.mubr.bf16.gmra.mrb[0].mxu0 %v84
  %v575 = vpop.f32.mrb[0].mxu0
  %v576 = vadd.f32 0.0, %v575
  %v577 = vpop.f32.mrb[0].mxu0
  %v578 = vpop.f32.mrb[0].mxu0
  %v579 = vadd.f32 0.0, %v578
  %v580 = vpop.f32.mrb[0].mxu0
  %581 = vdwg.mxu0
  %v582 = vmul.f32 %v552, %v494
  %v583 = vmul.f32 %v555, %v495
  %v584 = vmul.f32 %v560, %v496
  %v585 = vmul.f32 %v563, %v497
  %v586 = vmul.f32 %v568, %v498
  %v587 = vmul.f32 %v571, %v499
  %v588 = vmul.f32 %v576, %v500
  %v589 = vmul.f32 %v579, %v501
  %v590 = vlaneseq
  %v591 = vshrl.u32 %v590, 7
  %v592 = vadd.s32 %v591, 8
  %v593 = vlaneseq
  %v594 = vshrl.u32 %v593, 7
  %v595 = vsub.s32 0, %v594
  %v596 = vrot.slane %v511, %v595
  %vm597 = vcmp.eq.s32.totalorder %v591, %v596
  %vm598 = vcmp.eq.s32.totalorder %v592, %v596
  %v599 = vsel %vm597, 1, 0
  %v600 = vsel %vm598, 1, 0
  %v601 = vcvt.s32.f32 %v599
  %v602 = vcvt.s32.f32 %v600
  %v603 = vpack.c.bf16 %v602, %v601
  %v604 = vpack.c.bf16 %v583, %v582
  %v605 = vpack.c.bf16 %v585, %v584
  %v606 = vpack.c.bf16 %v587, %v586
  %v607 = vpack.c.bf16 %v589, %v588
  %vm608 = vcmask 490496
  %v610 = vsel %vm608, %v603, 0
  %vm612 = vcmask 1045504
  %v614 = vsel %vm612, %v607, 0
  %616 = vmatprep.subr.bf16.mxu0 0
  %617 = vmatpush1.bf16.msra.mxu0 %v604
  %618 = vmatprep.subr.bf16.mxu0 0
  %619 = vmatpush1.bf16.msra.mxu0 %v605
  %620 = vmatprep.subr.bf16.mxu0 0
  %621 = vmatpush1.bf16.msra.mxu0 %v606
  %622 = vmatprep.subr.bf16.mxu0 0
  %623 = vmatpush1.bf16.msra.mxu0 %v614
  %624 = vmatprep.subr.bf16.mxu0 0
  %625 = vmatpush1.bf16.msra.mxu0 0
  %626 = vmatprep.subr.bf16.mxu0 0
  %627 = vmatpush1.bf16.msra.mxu0 0
  %628 = vmatprep.subr.bf16.mxu0 0
  %629 = vmatpush1.bf16.msra.mxu0 0
  %630 = vmatprep.subr.bf16.mxu0 0
  %631 = vmatpush1.bf16.msra.mxu0 0
  %632 = vmatprep.subr.bf16.mxu0 0
  %633 = vmatpush1.bf16.msra.mxu0 0
  %634 = vmatprep.subr.bf16.mxu0 0
  %635 = vmatpush1.bf16.msra.mxu0 0
  %636 = vmatprep.subr.bf16.mxu0 0
  %637 = vmatpush1.bf16.msra.mxu0 0
  %638 = vmatprep.subr.bf16.mxu0 0
  %639 = vmatpush1.bf16.msra.mxu0 0
  %640 = vmatprep.subr.bf16.mxu0 0
  %641 = vmatpush1.bf16.msra.mxu0 0
  %642 = vmatprep.subr.bf16.mxu0 0
  %643 = vmatpush1.bf16.msra.mxu0 0
  %644 = vmatprep.subr.bf16.mxu0 0
  %645 = vmatpush1.bf16.msra.mxu0 0
  %646 = vmatprep.subr.bf16.mxu0 0
  %647 = vmatpush1.bf16.msra.mxu0 0
  %648 = vmatprep.mubr.bf16.mxu0 0
  %649 = vmatmul.mubr.bf16.gmra.mrb[0].mxu0 %v610
  %v650 = vpop.f32.mrb[0].mxu0
  %v651 = vadd.f32 0.0, %v650
  %v652 = vpop.f32.mrb[0].mxu0
  %v653 = vpop.f32.mrb[0].mxu0
  %v654 = vadd.f32 0.0, %v653
  %v655 = vpop.f32.mrb[0].mxu0
  %656 = vdwg.mxu0
  %v657 = vld [vmem:[%s10] sm:$0xf]
  %v658 = vld [vmem:[%s10 + $0x4] sm:$0xf]
  %v659 = vld [vmem:[%s10 + $0x8] sm:$0xf]
  %v660 = vld [vmem:[%s10 + $0xc] sm:$0xf]
  %v661 = vpack.c.bf16 %v654, %v651
  %v662 = vld [vmem:[%s11] sm:$0x1]
  %v664 = vlaneseq
  %v665 = vshrl.u32 %v664, 7
  %v666 = vsub.s32 0, %v665
  %v667 = vrot.slane %v662, %v666
  %v673 = vunpack.c.l.b16 %v657
  %v674 = vunpack.c.l.b16 %v658
  %v675 = vunpack.c.l.b16 %v659
  %v676 = vunpack.c.l.b16 %v660
  %v677 = vpack.c.b16 %v674, %v673
  %v678 = vpack.c.b16 %v676, %v675
  %v682 = vsel %vm291, %v661, 0
  %684 = vmatprep.subr.bf16.mxu0 0
  %685 = vmatpush1.bf16.msra.mxu0 %v677
  %686 = vmatprep.subr.bf16.mxu0 0
  %687 = vmatpush1.bf16.msra.mxu0 %v678
  %688 = vmatprep.subr.bf16.mxu0 0
  %689 = vmatpush1.bf16.msra.mxu0 0
  %690 = vmatprep.subr.bf16.mxu0 0
  %691 = vmatpush1.bf16.msra.mxu0 0
  %692 = vmatprep.subr.bf16.mxu0 0
  %693 = vmatpush1.bf16.msra.mxu0 0
  %694 = vmatprep.subr.bf16.mxu0 0
  %695 = vmatpush1.bf16.msra.mxu0 0
  %696 = vmatprep.subr.bf16.mxu0 0
  %697 = vmatpush1.bf16.msra.mxu0 0
  %698 = vmatprep.subr.bf16.mxu0 0
  %699 = vmatpush1.bf16.msra.mxu0 0
  %700 = vmatprep.subr.bf16.mxu0 0
  %701 = vmatpush1.bf16.msra.mxu0 0
  %702 = vmatprep.subr.bf16.mxu0 0
  %703 = vmatpush1.bf16.msra.mxu0 0
  %704 = vmatprep.subr.bf16.mxu0 0
  %705 = vmatpush1.bf16.msra.mxu0 0
  %706 = vmatprep.subr.bf16.mxu0 0
  %707 = vmatpush1.bf16.msra.mxu0 0
  %708 = vmatprep.subr.bf16.mxu0 0
  %709 = vmatpush1.bf16.msra.mxu0 0
  %710 = vmatprep.subr.bf16.mxu0 0
  %711 = vmatpush1.bf16.msra.mxu0 0
  %712 = vmatprep.subr.bf16.mxu0 0
  %713 = vmatpush1.bf16.msra.mxu0 0
  %714 = vmatprep.subr.bf16.mxu0 0
  %715 = vmatpush1.bf16.msra.mxu0 0
  %716 = vmatprep.mubr.bf16.mxu0 0
  %717 = vmatmul.mubr.bf16.gmra.mrb[0].mxu0 %v682
  %v718 = vpop.f32.mrb[0].mxu0
  %v719 = vadd.f32 %v667, %v718
  %v720 = vpop.f32.mrb[0].mxu0
  %v721 = vpop.f32.mrb[0].mxu0
  %v722 = vadd.f32 %v667, %v721
  %v723 = vpop.f32.mrb[0].mxu0
  %724 = vdwg.mxu0
  %v725 = vxor.u32 %v719, 2147483648
  %v726 = vxor.u32 %v722, 2147483648
  %v727 = vmul.f32 %v725, 1.442695
  %v728 = vpow.pop %v727
  %v729 = vmul.f32 %v726, 1.442695
  %v730 = vpow.pop %v729
  %v731 = vadd.f32 %v728, 1.0
  %v732 = vadd.f32 %v730, 1.0
  %v733 = vrcp.pop %v731
  %v734 = vmul.f32 1.0, %v733
  %v735 = vrcp.pop %v732
  %v736 = vmul.f32 1.0, %v735
  %v737 = vmul.f32 %v719, %v734
  %v738 = vmul.f32 %v722, %v736
  %v739 = vld [vmem:[%s12] sm:$0xf]
  %v740 = vld [vmem:[%s12 + $0x4] sm:$0xf]
  %v741 = vld [vmem:[%s12 + $0x8] sm:$0xf]
  %v742 = vld [vmem:[%s12 + $0xc] sm:$0xf]
  %v743 = vpack.c.bf16 %v738, %v737
  %v744 = vld [vmem:[%s13] sm:$0x1]
  %v746 = vlaneseq
  %v747 = vshrl.u32 %v746, 7
  %v748 = vsub.s32 0, %v747
  %v749 = vrot.slane %v744, %v748
  %v755 = vunpack.c.l.b16 %v739
  %v756 = vunpack.c.l.b16 %v740
  %v757 = vunpack.c.l.b16 %v741
  %v758 = vunpack.c.l.b16 %v742
  %v759 = vpack.c.b16 %v756, %v755
  %v760 = vpack.c.b16 %v758, %v757
  %v764 = vsel %vm291, %v743, 0
  %766 = vmatprep.subr.bf16.mxu0 0
  %767 = vmatpush1.bf16.msra.mxu0 %v759
  %768 = vmatprep.subr.bf16.mxu0 0
  %769 = vmatpush1.bf16.msra.mxu0 %v760
  %770 = vmatprep.subr.bf16.mxu0 0
  %771 = vmatpush1.bf16.msra.mxu0 0
  %772 = vmatprep.subr.bf16.mxu0 0
  %773 = vmatpush1.bf16.msra.mxu0 0
  %774 = vmatprep.subr.bf16.mxu0 0
  %775 = vmatpush1.bf16.msra.mxu0 0
  %776 = vmatprep.subr.bf16.mxu0 0
  %777 = vmatpush1.bf16.msra.mxu0 0
  %778 = vmatprep.subr.bf16.mxu0 0
  %779 = vmatpush1.bf16.msra.mxu0 0
  %780 = vmatprep.subr.bf16.mxu0 0
  %781 = vmatpush1.bf16.msra.mxu0 0
  %782 = vmatprep.subr.bf16.mxu0 0
  %783 = vmatpush1.bf16.msra.mxu0 0
  %784 = vmatprep.subr.bf16.mxu0 0
  %785 = vmatpush1.bf16.msra.mxu0 0
  %786 = vmatprep.subr.bf16.mxu0 0
  %787 = vmatpush1.bf16.msra.mxu0 0
  %788 = vmatprep.subr.bf16.mxu0 0
  %789 = vmatpush1.bf16.msra.mxu0 0
  %790 = vmatprep.subr.bf16.mxu0 0
  %791 = vmatpush1.bf16.msra.mxu0 0
  %792 = vmatprep.subr.bf16.mxu0 0
  %793 = vmatpush1.bf16.msra.mxu0 0
  %794 = vmatprep.subr.bf16.mxu0 0
  %795 = vmatpush1.bf16.msra.mxu0 0
  %796 = vmatprep.subr.bf16.mxu0 0
  %797 = vmatpush1.bf16.msra.mxu0 0
  %798 = vmatprep.mubr.bf16.mxu0 0
  %799 = vmatmul.mubr.bf16.gmra.mrb[0].mxu0 %v764
  %v800 = vpop.f32.mrb[0].mxu0
  %v801 = vadd.f32 %v749, %v800
  %v802 = vpop.f32.mrb[0].mxu0
  %v803 = vpop.f32.mrb[0].mxu0
  %v804 = vadd.f32 %v749, %v803
  %v805 = vpop.f32.mrb[0].mxu0
  %806 = vdwg.mxu0
  %v807 = vxor.u32 %v801, 2147483648
  %v808 = vxor.u32 %v804, 2147483648
  %v809 = vmul.f32 %v807, 1.442695
  %v810 = vpow.pop %v809
  %v811 = vmul.f32 %v808, 1.442695
  %v812 = vpow.pop %v811
  %v813 = vadd.f32 %v810, 1.0
  %v814 = vadd.f32 %v812, 1.0
  %v815 = vrcp.pop %v813
  %v816 = vmul.f32 1.0, %v815
  %v817 = vrcp.pop %v814
  %v818 = vmul.f32 1.0, %v817
  %v819 = vmul.f32 %v801, %v816
  %v820 = vmul.f32 %v804, %v818
  %v821 = vld [vmem:[%s14] sm:$0xf]
  %v822 = vld [vmem:[%s14 + $0x4] sm:$0xf]
  %v823 = vld [vmem:[%s14 + $0x8] sm:$0xf]
  %v824 = vld [vmem:[%s14 + $0xc] sm:$0xf]
  %v825 = vpack.c.bf16 %v820, %v819
  %v830 = vunpack.c.l.b16 %v821
  %v831 = vunpack.c.l.b16 %v822
  %v832 = vunpack.c.l.b16 %v823
  %v833 = vunpack.c.l.b16 %v824
  %v834 = vpack.c.b16 %v831, %v830
  %v835 = vpack.c.b16 %v833, %v832
  %v839 = vsel %vm291, %v825, 0
  %841 = vmatprep.subr.bf16.mxu0 0
  %842 = vmatpush1.bf16.msra.mxu0 %v834
  %843 = vmatprep.subr.bf16.mxu0 0
  %844 = vmatpush1.bf16.msra.mxu0 %v835
  %845 = vmatprep.subr.bf16.mxu0 0
  %846 = vmatpush1.bf16.msra.mxu0 0
  %847 = vmatprep.subr.bf16.mxu0 0
  %848 = vmatpush1.bf16.msra.mxu0 0
  %849 = vmatprep.subr.bf16.mxu0 0
  %850 = vmatpush1.bf16.msra.mxu0 0
  %851 = vmatprep.subr.bf16.mxu0 0
  %852 = vmatpush1.bf16.msra.mxu0 0
  %853 = vmatprep.subr.bf16.mxu0 0
  %854 = vmatpush1.bf16.msra.mxu0 0
  %855 = vmatprep.subr.bf16.mxu0 0
  %856 = vmatpush1.bf16.msra.mxu0 0
  %857 = vmatprep.subr.bf16.mxu0 0
  %858 = vmatpush1.bf16.msra.mxu0 0
  %859 = vmatprep.subr.bf16.mxu0 0
  %860 = vmatpush1.bf16.msra.mxu0 0
  %861 = vmatprep.subr.bf16.mxu0 0
  %862 = vmatpush1.bf16.msra.mxu0 0
  %863 = vmatprep.subr.bf16.mxu0 0
  %864 = vmatpush1.bf16.msra.mxu0 0
  %865 = vmatprep.subr.bf16.mxu0 0
  %866 = vmatpush1.bf16.msra.mxu0 0
  %867 = vmatprep.subr.bf16.mxu0 0
  %868 = vmatpush1.bf16.msra.mxu0 0
  %869 = vmatprep.subr.bf16.mxu0 0
  %870 = vmatpush1.bf16.msra.mxu0 0
  %871 = vmatprep.subr.bf16.mxu0 0
  %872 = vmatpush1.bf16.msra.mxu0 0
  %873 = vmatprep.mubr.bf16.mxu0 0
  %874 = vmatmul.mubr.bf16.gmra.mrb[0].mxu0 %v839
  %v875 = vpop.f32.mrb[0].mxu0
  %v876 = vadd.f32 0.0, %v875
  %v877 = vpop.f32.mrb[0].mxu0
  %v878 = vpop.f32.mrb[0].mxu0
  %v879 = vadd.f32 0.0, %v878
  %v880 = vpop.f32.mrb[0].mxu0
  %881 = vdwg.mxu0
  %v882 = vlaneseq
  %v883 = vshrl.u32 %v882, 7
  %v884 = vsub.s32 0, %v883
  %v885 = vrot.slane %v512, %v884
  %vm886 = vcmp.eq.s32.totalorder %v591, %v885
  %v887 = vsel %vm886, 1, 0
  %v888 = vcvt.s32.f32 %v887
  %v889 = vpack.c.bf16 %v888, %v888
  %v890 = vpack.c.bf16 %v879, %v876
  %vm891 = vcmask 97280
  %v893 = vsel %vm891, %v889, 0
  %v896 = vsel %vm612, %v890, 0
  %898 = vmatprep.subr.bf16.mxu0 0
  %899 = vmatpush1.bf16.msra.mxu0 %v896
  %900 = vmatprep.subr.bf16.mxu0 0
  %901 = vmatpush1.bf16.msra.mxu0 0
  %902 = vmatprep.subr.bf16.mxu0 0
  %903 = vmatpush1.bf16.msra.mxu0 0
  %904 = vmatprep.subr.bf16.mxu0 0
  %905 = vmatpush1.bf16.msra.mxu0 0
  %906 = vmatprep.subr.bf16.mxu0 0
  %907 = vmatpush1.bf16.msra.mxu0 0
  %908 = vmatprep.subr.bf16.mxu0 0
  %909 = vmatpush1.bf16.msra.mxu0 0
  %910 = vmatprep.subr.bf16.mxu0 0
  %911 = vmatpush1.bf16.msra.mxu0 0
  %912 = vmatprep.subr.bf16.mxu0 0
  %913 = vmatpush1.bf16.msra.mxu0 0
  %914 = vmatprep.subr.bf16.mxu0 0
  %915 = vmatpush1.bf16.msra.mxu0 0
  %916 = vmatprep.subr.bf16.mxu0 0
  %917 = vmatpush1.bf16.msra.mxu0 0
  %918 = vmatprep.subr.bf16.mxu0 0
  %919 = vmatpush1.bf16.msra.mxu0 0
  %920 = vmatprep.subr.bf16.mxu0 0
  %921 = vmatpush1.bf16.msra.mxu0 0
  %922 = vmatprep.subr.bf16.mxu0 0
  %923 = vmatpush1.bf16.msra.mxu0 0
  %924 = vmatprep.subr.bf16.mxu0 0
  %925 = vmatpush1.bf16.msra.mxu0 0
  %926 = vmatprep.subr.bf16.mxu0 0
  %927 = vmatpush1.bf16.msra.mxu0 0
  %928 = vmatprep.subr.bf16.mxu0 0
  %929 = vmatpush1.bf16.msra.mxu0 0
  %930 = vmatprep.mubr.bf16.mxu0 0
  %931 = vmatmul.mubr.bf16.gmra.mrb[0].mxu0 %v893
  %v932 = vpop.f32.mrb[0].mxu0
  %v933 = vadd.f32 0.0, %v932
  %v934 = vpop.f32.mrb[0].mxu0
  %v935 = vpop.f32.mrb[0].mxu0
  %v936 = vpop.f32.mrb[0].mxu0
  %937 = vdwg.mxu0
  %vm938 = vcmask 123904
  %939 = vst.msk [vmem:[%s16] sm:$0x3] %vm938, %v933
  // Predicated region
  $region62: #{fwd.3} parent=0 // pred_check
    _
  $region63: #{fwd.3} parent=0 // pred_check_branch
    %941 = sbr.rel (0) target = $region65
  $region64: #{fwd.3} parent=0 // pred_region
    _
  $region65: #{fwd.3} parent=0 // pred_fallthru
    _
  // Predicated region
  $region66: #{fwd.3} parent=0 // pred_check
    _
  $region67: #{fwd.3} parent=0 // pred_check_branch
    %943 = sbr.rel (0) target = $region69
  $region68: #{fwd.3} parent=0 // pred_region
    _
  $region69: #{fwd.3} parent=0 // pred_fallthru
    _
  // Predicated region
  $region70: #{fwd.3} parent=0 // pred_check
    _
  $region71: #{fwd.3} parent=0 // pred_check_branch
    %945 = sbr.rel (0) target = $region73
  $region72: #{fwd.3} parent=0 // pred_region
    _
  $region73: #{fwd.3} parent=0 // pred_fallthru
    _
  // Predicated region
  $region74: #{fwd.3} parent=0 // pred_check
    _
  $region75: #{fwd.3} parent=0 // pred_check_branch
    %947 = sbr.rel (0) target = $region77
  $region76: #{fwd.3} parent=0 // pred_region
    _
  $region77: #{fwd.3} parent=0 // pred_fallthru
    _

// kernel: fwd.5
$region0: #{fwd.5}
  #allocation0 [shape = 'u32[]', space=smem, size = 0x4, offset = 0x4, fixed_abs, tag = 'smem constant byte address 0x4 - core index']
  #allocation1 [shape = 'u32[144,128]{1,0:T(1,128)}', space=vmem, size = 0x12000, scoped, tag = 'internal scratch']
  %s0 = inlined_call_operand.vmem [shape: f32[2,16], index: 0, kind: input, shape index: {}]
  %s1 = inlined_call_operand.vmem [shape: f32[2,2], index: 1, kind: input, shape index: {}]
  %s2 = inlined_call_operand.vmem [shape: bf16[16,16], index: 2, kind: input, shape index: {}]
  %s3 = inlined_call_operand.vmem [shape: f32[1,16], index: 3, kind: input, shape index: {}]
  %s4 = inlined_call_operand.vmem [shape: bf16[16,16], index: 4, kind: input, shape index: {}]
  %s5 = inlined_call_operand.vmem [shape: f32[1,16], index: 5, kind: input, shape index: {}]
  %s6 = inlined_call_operand.vmem [shape: bf16[16,4], index: 6, kind: input, shape index: {}]
  %s7 = inlined_call_operand.vmem [shape: f32[1,4], index: 7, kind: input, shape index: {}]
  %s8 = inlined_call_operand.vmem [shape: bf16[2,64], index: 8, kind: input, shape index: {}]
  %s9 = inlined_call_operand.vmem [shape: f32[1,64], index: 9, kind: input, shape index: {}]
  %s10 = inlined_call_operand.vmem [shape: bf16[64,64], index: 10, kind: input, shape index: {}]
  %s11 = inlined_call_operand.vmem [shape: f32[1,64], index: 11, kind: input, shape index: {}]
  %s12 = inlined_call_operand.vmem [shape: bf16[64,132], index: 12, kind: input, shape index: {}]
  %s13 = inlined_call_operand.vmem [shape: f32[1,132], index: 13, kind: input, shape index: {}]
  %s14 = inlined_call_operand.vmem [shape: f32[2,136], index: 14, kind: output, shape index: {}]
  %s15 = sld [smem:[#allocation0]]
  $region66: #{fwd.5} parent=0
    _
  %s17 = ssub.s32 1, %s15
  %s18 = scalar_select 0, %s17, %s15
  // Predicated region
  $region2: #{fwd.5} parent=0 // pred_check
    _
  $region3: #{fwd.5} parent=0 // pred_check_branch
    %20 = sbr.rel (0) target = $region5
  $region4: #{fwd.5} parent=0 // pred_region
    _
  $region5: #{fwd.5} parent=0 // pred_fallthru
    _
  // Predicated region
  $region6: #{fwd.5} parent=0 // pred_check
    _
  $region7: #{fwd.5} parent=0 // pred_check_branch
    %22 = sbr.rel (0) target = $region9
  $region8: #{fwd.5} parent=0 // pred_region
    _
  $region9: #{fwd.5} parent=0 // pred_fallthru
    _
  // Predicated region
  $region10: #{fwd.5} parent=0 // pred_check
    _
  $region11: #{fwd.5} parent=0 // pred_check_branch
    %24 = sbr.rel (0) target = $region13
  $region12: #{fwd.5} parent=0 // pred_region
    _
  $region13: #{fwd.5} parent=0 // pred_fallthru
    _
  // Predicated region
  $region14: #{fwd.5} parent=0 // pred_check
    _
  $region15: #{fwd.5} parent=0 // pred_check_branch
    %26 = sbr.rel (0) target = $region17
  $region16: #{fwd.5} parent=0 // pred_region
    _
  $region17: #{fwd.5} parent=0 // pred_fallthru
    _
  // Predicated region
  $region18: #{fwd.5} parent=0 // pred_check
    _
  $region19: #{fwd.5} parent=0 // pred_check_branch
    %28 = sbr.rel (0) target = $region21
  $region20: #{fwd.5} parent=0 // pred_region
    _
  $region21: #{fwd.5} parent=0 // pred_fallthru
    _
  // Predicated region
  $region22: #{fwd.5} parent=0 // pred_check
    _
  $region23: #{fwd.5} parent=0 // pred_check_branch
    %30 = sbr.rel (0) target = $region25
  $region24: #{fwd.5} parent=0 // pred_region
    _
  $region25: #{fwd.5} parent=0 // pred_fallthru
    _
  // Predicated region
  $region26: #{fwd.5} parent=0 // pred_check
    _
  $region27: #{fwd.5} parent=0 // pred_check_branch
    %32 = sbr.rel (0) target = $region29
  $region28: #{fwd.5} parent=0 // pred_region
    _
  $region29: #{fwd.5} parent=0 // pred_fallthru
    _
  // Predicated region
  $region30: #{fwd.5} parent=0 // pred_check
    _
  $region31: #{fwd.5} parent=0 // pred_check_branch
    %34 = sbr.rel (0) target = $region33
  $region32: #{fwd.5} parent=0 // pred_region
    _
  $region33: #{fwd.5} parent=0 // pred_fallthru
    _
  // Predicated region
  $region34: #{fwd.5} parent=0 // pred_check
    _
  $region35: #{fwd.5} parent=0 // pred_check_branch
    %36 = sbr.rel (0) target = $region37
  $region36: #{fwd.5} parent=0 // pred_region
    _
  $region37: #{fwd.5} parent=0 // pred_fallthru
    _
  // Predicated region
  $region38: #{fwd.5} parent=0 // pred_check
    _
  $region39: #{fwd.5} parent=0 // pred_check_branch
    %38 = sbr.rel (0) target = $region41
  $region40: #{fwd.5} parent=0 // pred_region
    _
  $region41: #{fwd.5} parent=0 // pred_fallthru
    _
  // Predicated region
  $region42: #{fwd.5} parent=0 // pred_check
    _
  $region43: #{fwd.5} parent=0 // pred_check_branch
    %40 = sbr.rel (0) target = $region45
  $region44: #{fwd.5} parent=0 // pred_region
    _
  $region45: #{fwd.5} parent=0 // pred_fallthru
    _
  // Predicated region
  $region46: #{fwd.5} parent=0 // pred_check
    _
  $region47: #{fwd.5} parent=0 // pred_check_branch
    %42 = sbr.rel (0) target = $region49
  $region48: #{fwd.5} parent=0 // pred_region
    _
  $region49: #{fwd.5} parent=0 // pred_fallthru
    _
  // Predicated region
  $region50: #{fwd.5} parent=0 // pred_check
    _
  $region51: #{fwd.5} parent=0 // pred_check_branch
    %44 = sbr.rel (0) target = $region53
  $region52: #{fwd.5} parent=0 // pred_region
    _
  $region53: #{fwd.5} parent=0 // pred_fallthru
    _
  // Predicated region
  $region54: #{fwd.5} parent=0 // pred_check
    _
  $region55: #{fwd.5} parent=0 // pred_check_branch
    %46 = sbr.rel (0) target = $region57
  $region56: #{fwd.5} parent=0 // pred_region
    _
  $region57: #{fwd.5} parent=0 // pred_fallthru
    _
  %v48 = vld [vmem:[%s0] sm:$0x3]
  %v49 = vld [vmem:[%s2] sm:$0xf]
  %v50 = vld [vmem:[%s2 + $0x4] sm:$0xf]
  %v51 = vpack.c.bf16 %v48, %v48
  %v52 = vld [vmem:[%s3] sm:$0x1]
  %v54 = vlaneseq
  %v55 = vshrl.u32 %v54, 7
  %v56 = vsub.s32 0, %v55
  %v57 = vrot.slane %v52, %v56
  %v61 = vunpack.c.l.b16 %v49
  %v62 = vunpack.c.l.b16 %v50
  %v63 = vpack.c.b16 %v62, %v61
  %vm65 = vcmask 130048
  %v67 = vsel %vm65, %v51, 0
  %69 = vmatprep.subr.bf16.mxu0 0
  %70 = vmatpush1.bf16.msra.mxu0 %v63
  %71 = vmatprep.subr.bf16.mxu0 0
  %72 = vmatpush1.bf16.msra.mxu0 0
  %73 = vmatprep.subr.bf16.mxu0 0
  %74 = vmatpush1.bf16.msra.mxu0 0
  %75 = vmatprep.subr.bf16.mxu0 0
  %76 = vmatpush1.bf16.msra.mxu0 0
  %77 = vmatprep.subr.bf16.mxu0 0
  %78 = vmatpush1.bf16.msra.mxu0 0
  %79 = vmatprep.subr.bf16.mxu0 0
  %80 = vmatpush1.bf16.msra.mxu0 0
  %81 = vmatprep.subr.bf16.mxu0 0
  %82 = vmatpush1.bf16.msra.mxu0 0
  %83 = vmatprep.subr.bf16.mxu0 0
  %84 = vmatpush1.bf16.msra.mxu0 0
  %85 = vmatprep.subr.bf16.mxu0 0
  %86 = vmatpush1.bf16.msra.mxu0 0
  %87 = vmatprep.subr.bf16.mxu0 0
  %88 = vmatpush1.bf16.msra.mxu0 0
  %89 = vmatprep.subr.bf16.mxu0 0
  %90 = vmatpush1.bf16.msra.mxu0 0
  %91 = vmatprep.subr.bf16.mxu0 0
  %92 = vmatpush1.bf16.msra.mxu0 0
  %93 = vmatprep.subr.bf16.mxu0 0
  %94 = vmatpush1.bf16.msra.mxu0 0
  %95 = vmatprep.subr.bf16.mxu0 0
  %96 = vmatpush1.bf16.msra.mxu0 0
  %97 = vmatprep.subr.bf16.mxu0 0
  %98 = vmatpush1.bf16.msra.mxu0 0
  %99 = vmatprep.subr.bf16.mxu0 0
  %100 = vmatpush1.bf16.msra.mxu0 0
  %101 = vmatprep.mubr.bf16.mxu0 0
  %102 = vmatmul.mubr.bf16.gmra.mrb[0].mxu0 %v67
  %v103 = vpop.f32.mrb[0].mxu0
  %v104 = vadd.f32 %v57, %v103
  %v105 = vpop.f32.mrb[0].mxu0
  %v106 = vpop.f32.mrb[0].mxu0
  %v107 = vpop.f32.mrb[0].mxu0
  %108 = vdwg.mxu0
  %v109 = vtanh.pop %v104
  %v110 = vld [vmem:[%s4] sm:$0xf]
  %v111 = vld [vmem:[%s4 + $0x4] sm:$0xf]
  %v112 = vpack.c.bf16 %v109, %v109
  %v113 = vld [vmem:[%s5] sm:$0x1]
  %v115 = vlaneseq
  %v116 = vshrl.u32 %v115, 7
  %v117 = vsub.s32 0, %v116
  %v118 = vrot.slane %v113, %v117
  %v122 = vunpack.c.l.b16 %v110
  %v123 = vunpack.c.l.b16 %v111
  %v124 = vpack.c.b16 %v123, %v122
  %v127 = vsel %vm65, %v112, 0
  %129 = vmatprep.subr.bf16.mxu0 0
  %130 = vmatpush1.bf16.msra.mxu0 %v124
  %131 = vmatprep.subr.bf16.mxu0 0
  %132 = vmatpush1.bf16.msra.mxu0 0
  %133 = vmatprep.subr.bf16.mxu0 0
  %134 = vmatpush1.bf16.msra.mxu0 0
  %135 = vmatprep.subr.bf16.mxu0 0
  %136 = vmatpush1.bf16.msra.mxu0 0
  %137 = vmatprep.subr.bf16.mxu0 0
  %138 = vmatpush1.bf16.msra.mxu0 0
  %139 = vmatprep.subr.bf16.mxu0 0
  %140 = vmatpush1.bf16.msra.mxu0 0
  %141 = vmatprep.subr.bf16.mxu0 0
  %142 = vmatpush1.bf16.msra.mxu0 0
  %143 = vmatprep.subr.bf16.mxu0 0
  %144 = vmatpush1.bf16.msra.mxu0 0
  %145 = vmatprep.subr.bf16.mxu0 0
  %146 = vmatpush1.bf16.msra.mxu0 0
  %147 = vmatprep.subr.bf16.mxu0 0
  %148 = vmatpush1.bf16.msra.mxu0 0
  %149 = vmatprep.subr.bf16.mxu0 0
  %150 = vmatpush1.bf16.msra.mxu0 0
  %151 = vmatprep.subr.bf16.mxu0 0
  %152 = vmatpush1.bf16.msra.mxu0 0
  %153 = vmatprep.subr.bf16.mxu0 0
  %154 = vmatpush1.bf16.msra.mxu0 0
  %155 = vmatprep.subr.bf16.mxu0 0
  %156 = vmatpush1.bf16.msra.mxu0 0
  %157 = vmatprep.subr.bf16.mxu0 0
  %158 = vmatpush1.bf16.msra.mxu0 0
  %159 = vmatprep.subr.bf16.mxu0 0
  %160 = vmatpush1.bf16.msra.mxu0 0
  %161 = vmatprep.mubr.bf16.mxu0 0
  %162 = vmatmul.mubr.bf16.gmra.mrb[0].mxu0 %v127
  %v163 = vpop.f32.mrb[0].mxu0
  %v164 = vadd.f32 %v118, %v163
  %v165 = vpop.f32.mrb[0].mxu0
  %v166 = vpop.f32.mrb[0].mxu0
  %v167 = vpop.f32.mrb[0].mxu0
  %168 = vdwg.mxu0
  %v169 = vtanh.pop %v164
  %v170 = vld [vmem:[%s6] sm:$0xf]
  %v171 = vld [vmem:[%s6 + $0x4] sm:$0xf]
  %v172 = vpack.c.bf16 %v169, %v169
  %v173 = vld [vmem:[%s7] sm:$0x1]
  %v175 = vlaneseq
  %v176 = vshrl.u32 %v175, 7
  %v177 = vsub.s32 0, %v176
  %v178 = vrot.slane %v173, %v177
  %v182 = vunpack.c.l.b16 %v170
  %v183 = vunpack.c.l.b16 %v171
  %v184 = vpack.c.b16 %v183, %v182
  %v187 = vsel %vm65, %v172, 0
  %189 = vmatprep.subr.bf16.mxu0 0
  %190 = vmatpush1.bf16.msra.mxu0 %v184
  %191 = vmatprep.subr.bf16.mxu0 0
  %192 = vmatpush1.bf16.msra.mxu0 0
  %193 = vmatprep.subr.bf16.mxu0 0
  %194 = vmatpush1.bf16.msra.mxu0 0
  %195 = vmatprep.subr.bf16.mxu0 0
  %196 = vmatpush1.bf16.msra.mxu0 0
  %197 = vmatprep.subr.bf16.mxu0 0
  %198 = vmatpush1.bf16.msra.mxu0 0
  %199 = vmatprep.subr.bf16.mxu0 0
  %200 = vmatpush1.bf16.msra.mxu0 0
  %201 = vmatprep.subr.bf16.mxu0 0
  %202 = vmatpush1.bf16.msra.mxu0 0
  %203 = vmatprep.subr.bf16.mxu0 0
  %204 = vmatpush1.bf16.msra.mxu0 0
  %205 = vmatprep.subr.bf16.mxu0 0
  %206 = vmatpush1.bf16.msra.mxu0 0
  %207 = vmatprep.subr.bf16.mxu0 0
  %208 = vmatpush1.bf16.msra.mxu0 0
  %209 = vmatprep.subr.bf16.mxu0 0
  %210 = vmatpush1.bf16.msra.mxu0 0
  %211 = vmatprep.subr.bf16.mxu0 0
  %212 = vmatpush1.bf16.msra.mxu0 0
  %213 = vmatprep.subr.bf16.mxu0 0
  %214 = vmatpush1.bf16.msra.mxu0 0
  %215 = vmatprep.subr.bf16.mxu0 0
  %216 = vmatpush1.bf16.msra.mxu0 0
  %217 = vmatprep.subr.bf16.mxu0 0
  %218 = vmatpush1.bf16.msra.mxu0 0
  %219 = vmatprep.subr.bf16.mxu0 0
  %220 = vmatpush1.bf16.msra.mxu0 0
  %221 = vmatprep.mubr.bf16.mxu0 0
  %222 = vmatmul.mubr.bf16.gmra.mrb[0].mxu0 %v187
  %v223 = vpop.f32.mrb[0].mxu0
  %v224 = vadd.f32 %v178, %v223
  %v225 = vpop.f32.mrb[0].mxu0
  %v226 = vpop.f32.mrb[0].mxu0
  %v227 = vpop.f32.mrb[0].mxu0
  %228 = vdwg.mxu0
  %v229 = vmul.f32 %v224, 0.5
  %v230 = vmul.f32 %v229, 1.442695
  %v231 = vpow.pop %v230
  %v232 = vld [vmem:[%s1] sm:$0x3]
  %234 = vrot.lane.b32.xlu0 %v232, 2
  %v235 = vpop.permute.xlu0 %234
  %v237 = vmul.f32 %v231, %v235
  %239 = vrot.lane.b32.xlu0 %v237, 126
  %v240 = vpop.permute.xlu0 %239
  %v242 = vadd.f32 %v224, %v240
  %v243 = vld [vmem:[%s8] sm:$0x1]
  %v244 = vpack.c.bf16 %v242, %v242
  %v245 = vld [vmem:[%s9] sm:$0x1]
  %v247 = vlaneseq
  %v248 = vshrl.u32 %v247, 7
  %v249 = vsub.s32 0, %v248
  %v250 = vrot.slane %v245, %v249
  %vm252 = vcmask 15360
  %v254 = vsel %vm252, %v244, 0
  %vm256 = vcmask 1040384
  %v258 = vsel %vm256, %v243, 0
  %260 = vmatprep.subr.bf16.mxu0 0
  %261 = vmatpush1.bf16.msra.mxu0 %v258
  %262 = vmatprep.subr.bf16.mxu0 0
  %263 = vmatpush1.bf16.msra.mxu0 0
  %264 = vmatprep.subr.bf16.mxu0 0
  %265 = vmatpush1.bf16.msra.mxu0 0
  %266 = vmatprep.subr.bf16.mxu0 0
  %267 = vmatpush1.bf16.msra.mxu0 0
  %268 = vmatprep.subr.bf16.mxu0 0
  %269 = vmatpush1.bf16.msra.mxu0 0
  %270 = vmatprep.subr.bf16.mxu0 0
  %271 = vmatpush1.bf16.msra.mxu0 0
  %272 = vmatprep.subr.bf16.mxu0 0
  %273 = vmatpush1.bf16.msra.mxu0 0
  %274 = vmatprep.subr.bf16.mxu0 0
  %275 = vmatpush1.bf16.msra.mxu0 0
  %276 = vmatprep.subr.bf16.mxu0 0
  %277 = vmatpush1.bf16.msra.mxu0 0
  %278 = vmatprep.subr.bf16.mxu0 0
  %279 = vmatpush1.bf16.msra.mxu0 0
  %280 = vmatprep.subr.bf16.mxu0 0
  %281 = vmatpush1.bf16.msra.mxu0 0
  %282 = vmatprep.subr.bf16.mxu0 0
  %283 = vmatpush1.bf16.msra.mxu0 0
  %284 = vmatprep.subr.bf16.mxu0 0
  %285 = vmatpush1.bf16.msra.mxu0 0
  %286 = vmatprep.subr.bf16.mxu0 0
  %287 = vmatpush1.bf16.msra.mxu0 0
  %288 = vmatprep.subr.bf16.mxu0 0
  %289 = vmatpush1.bf16.msra.mxu0 0
  %290 = vmatprep.subr.bf16.mxu0 0
  %291 = vmatpush1.bf16.msra.mxu0 0
  %292 = vmatprep.mubr.bf16.mxu0 0
  %293 = vmatmul.mubr.bf16.gmra.mrb[0].mxu0 %v254
  %v294 = vpop.f32.mrb[0].mxu0
  %v295 = vadd.f32 %v250, %v294
  %v296 = vpop.f32.mrb[0].mxu0
  %v297 = vpop.f32.mrb[0].mxu0
  %v298 = vpop.f32.mrb[0].mxu0
  %299 = vdwg.mxu0
  %v300 = vtanh.pop %v295
  %v301 = vld [vmem:[%s10] sm:$0xf]
  %v302 = vld [vmem:[%s10 + $0x4] sm:$0xf]
  %v303 = vld [vmem:[%s10 + $0x8] sm:$0xf]
  %v304 = vld [vmem:[%s10 + $0xc] sm:$0xf]
  %v305 = vld [vmem:[%s10 + $0x10] sm:$0xf]
  %v306 = vld [vmem:[%s10 + $0x14] sm:$0xf]
  %v307 = vld [vmem:[%s10 + $0x18] sm:$0xf]
  %v308 = vld [vmem:[%s10 + $0x1c] sm:$0xf]
  %v309 = vpack.c.bf16 %v300, %v300
  %v310 = vld [vmem:[%s11] sm:$0x1]
  %v312 = vlaneseq
  %v313 = vshrl.u32 %v312, 7
  %v314 = vsub.s32 0, %v313
  %v315 = vrot.slane %v310, %v314
  %v325 = vunpack.c.l.b16 %v301
  %v326 = vunpack.c.l.b16 %v302
  %v327 = vunpack.c.l.b16 %v303
  %v328 = vunpack.c.l.b16 %v304
  %v329 = vunpack.c.l.b16 %v305
  %v330 = vunpack.c.l.b16 %v306
  %v331 = vunpack.c.l.b16 %v307
  %v332 = vunpack.c.l.b16 %v308
  %v333 = vpack.c.b16 %v326, %v325
  %v334 = vpack.c.b16 %v328, %v327
  %v335 = vpack.c.b16 %v330, %v329
  %v336 = vpack.c.b16 %v332, %v331
  %vm341 = vcmask 523264
  %v343 = vsel %vm341, %v309, 0
  %345 = vmatprep.subr.bf16.mxu0 0
  %346 = vmatpush1.bf16.msra.mxu0 %v333
  %347 = vmatprep.subr.bf16.mxu0 0
  %348 = vmatpush1.bf16.msra.mxu0 %v334
  %349 = vmatprep.subr.bf16.mxu0 0
  %350 = vmatpush1.bf16.msra.mxu0 %v335
  %351 = vmatprep.subr.bf16.mxu0 0
  %352 = vmatpush1.bf16.msra.mxu0 %v336
  %353 = vmatprep.subr.bf16.mxu0 0
  %354 = vmatpush1.bf16.msra.mxu0 0
  %355 = vmatprep.subr.bf16.mxu0 0
  %356 = vmatpush1.bf16.msra.mxu0 0
  %357 = vmatprep.subr.bf16.mxu0 0
  %358 = vmatpush1.bf16.msra.mxu0 0
  %359 = vmatprep.subr.bf16.mxu0 0
  %360 = vmatpush1.bf16.msra.mxu0 0
  %361 = vmatprep.subr.bf16.mxu0 0
  %362 = vmatpush1.bf16.msra.mxu0 0
  %363 = vmatprep.subr.bf16.mxu0 0
  %364 = vmatpush1.bf16.msra.mxu0 0
  %365 = vmatprep.subr.bf16.mxu0 0
  %366 = vmatpush1.bf16.msra.mxu0 0
  %367 = vmatprep.subr.bf16.mxu0 0
  %368 = vmatpush1.bf16.msra.mxu0 0
  %369 = vmatprep.subr.bf16.mxu0 0
  %370 = vmatpush1.bf16.msra.mxu0 0
  %371 = vmatprep.subr.bf16.mxu0 0
  %372 = vmatpush1.bf16.msra.mxu0 0
  %373 = vmatprep.subr.bf16.mxu0 0
  %374 = vmatpush1.bf16.msra.mxu0 0
  %375 = vmatprep.subr.bf16.mxu0 0
  %376 = vmatpush1.bf16.msra.mxu0 0
  %377 = vmatprep.mubr.bf16.mxu0 0
  %378 = vmatmul.mubr.bf16.gmra.mrb[0].mxu0 %v343
  %v379 = vpop.f32.mrb[0].mxu0
  %v380 = vadd.f32 %v315, %v379
  %v381 = vpop.f32.mrb[0].mxu0
  %v382 = vpop.f32.mrb[0].mxu0
  %v383 = vpop.f32.mrb[0].mxu0
  %384 = vdwg.mxu0
  %v385 = vtanh.pop %v380
  %v386 = vld [vmem:[%s12] sm:$0xff]
  %v387 = vld [vmem:[%s12 + $0x8] sm:$0xff]
  %v388 = vld [vmem:[%s12 + $0x10] sm:$0xff]
  %v389 = vld [vmem:[%s12 + $0x18] sm:$0xff]
  %v390 = vld [vmem:[%s12 + $0x20] sm:$0xff]
  %v391 = vld [vmem:[%s12 + $0x28] sm:$0xff]
  %v392 = vld [vmem:[%s12 + $0x30] sm:$0xff]
  %v393 = vld [vmem:[%s12 + $0x38] sm:$0xff]
  %v394 = vpack.c.bf16 %v385, %v385
  %v395 = vld [vmem:[%s13] sm:$0x3]
  %v397 = vlaneseq
  %v398 = vshrl.u32 %v397, 7
  %v399 = vsub.s32 0, %v398
  %v400 = vrot.slane %v395, %v399
  %v401 = vlaneseq
  %v402 = vshrl.u32 %v401, 7
  %v403 = vsub.s32 1, %v402
  %v404 = vrot.slane %v395, %v403
  %v415 = vunpack.c.l.b16 %v386
  %v416 = vunpack.c.h.b16 %v386
  %v417 = vunpack.c.l.b16 %v387
  %v418 = vunpack.c.h.b16 %v387
  %v419 = vunpack.c.l.b16 %v388
  %v420 = vunpack.c.h.b16 %v388
  %v421 = vunpack.c.l.b16 %v389
  %v422 = vunpack.c.h.b16 %v389
  %v423 = vunpack.c.l.b16 %v390
  %v424 = vunpack.c.h.b16 %v390
  %v425 = vunpack.c.l.b16 %v391
  %v426 = vunpack.c.h.b16 %v391
  %v427 = vunpack.c.l.b16 %v392
  %v428 = vunpack.c.h.b16 %v392
  %v429 = vunpack.c.l.b16 %v393
  %v430 = vunpack.c.h.b16 %v393
  %v431 = vpack.c.b16 %v417, %v415
  %v432 = vpack.c.b16 %v418, %v416
  %v433 = vpack.c.b16 %v421, %v419
  %v434 = vpack.c.b16 %v422, %v420
  %v435 = vpack.c.b16 %v425, %v423
  %v436 = vpack.c.b16 %v426, %v424
  %v437 = vpack.c.b16 %v429, %v427
  %v438 = vpack.c.b16 %v430, %v428
  %v448 = vsel %vm341, %v394, 0
  %450 = vmatprep.subr.bf16.mxu0 %v432
  %451 = vmatpush1.bf16.msra.mxu0 %v431
  %452 = vmatprep.subr.bf16.mxu0 %v434
  %453 = vmatpush1.bf16.msra.mxu0 %v433
  %454 = vmatprep.subr.bf16.mxu0 %v436
  %455 = vmatpush1.bf16.msra.mxu0 %v435
  %456 = vmatprep.subr.bf16.mxu0 %v438
  %457 = vmatpush1.bf16.msra.mxu0 %v437
  %458 = vmatprep.subr.bf16.mxu0 0
  %459 = vmatpush1.bf16.msra.mxu0 0
  %460 = vmatprep.subr.bf16.mxu0 0
  %461 = vmatpush1.bf16.msra.mxu0 0
  %462 = vmatprep.subr.bf16.mxu0 0
  %463 = vmatpush1.bf16.msra.mxu0 0
  %464 = vmatprep.subr.bf16.mxu0 0
  %465 = vmatpush1.bf16.msra.mxu0 0
  %466 = vmatprep.subr.bf16.mxu0 0
  %467 = vmatpush1.bf16.msra.mxu0 0
  %468 = vmatprep.subr.bf16.mxu0 0
  %469 = vmatpush1.bf16.msra.mxu0 0
  %470 = vmatprep.subr.bf16.mxu0 0
  %471 = vmatpush1.bf16.msra.mxu0 0
  %472 = vmatprep.subr.bf16.mxu0 0
  %473 = vmatpush1.bf16.msra.mxu0 0
  %474 = vmatprep.subr.bf16.mxu0 0
  %475 = vmatpush1.bf16.msra.mxu0 0
  %476 = vmatprep.subr.bf16.mxu0 0
  %477 = vmatpush1.bf16.msra.mxu0 0
  %478 = vmatprep.subr.bf16.mxu0 0
  %479 = vmatpush1.bf16.msra.mxu0 0
  %480 = vmatprep.subr.bf16.mxu0 0
  %481 = vmatpush1.bf16.msra.mxu0 0
  %482 = vmatprep.mubr.bf16.mxu0 0
  %483 = vmatmul.mubr.bf16.gmra.mrb[0].mxu0 %v448
  %v484 = vpop.f32.mrb[0].mxu0
  %v485 = vadd.f32 %v400, %v484
  %v486 = vpop.f32.mrb[0].mxu0
  %v487 = vadd.f32 %v404, %v486
  %v488 = vpop.f32.mrb[0].mxu0
  %v489 = vpop.f32.mrb[0].mxu0
  %490 = vdwg.mxu0
  %493 = vrot.lane.b32.xlu0 %v485, 4
  %v494 = vpop.permute.xlu0 %493
  %495 = vrot.lane.b32.xlu0 %v487, 4
  %v496 = vpop.permute.xlu0 %495
  %vm497 = vcmask 31744
  %v498 = vsel %vm497, %v494, %v496
  %v500 = vsel %vm497, %v224, %v494
  %v502 = vcombine.low %v500, %v498
  %v504 = vunpack.c.l.s4 1983009808
  %v505 = vunpack.c.0.s8 %v504
  %v506 = vlaneseq
  %v507 = vshrl.u32 %v506, 7
  %v508 = vsub.s32 %v505, %v507
  %v509 = vrot.slane %v502, %v508
  %vm511 = vcmask 1041408
  %vm512 = vcmask 60418
  %vm513 = vmor %vm512, %vm511
  %514 = vst.msk [vmem:[%s14] sm:$0xf] %vm513, %v509
  // Predicated region
  $region58: #{fwd.5} parent=0 // pred_check
    _
  $region59: #{fwd.5} parent=0 // pred_check_branch
    %516 = sbr.rel (0) target = $region61
  $region60: #{fwd.5} parent=0 // pred_region
    _
  $region61: #{fwd.5} parent=0 // pred_fallthru
    _
  // Predicated region
  $region62: #{fwd.5} parent=0 // pred_check
    _
  $region63: #{fwd.5} parent=0 // pred_check_branch
    %518 = sbr.rel (0) target = $region65
  $region64: #{fwd.5} parent=0 // pred_region
    _
  $region65: #{fwd.5} parent=0 // pred_fallthru
    _

// kernel: fwd.4
$region0: #{fwd.4}
  #allocation0 [shape = 'u32[]', space=smem, size = 0x4, offset = 0x4, fixed_abs, tag = 'smem constant byte address 0x4 - core index']
  #allocation1 [shape = 'u32[144,128]{1,0:T(1,128)}', space=vmem, size = 0x12000, scoped, tag = 'internal scratch']
  %s0 = inlined_call_operand.vmem [shape: f32[60,32], index: 0, kind: input, shape index: {}]
  %s1 = inlined_call_operand.vmem [shape: f32[60,4], index: 1, kind: input, shape index: {}]
  %s2 = inlined_call_operand.vmem [shape: f32[240,12], index: 2, kind: input, shape index: {}]
  %s3 = inlined_call_operand.vmem [shape: s32[240,1], index: 3, kind: input, shape index: {}]
  %s4 = inlined_call_operand.vmem [shape: s32[1,240], index: 4, kind: input, shape index: {}]
  %s5 = inlined_call_operand.vmem [shape: s32[1,60], index: 5, kind: input, shape index: {}]
  %s6 = inlined_call_operand.vmem [shape: s32[1,12], index: 6, kind: input, shape index: {}]
  %s7 = inlined_call_operand.vmem [shape: f32[2,16], index: 7, kind: input, shape index: {}, may-alias: {7,23}]
  %s8 = inlined_call_operand.vmem [shape: bf16[4,32], index: 8, kind: input, shape index: {}]
  %s9 = inlined_call_operand.vmem [shape: bf16[12,128], index: 9, kind: input, shape index: {}]
  %s10 = inlined_call_operand.vmem [shape: bf16[32,64], index: 10, kind: input, shape index: {}]
  %s11 = inlined_call_operand.vmem [shape: f32[1,64], index: 11, kind: input, shape index: {}]
  %s12 = inlined_call_operand.vmem [shape: bf16[32,128], index: 12, kind: input, shape index: {}]
  %s13 = inlined_call_operand.vmem [shape: bf16[128,32], index: 13, kind: input, shape index: {}]
  %s14 = inlined_call_operand.vmem [shape: bf16[32,32], index: 14, kind: input, shape index: {}]
  %s15 = inlined_call_operand.vmem [shape: f32[1,32], index: 15, kind: input, shape index: {}]
  %s16 = inlined_call_operand.vmem [shape: bf16[4,32], index: 16, kind: input, shape index: {}]
  %s17 = inlined_call_operand.vmem [shape: bf16[32,32], index: 17, kind: input, shape index: {}]
  %s18 = inlined_call_operand.vmem [shape: f32[1,32], index: 18, kind: input, shape index: {}]
  %s19 = inlined_call_operand.vmem [shape: bf16[32,32], index: 19, kind: input, shape index: {}]
  %s20 = inlined_call_operand.vmem [shape: f32[1,32], index: 20, kind: input, shape index: {}]
  %s21 = inlined_call_operand.vmem [shape: bf16[32,16], index: 21, kind: input, shape index: {}]
  %s22 = inlined_call_operand.hbm [shape: f32[60,32], index: 22, kind: output, shape index: {0}]
  %s23 = inlined_call_operand.vmem [shape: f32[2,16], index: 23, kind: output, shape index: {1}, may-alias: {7,23}]
  %24 = xla_tuple %s22, %s23
  %s25 = sld [smem:[#allocation0]]
  $region106: #{fwd.4} parent=0
    _
  %s27 = ssub.s32 1, %s25
  %s28 = scalar_select 0, %s27, %s25
  $region1: #{fwd.4} parent=0
    #allocation2 [shape = 'u8[32768]{0}', space=vmem, size = 0x8000, scoped, tag = 'output window, operand 0, single buffered']
    #allocation3 [shape = 's32[1]{0}', space=sflag, size = 0x4, scoped, tag = 'scoped memory for fwd.4']
    %29 = vsyncpa [#allocation3], 0
    // Predicated region
    $region2: #{fwd.4} parent=1 // pred_check
      _
    $region3: #{fwd.4} parent=1 // pred_check_branch
      %31 = sbr.rel (0) target = $region5
    $region4: #{fwd.4} parent=1 // pred_region
      _
    $region5: #{fwd.4} parent=1 // pred_fallthru
      _
    // Predicated region
    $region6: #{fwd.4} parent=1 // pred_check
      _
    $region7: #{fwd.4} parent=1 // pred_check_branch
      %33 = sbr.rel (0) target = $region9
    $region8: #{fwd.4} parent=1 // pred_region
      _
    $region9: #{fwd.4} parent=1 // pred_fallthru
      _
    // Predicated region
    $region10: #{fwd.4} parent=1 // pred_check
      _
    $region11: #{fwd.4} parent=1 // pred_check_branch
      %35 = sbr.rel (0) target = $region13
    $region12: #{fwd.4} parent=1 // pred_region
      _
    $region13: #{fwd.4} parent=1 // pred_fallthru
      _
    // Predicated region
    $region14: #{fwd.4} parent=1 // pred_check
      _
    $region15: #{fwd.4} parent=1 // pred_check_branch
      %37 = sbr.rel (0) target = $region17
    $region16: #{fwd.4} parent=1 // pred_region
      _
    $region17: #{fwd.4} parent=1 // pred_fallthru
      _
    // Predicated region
    $region18: #{fwd.4} parent=1 // pred_check
      _
    $region19: #{fwd.4} parent=1 // pred_check_branch
      %39 = sbr.rel (0) target = $region21
    $region20: #{fwd.4} parent=1 // pred_region
      _
    $region21: #{fwd.4} parent=1 // pred_fallthru
      _
    // Predicated region
    $region22: #{fwd.4} parent=1 // pred_check
      _
    $region23: #{fwd.4} parent=1 // pred_check_branch
      %41 = sbr.rel (0) target = $region25
    $region24: #{fwd.4} parent=1 // pred_region
      _
    $region25: #{fwd.4} parent=1 // pred_fallthru
      _
    // Predicated region
    $region26: #{fwd.4} parent=1 // pred_check
      _
    $region27: #{fwd.4} parent=1 // pred_check_branch
      %43 = sbr.rel (0) target = $region29
    $region28: #{fwd.4} parent=1 // pred_region
      _
    $region29: #{fwd.4} parent=1 // pred_fallthru
      _
    // Predicated region
    $region30: #{fwd.4} parent=1 // pred_check
      _
    $region31: #{fwd.4} parent=1 // pred_check_branch
      %45 = sbr.rel (0) target = $region33
    $region32: #{fwd.4} parent=1 // pred_region
      _
    $region33: #{fwd.4} parent=1 // pred_fallthru
      _
    // Predicated region
    $region34: #{fwd.4} parent=1 // pred_check
      _
    $region35: #{fwd.4} parent=1 // pred_check_branch
      %47 = sbr.rel (0) target = $region37
    $region36: #{fwd.4} parent=1 // pred_region
      _
    $region37: #{fwd.4} parent=1 // pred_fallthru
      _
    // Predicated region
    $region38: #{fwd.4} parent=1 // pred_check
      _
    $region39: #{fwd.4} parent=1 // pred_check_branch
      %49 = sbr.rel (0) target = $region41
    $region40: #{fwd.4} parent=1 // pred_region
      _
    $region41: #{fwd.4} parent=1 // pred_fallthru
      _
    // Predicated region
    $region42: #{fwd.4} parent=1 // pred_check
      _
    $region43: #{fwd.4} parent=1 // pred_check_branch
      %51 = sbr.rel (0) target = $region45
    $region44: #{fwd.4} parent=1 // pred_region
      _
    $region45: #{fwd.4} parent=1 // pred_fallthru
      _
    // Predicated region
    $region46: #{fwd.4} parent=1 // pred_check
      _
    $region47: #{fwd.4} parent=1 // pred_check_branch
      %53 = sbr.rel (0) target = $region49
    $region48: #{fwd.4} parent=1 // pred_region
      _
    $region49: #{fwd.4} parent=1 // pred_fallthru
      _
    // Predicated region
    $region50: #{fwd.4} parent=1 // pred_check
      _
    $region51: #{fwd.4} parent=1 // pred_check_branch
      %55 = sbr.rel (0) target = $region53
    $region52: #{fwd.4} parent=1 // pred_region
      _
    $region53: #{fwd.4} parent=1 // pred_fallthru
      _
    // Predicated region
    $region54: #{fwd.4} parent=1 // pred_check
      _
    $region55: #{fwd.4} parent=1 // pred_check_branch
      %57 = sbr.rel (0) target = $region57
    $region56: #{fwd.4} parent=1 // pred_region
      _
    $region57: #{fwd.4} parent=1 // pred_fallthru
      _
    // Predicated region
    $region58: #{fwd.4} parent=1 // pred_check
      _
    $region59: #{fwd.4} parent=1 // pred_check_branch
      %59 = sbr.rel (0) target = $region61
    $region60: #{fwd.4} parent=1 // pred_region
      _
    $region61: #{fwd.4} parent=1 // pred_fallthru
      _
    // Predicated region
    $region62: #{fwd.4} parent=1 // pred_check
      _
    $region63: #{fwd.4} parent=1 // pred_check_branch
      %61 = sbr.rel (0) target = $region65
    $region64: #{fwd.4} parent=1 // pred_region
      _
    $region65: #{fwd.4} parent=1 // pred_fallthru
      _
    // Predicated region
    $region66: #{fwd.4} parent=1 // pred_check
      _
    $region67: #{fwd.4} parent=1 // pred_check_branch
      %63 = sbr.rel (0) target = $region69
    $region68: #{fwd.4} parent=1 // pred_region
      _
    $region69: #{fwd.4} parent=1 // pred_fallthru
      _
    // Predicated region
    $region70: #{fwd.4} parent=1 // pred_check
      _
    $region71: #{fwd.4} parent=1 // pred_check_branch
      %65 = sbr.rel (0) target = $region73
    $region72: #{fwd.4} parent=1 // pred_region
      _
    $region73: #{fwd.4} parent=1 // pred_fallthru
      _
    // Predicated region
    $region74: #{fwd.4} parent=1 // pred_check
      _
    $region75: #{fwd.4} parent=1 // pred_check_branch
      %67 = sbr.rel (0) target = $region77
    $region76: #{fwd.4} parent=1 // pred_region
      _
    $region77: #{fwd.4} parent=1 // pred_fallthru
      _
    // Predicated region
    $region78: #{fwd.4} parent=1 // pred_check
      _
    $region79: #{fwd.4} parent=1 // pred_check_branch
      %69 = sbr.rel (0) target = $region81
    $region80: #{fwd.4} parent=1 // pred_region
      _
    $region81: #{fwd.4} parent=1 // pred_fallthru
      _
    // Predicated region
    $region82: #{fwd.4} parent=1 // pred_check
      _
    $region83: #{fwd.4} parent=1 // pred_check_branch
      %71 = sbr.rel (0) target = $region85
    $region84: #{fwd.4} parent=1 // pred_region
      _
    $region85: #{fwd.4} parent=1 // pred_fallthru
      _
    // Predicated region
    $region86: #{fwd.4} parent=1 // pred_check
      _
    $region87: #{fwd.4} parent=1 // pred_check_branch
      %73 = sbr.rel (0) target = $region89
    $region88: #{fwd.4} parent=1 // pred_region
      _
    $region89: #{fwd.4} parent=1 // pred_fallthru
      _
    %v75 = vld [vmem:[%s0] sm:$0xff]
    %v76 = vld [vmem:[%s0 + $0x8] sm:$0xff]
    %v77 = vld [vmem:[%s0 + $0x10] sm:$0xff]
    %v78 = vld [vmem:[%s0 + $0x18] sm:$0xff]
    %v79 = vld [vmem:[%s0 + $0x20] sm:$0xff]
    %v80 = vld [vmem:[%s0 + $0x28] sm:$0xff]
    %v81 = vld [vmem:[%s0 + $0x30] sm:$0xff]
    %v82 = vld [vmem:[%s0 + $0x38] sm:$0xf]
    %v83 = vld [vmem:[%s1] sm:$0xff]
    %v84 = vld [vmem:[%s1 + $0x8] sm:$0xff]
    %v85 = vld [vmem:[%s1 + $0x10] sm:$0xff]
    %v86 = vld [vmem:[%s1 + $0x18] sm:$0xff]
    %v87 = vld [vmem:[%s1 + $0x20] sm:$0xff]
    %v88 = vld [vmem:[%s1 + $0x28] sm:$0xff]
    %v89 = vld [vmem:[%s1 + $0x30] sm:$0xff]
    %v90 = vld [vmem:[%s1 + $0x38] sm:$0xf]
    %v91 = vld [vmem:[%s8] sm:$0x3]
    %v92 = vpack.c.bf16 %v84, %v83
    %v93 = vpack.c.bf16 %v86, %v85
    %v94 = vpack.c.bf16 %v88, %v87
    %v95 = vpack.c.bf16 %v90, %v89
    %vm96 = vcmask 31744
    %v98 = vsel %vm96, %v92, 0
    %v101 = vsel %vm96, %v93, 0
    %v104 = vsel %vm96, %v94, 0
    %v107 = vsel %vm96, %v95, 0
    %vm109 = vcmask 1041408
    %v111 = vsel %vm109, %v91, 0
    %113 = vmatprep.subr.bf16.mxu0 0
    %114 = vmatpush1.bf16.msra.mxu0 %v111
    %115 = vmatprep.subr.bf16.mxu0 0
    %116 = vmatpush1.bf16.msra.mxu0 0
    %117 = vmatprep.subr.bf16.mxu0 0
    %118 = vmatpush1.bf16.msra.mxu0 0
    %119 = vmatprep.subr.bf16.mxu0 0
    %120 = vmatpush1.bf16.msra.mxu0 0
    %121 = vmatprep.subr.bf16.mxu0 0
    %122 = vmatpush1.bf16.msra.mxu0 0
    %123 = vmatprep.subr.bf16.mxu0 0
    %124 = vmatpush1.bf16.msra.mxu0 0
    %125 = vmatprep.subr.bf16.mxu0 0
    %126 = vmatpush1.bf16.msra.mxu0 0
    %127 = vmatprep.subr.bf16.mxu0 0
    %128 = vmatpush1.bf16.msra.mxu0 0
    %129 = vmatprep.subr.bf16.mxu0 0
    %130 = vmatpush1.bf16.msra.mxu0 0
    %131 = vmatprep.subr.bf16.mxu0 0
    %132 = vmatpush1.bf16.msra.mxu0 0
    %133 = vmatprep.subr.bf16.mxu0 0
    %134 = vmatpush1.bf16.msra.mxu0 0
    %135 = vmatprep.subr.bf16.mxu0 0
    %136 = vmatpush1.bf16.msra.mxu0 0
    %137 = vmatprep.subr.bf16.mxu0 0
    %138 = vmatpush1.bf16.msra.mxu0 0
    %139 = vmatprep.subr.bf16.mxu0 0
    %140 = vmatpush1.bf16.msra.mxu0 0
    %141 = vmatprep.subr.bf16.mxu0 0
    %142 = vmatpush1.bf16.msra.mxu0 0
    %143 = vmatprep.subr.bf16.mxu0 0
    %144 = vmatpush1.bf16.msra.mxu0 0
    %145 = vmatprep.mubr.bf16.mxu0 0
    %146 = vmatmul.mubr.bf16.gmra.mrb[0].mxu0 %v98
    %v147 = vpop.f32.mrb[0].mxu0
    %v148 = vadd.f32 0.0, %v147
    %v149 = vpop.f32.mrb[0].mxu0
    %v150 = vpop.f32.mrb[0].mxu0
    %v151 = vadd.f32 0.0, %v150
    %v152 = vpop.f32.mrb[0].mxu0
    %153 = vmatprep.mubr.bf16.mxu0 0
    %154 = vmatmul.mubr.bf16.gmra.mrb[0].mxu0 %v101
    %v155 = vpop.f32.mrb[0].mxu0
    %v156 = vadd.f32 0.0, %v155
    %v157 = vpop.f32.mrb[0].mxu0
    %v158 = vpop.f32.mrb[0].mxu0
    %v159 = vadd.f32 0.0, %v158
    %v160 = vpop.f32.mrb[0].mxu0
    %161 = vmatprep.mubr.bf16.mxu0 0
    %162 = vmatmul.mubr.bf16.gmra.mrb[0].mxu0 %v104
    %v163 = vpop.f32.mrb[0].mxu0
    %v164 = vadd.f32 0.0, %v163
    %v165 = vpop.f32.mrb[0].mxu0
    %v166 = vpop.f32.mrb[0].mxu0
    %v167 = vadd.f32 0.0, %v166
    %v168 = vpop.f32.mrb[0].mxu0
    %169 = vmatprep.mubr.bf16.mxu0 0
    %170 = vmatmul.mubr.bf16.gmra.mrb[0].mxu0 %v107
    %v171 = vpop.f32.mrb[0].mxu0
    %v172 = vadd.f32 0.0, %v171
    %v173 = vpop.f32.mrb[0].mxu0
    %v174 = vpop.f32.mrb[0].mxu0
    %v175 = vadd.f32 0.0, %v174
    %v176 = vpop.f32.mrb[0].mxu0
    %177 = vdwg.mxu0
    %v178 = vld [vmem:[%s10] sm:$0xf]
    %v179 = vld [vmem:[%s10 + $0x4] sm:$0xf]
    %v180 = vld [vmem:[%s10 + $0x8] sm:$0xf]
    %v181 = vld [vmem:[%s10 + $0xc] sm:$0xf]
    %v182 = vpack.c.bf16 %v76, %v75
    %v183 = vpack.c.bf16 %v78, %v77
    %v184 = vpack.c.bf16 %v80, %v79
    %v185 = vpack.c.bf16 %v82, %v81
    %v186 = vld [vmem:[%s11] sm:$0x1]
    %v188 = vlaneseq
    %v189 = vshrl.u32 %v188, 7
    %v190 = vsub.s32 0, %v189
    %v191 = vrot.slane %v186, %v190
    %v197 = vunpack.c.l.b16 %v178
    %v198 = vunpack.c.l.b16 %v179
    %v199 = vunpack.c.l.b16 %v180
    %v200 = vunpack.c.l.b16 %v181
    %v201 = vpack.c.b16 %v198, %v197
    %v202 = vpack.c.b16 %v200, %v199
    %vm205 = vcmask 261120
    %v207 = vsel %vm205, %v182, 0
    %v210 = vsel %vm205, %v183, 0
    %v213 = vsel %vm205, %v184, 0
    %v216 = vsel %vm205, %v185, 0
    %218 = vmatprep.subr.bf16.mxu0 0
    %219 = vmatpush1.bf16.msra.mxu0 %v201
    %220 = vmatprep.subr.bf16.mxu0 0
    %221 = vmatpush1.bf16.msra.mxu0 %v202
    %222 = vmatprep.subr.bf16.mxu0 0
    %223 = vmatpush1.bf16.msra.mxu0 0
    %224 = vmatprep.subr.bf16.mxu0 0
    %225 = vmatpush1.bf16.msra.mxu0 0
    %226 = vmatprep.subr.bf16.mxu0 0
    %227 = vmatpush1.bf16.msra.mxu0 0
    %228 = vmatprep.subr.bf16.mxu0 0
    %229 = vmatpush1.bf16.msra.mxu0 0
    %230 = vmatprep.subr.bf16.mxu0 0
    %231 = vmatpush1.bf16.msra.mxu0 0
    %232 = vmatprep.subr.bf16.mxu0 0
    %233 = vmatpush1.bf16.msra.mxu0 0
    %234 = vmatprep.subr.bf16.mxu0 0
    %235 = vmatpush1.bf16.msra.mxu0 0
    %236 = vmatprep.subr.bf16.mxu0 0
    %237 = vmatpush1.bf16.msra.mxu0 0
    %238 = vmatprep.subr.bf16.mxu0 0
    %239 = vmatpush1.bf16.msra.mxu0 0
    %240 = vmatprep.subr.bf16.mxu0 0
    %241 = vmatpush1.bf16.msra.mxu0 0
    %242 = vmatprep.subr.bf16.mxu0 0
    %243 = vmatpush1.bf16.msra.mxu0 0
    %244 = vmatprep.subr.bf16.mxu0 0
    %245 = vmatpush1.bf16.msra.mxu0 0
    %246 = vmatprep.subr.bf16.mxu0 0
    %247 = vmatpush1.bf16.msra.mxu0 0
    %248 = vmatprep.subr.bf16.mxu0 0
    %249 = vmatpush1.bf16.msra.mxu0 0
    %250 = vmatprep.mubr.bf16.mxu0 0
    %251 = vmatmul.mubr.bf16.gmra.mrb[0].mxu0 %v207
    %v252 = vpop.f32.mrb[0].mxu0
    %v253 = vadd.f32 %v191, %v252
    %v254 = vpop.f32.mrb[0].mxu0
    %v255 = vpop.f32.mrb[0].mxu0
    %v256 = vadd.f32 %v191, %v255
    %v257 = vpop.f32.mrb[0].mxu0
    %258 = vmatprep.mubr.bf16.mxu0 0
    %259 = vmatmul.mubr.bf16.gmra.mrb[0].mxu0 %v210
    %v260 = vpop.f32.mrb[0].mxu0
    %v261 = vadd.f32 %v191, %v260
    %v262 = vpop.f32.mrb[0].mxu0
    %v263 = vpop.f32.mrb[0].mxu0
    %v264 = vadd.f32 %v191, %v263
    %v265 = vpop.f32.mrb[0].mxu0
    %266 = vmatprep.mubr.bf16.mxu0 0
    %267 = vmatmul.mubr.bf16.gmra.mrb[0].mxu0 %v213
    %v268 = vpop.f32.mrb[0].mxu0
    %v269 = vadd.f32 %v191, %v268
    %v270 = vpop.f32.mrb[0].mxu0
    %v271 = vpop.f32.mrb[0].mxu0
    %v272 = vadd.f32 %v191, %v271
    %v273 = vpop.f32.mrb[0].mxu0
    %274 = vmatprep.mubr.bf16.mxu0 0
    %275 = vmatmul.mubr.bf16.gmra.mrb[0].mxu0 %v216
    %v276 = vpop.f32.mrb[0].mxu0
    %v277 = vadd.f32 %v191, %v276
    %v278 = vpop.f32.mrb[0].mxu0
    %v279 = vpop.f32.mrb[0].mxu0
    %v280 = vadd.f32 %v191, %v279
    %v281 = vpop.f32.mrb[0].mxu0
    %282 = vdwg.mxu0
    %v283 = vxor.u32 %v253, 2147483648
    %v284 = vxor.u32 %v256, 2147483648
    %v285 = vxor.u32 %v261, 2147483648
    %v286 = vxor.u32 %v264, 2147483648
    %v287 = vxor.u32 %v269, 2147483648
    %v288 = vxor.u32 %v272, 2147483648
    %v289 = vxor.u32 %v277, 2147483648
    %v290 = vxor.u32 %v280, 2147483648
    %v291 = vmul.f32 %v283, 1.442695
    %v292 = vpow.pop %v291
    %v293 = vmul.f32 %v284, 1.442695
    %v294 = vpow.pop %v293
    %v295 = vmul.f32 %v285, 1.442695
    %v296 = vpow.pop %v295
    %v297 = vmul.f32 %v286, 1.442695
    %v298 = vpow.pop %v297
    %v299 = vmul.f32 %v287, 1.442695
    %v300 = vpow.pop %v299
    %v301 = vmul.f32 %v288, 1.442695
    %v302 = vpow.pop %v301
    %v303 = vmul.f32 %v289, 1.442695
    %v304 = vpow.pop %v303
    %v305 = vmul.f32 %v290, 1.442695
    %v306 = vpow.pop %v305
    %v307 = vadd.f32 %v292, 1.0
    %v308 = vadd.f32 %v294, 1.0
    %v309 = vadd.f32 %v296, 1.0
    %v310 = vadd.f32 %v298, 1.0
    %v311 = vadd.f32 %v300, 1.0
    %v312 = vadd.f32 %v302, 1.0
    %v313 = vadd.f32 %v304, 1.0
    %v314 = vadd.f32 %v306, 1.0
    %v315 = vrcp.pop %v307
    %v316 = vmul.f32 1.0, %v315
    %v317 = vrcp.pop %v308
    %v318 = vmul.f32 1.0, %v317
    %v319 = vrcp.pop %v309
    %v320 = vmul.f32 1.0, %v319
    %v321 = vrcp.pop %v310
    %v322 = vmul.f32 1.0, %v321
    %v323 = vrcp.pop %v311
    %v324 = vmul.f32 1.0, %v323
    %v325 = vrcp.pop %v312
    %v326 = vmul.f32 1.0, %v325
    %v327 = vrcp.pop %v313
    %v328 = vmul.f32 1.0, %v327
    %v329 = vrcp.pop %v314
    %v330 = vmul.f32 1.0, %v329
    %v331 = vmul.f32 %v253, %v316
    %v332 = vmul.f32 %v256, %v318
    %v333 = vmul.f32 %v261, %v320
    %v334 = vmul.f32 %v264, %v322
    %v335 = vmul.f32 %v269, %v324
    %v336 = vmul.f32 %v272, %v326
    %v337 = vmul.f32 %v277, %v328
    %v338 = vmul.f32 %v280, %v330
    %347 = vrot.lane.b32.xlu0 %v148, 32
    %v348 = vpop.permute.xlu0 %347
    %349 = vrot.lane.b32.xlu0 %v151, 32
    %v350 = vpop.permute.xlu0 %349
    %351 = vrot.lane.b32.xlu0 %v156, 32
    %v352 = vpop.permute.xlu0 %351
    %353 = vrot.lane.b32.xlu0 %v159, 32
    %v354 = vpop.permute.xlu0 %353
    %355 = vrot.lane.b32.xlu0 %v164, 32
    %v356 = vpop.permute.xlu0 %355
    %357 = vrot.lane.b32.xlu0 %v167, 32
    %v358 = vpop.permute.xlu0 %357
    %359 = vrot.lane.b32.xlu0 %v172, 32
    %v360 = vpop.permute.xlu0 %359
    %361 = vrot.lane.b32.xlu0 %v175, 32
    %v362 = vpop.permute.xlu0 %361
    %v371 = vmul.f32 %v331, %v348
    %v372 = vmul.f32 %v332, %v350
    %v373 = vmul.f32 %v333, %v352
    %v374 = vmul.f32 %v334, %v354
    %v375 = vmul.f32 %v335, %v356
    %v376 = vmul.f32 %v336, %v358
    %v377 = vmul.f32 %v337, %v360
    %v378 = vmul.f32 %v338, %v362
    %v379 = vlaneseq
    %v380 = vand.u32 %v379, 127
    %v381 = vld [vmem:[%s3] sm:$0xff]
    %v382 = vld [vmem:[%s3 + $0x8] sm:$0xff]
    %v383 = vld [vmem:[%s3 + $0x10] sm:$0xff]
    %v384 = vld [vmem:[%s3 + $0x18] sm:$0xff]
    %v385 = vld [vmem:[%s3 + $0x20] sm:$0xff]
    %v386 = vld [vmem:[%s3 + $0x28] sm:$0xff]
    %v387 = vld [vmem:[%s3 + $0x30] sm:$0xff]
    %v388 = vld [vmem:[%s3 + $0x38] sm:$0xff]
    %v389 = vld [vmem:[%s3 + $0x40] sm:$0xff]
    %v390 = vld [vmem:[%s3 + $0x48] sm:$0xff]
    %v391 = vld [vmem:[%s3 + $0x50] sm:$0xff]
    %v392 = vld [vmem:[%s3 + $0x58] sm:$0xff]
    %v393 = vld [vmem:[%s3 + $0x60] sm:$0xff]
    %v394 = vld [vmem:[%s3 + $0x68] sm:$0xff]
    %v395 = vld [vmem:[%s3 + $0x70] sm:$0xff]
    %v396 = vld [vmem:[%s3 + $0x78] sm:$0xff]
    %v397 = vld [vmem:[%s3 + $0x80] sm:$0xff]
    %v398 = vld [vmem:[%s3 + $0x88] sm:$0xff]
    %v399 = vld [vmem:[%s3 + $0x90] sm:$0xff]
    %v400 = vld [vmem:[%s3 + $0x98] sm:$0xff]
    %v401 = vld [vmem:[%s3 + $0xa0] sm:$0xff]
    %v402 = vld [vmem:[%s3 + $0xa8] sm:$0xff]
    %v403 = vld [vmem:[%s3 + $0xb0] sm:$0xff]
    %v404 = vld [vmem:[%s3 + $0xb8] sm:$0xff]
    %v405 = vld [vmem:[%s3 + $0xc0] sm:$0xff]
    %v406 = vld [vmem:[%s3 + $0xc8] sm:$0xff]
    %v407 = vld [vmem:[%s3 + $0xd0] sm:$0xff]
    %v408 = vld [vmem:[%s3 + $0xd8] sm:$0xff]
    %v409 = vld [vmem:[%s3 + $0xe0] sm:$0xff]
    %v410 = vld [vmem:[%s3 + $0xe8] sm:$0xff]
    %411 = vset.pattern.permute.xlu0 0
    %412 = vperm.xlu0 %411, %v381
    %v413 = vpop.permute.xlu0 %412
    %414 = vset.pattern.permute.xlu0 0
    %415 = vperm.xlu0 %414, %v382
    %v416 = vpop.permute.xlu0 %415
    %417 = vset.pattern.permute.xlu0 0
    %418 = vperm.xlu0 %417, %v383
    %v419 = vpop.permute.xlu0 %418
    %420 = vset.pattern.permute.xlu0 0
    %421 = vperm.xlu0 %420, %v384
    %v422 = vpop.permute.xlu0 %421
    %423 = vset.pattern.permute.xlu0 0
    %424 = vperm.xlu0 %423, %v385
    %v425 = vpop.permute.xlu0 %424
    %426 = vset.pattern.permute.xlu0 0
    %427 = vperm.xlu0 %426, %v386
    %v428 = vpop.permute.xlu0 %427
    %429 = vset.pattern.permute.xlu0 0
    %430 = vperm.xlu0 %429, %v387
    %v431 = vpop.permute.xlu0 %430
    %432 = vset.pattern.permute.xlu0 0
    %433 = vperm.xlu0 %432, %v388
    %v434 = vpop.permute.xlu0 %433
    %435 = vset.pattern.permute.xlu0 0
    %436 = vperm.xlu0 %435, %v389
    %v437 = vpop.permute.xlu0 %436
    %438 = vset.pattern.permute.xlu0 0
    %439 = vperm.xlu0 %438, %v390
    %v440 = vpop.permute.xlu0 %439
    %441 = vset.pattern.permute.xlu0 0
    %442 = vperm.xlu0 %441, %v391
    %v443 = vpop.permute.xlu0 %442
    %444 = vset.pattern.permute.xlu0 0
    %445 = vperm.xlu0 %444, %v392
    %v446 = vpop.permute.xlu0 %445
    %447 = vset.pattern.permute.xlu0 0
    %448 = vperm.xlu0 %447, %v393
    %v449 = vpop.permute.xlu0 %448
    %450 = vset.pattern.permute.xlu0 0
    %451 = vperm.xlu0 %450, %v394
    %v452 = vpop.permute.xlu0 %451
    %453 = vset.pattern.permute.xlu0 0
    %454 = vperm.xlu0 %453, %v395
    %v455 = vpop.permute.xlu0 %454
    %456 = vset.pattern.permute.xlu0 0
    %457 = vperm.xlu0 %456, %v396
    %v458 = vpop.permute.xlu0 %457
    %459 = vset.pattern.permute.xlu0 0
    %460 = vperm.xlu0 %459, %v397
    %v461 = vpop.permute.xlu0 %460
    %462 = vset.pattern.permute.xlu0 0
    %463 = vperm.xlu0 %462, %v398
    %v464 = vpop.permute.xlu0 %463
    %465 = vset.pattern.permute.xlu0 0
    %466 = vperm.xlu0 %465, %v399
    %v467 = vpop.permute.xlu0 %466
    %468 = vset.pattern.permute.xlu0 0
    %469 = vperm.xlu0 %468, %v400
    %v470 = vpop.permute.xlu0 %469
    %471 = vset.pattern.permute.xlu0 0
    %472 = vperm.xlu0 %471, %v401
    %v473 = vpop.permute.xlu0 %472
    %474 = vset.pattern.permute.xlu0 0
    %475 = vperm.xlu0 %474, %v402
    %v476 = vpop.permute.xlu0 %475
    %477 = vset.pattern.permute.xlu0 0
    %478 = vperm.xlu0 %477, %v403
    %v479 = vpop.permute.xlu0 %478
    %480 = vset.pattern.permute.xlu0 0
    %481 = vperm.xlu0 %480, %v404
    %v482 = vpop.permute.xlu0 %481
    %483 = vset.pattern.permute.xlu0 0
    %484 = vperm.xlu0 %483, %v405
    %v485 = vpop.permute.xlu0 %484
    %486 = vset.pattern.permute.xlu0 0
    %487 = vperm.xlu0 %486, %v406
    %v488 = vpop.permute.xlu0 %487
    %489 = vset.pattern.permute.xlu0 0
    %490 = vperm.xlu0 %489, %v407
    %v491 = vpop.permute.xlu0 %490
    %492 = vset.pattern.permute.xlu0 0
    %493 = vperm.xlu0 %492, %v408
    %v494 = vpop.permute.xlu0 %493
    %495 = vset.pattern.permute.xlu0 0
    %496 = vperm.xlu0 %495, %v409
    %v497 = vpop.permute.xlu0 %496
    %498 = vset.pattern.permute.xlu0 0
    %499 = vperm.xlu0 %498, %v410
    %v500 = vpop.permute.xlu0 %499
    %vm501 = vcmp.eq.s32.totalorder %v380, %v413
    %vm502 = vcmp.eq.s32.totalorder %v380, %v416
    %vm503 = vcmp.eq.s32.totalorder %v380, %v419
    %vm504 = vcmp.eq.s32.totalorder %v380, %v422
    %vm505 = vcmp.eq.s32.totalorder %v380, %v425
    %vm506 = vcmp.eq.s32.totalorder %v380, %v428
    %vm507 = vcmp.eq.s32.totalorder %v380, %v431
    %vm508 = vcmp.eq.s32.totalorder %v380, %v434
    %vm509 = vcmp.eq.s32.totalorder %v380, %v437
    %vm510 = vcmp.eq.s32.totalorder %v380, %v440
    %vm511 = vcmp.eq.s32.totalorder %v380, %v443
    %vm512 = vcmp.eq.s32.totalorder %v380, %v446
    %vm513 = vcmp.eq.s32.totalorder %v380, %v449
    %vm514 = vcmp.eq.s32.totalorder %v380, %v452
    %vm515 = vcmp.eq.s32.totalorder %v380, %v455
    %vm516 = vcmp.eq.s32.totalorder %v380, %v458
    %vm517 = vcmp.eq.s32.totalorder %v380, %v461
    %vm518 = vcmp.eq.s32.totalorder %v380, %v464
    %vm519 = vcmp.eq.s32.totalorder %v380, %v467
    %vm520 = vcmp.eq.s32.totalorder %v380, %v470
    %vm521 = vcmp.eq.s32.totalorder %v380, %v473
    %vm522 = vcmp.eq.s32.totalorder %v380, %v476
    %vm523 = vcmp.eq.s32.totalorder %v380, %v479
    %vm524 = vcmp.eq.s32.totalorder %v380, %v482
    %vm525 = vcmp.eq.s32.totalorder %v380, %v485
    %vm526 = vcmp.eq.s32.totalorder %v380, %v488
    %vm527 = vcmp.eq.s32.totalorder %v380, %v491
    %vm528 = vcmp.eq.s32.totalorder %v380, %v494
    %vm529 = vcmp.eq.s32.totalorder %v380, %v497
    %vm530 = vcmp.eq.s32.totalorder %v380, %v500
    %v531 = vsel %vm501, 1, 0
    %v532 = vsel %vm502, 1, 0
    %v533 = vsel %vm503, 1, 0
    %v534 = vsel %vm504, 1, 0
    %v535 = vsel %vm505, 1, 0
    %v536 = vsel %vm506, 1, 0
    %v537 = vsel %vm507, 1, 0
    %v538 = vsel %vm508, 1, 0
    %v539 = vsel %vm509, 1, 0
    %v540 = vsel %vm510, 1, 0
    %v541 = vsel %vm511, 1, 0
    %v542 = vsel %vm512, 1, 0
    %v543 = vsel %vm513, 1, 0
    %v544 = vsel %vm514, 1, 0
    %v545 = vsel %vm515, 1, 0
    %v546 = vsel %vm516, 1, 0
    %v547 = vsel %vm517, 1, 0
    %v548 = vsel %vm518, 1, 0
    %v549 = vsel %vm519, 1, 0
    %v550 = vsel %vm520, 1, 0
    %v551 = vsel %vm521, 1, 0
    %v552 = vsel %vm522, 1, 0
    %v553 = vsel %vm523, 1, 0
    %v554 = vsel %vm524, 1, 0
    %v555 = vsel %vm525, 1, 0
    %v556 = vsel %vm526, 1, 0
    %v557 = vsel %vm527, 1, 0
    %v558 = vsel %vm528, 1, 0
    %v559 = vsel %vm529, 1, 0
    %v560 = vsel %vm530, 1, 0
    %v561 = vcvt.s32.f32 %v531
    %v562 = vcvt.s32.f32 %v532
    %v563 = vcvt.s32.f32 %v533
    %v564 = vcvt.s32.f32 %v534
    %v565 = vcvt.s32.f32 %v535
    %v566 = vcvt.s32.f32 %v536
    %v567 = vcvt.s32.f32 %v537
    %v568 = vcvt.s32.f32 %v538
    %v569 = vcvt.s32.f32 %v539
    %v570 = vcvt.s32.f32 %v540
    %v571 = vcvt.s32.f32 %v541
    %v572 = vcvt.s32.f32 %v542
    %v573 = vcvt.s32.f32 %v543
    %v574 = vcvt.s32.f32 %v544
    %v575 = vcvt.s32.f32 %v545
    %v576 = vcvt.s32.f32 %v546
    %v577 = vcvt.s32.f32 %v547
    %v578 = vcvt.s32.f32 %v548
    %v579 = vcvt.s32.f32 %v549
    %v580 = vcvt.s32.f32 %v550
    %v581 = vcvt.s32.f32 %v551
    %v582 = vcvt.s32.f32 %v552
    %v583 = vcvt.s32.f32 %v553
    %v584 = vcvt.s32.f32 %v554
    %v585 = vcvt.s32.f32 %v555
    %v586 = vcvt.s32.f32 %v556
    %v587 = vcvt.s32.f32 %v557
    %v588 = vcvt.s32.f32 %v558
    %v589 = vcvt.s32.f32 %v559
    %v590 = vcvt.s32.f32 %v560
    %v591 = vpack.c.bf16 %v562, %v561
    %v592 = vpack.c.bf16 %v564, %v563
    %v593 = vpack.c.bf16 %v566, %v565
    %v594 = vpack.c.bf16 %v568, %v567
    %v595 = vpack.c.bf16 %v570, %v569
    %v596 = vpack.c.bf16 %v572, %v571
    %v597 = vpack.c.bf16 %v574, %v573
    %v598 = vpack.c.bf16 %v576, %v575
    %v599 = vpack.c.bf16 %v578, %v577
    %v600 = vpack.c.bf16 %v580, %v579
    %v601 = vpack.c.bf16 %v582, %v581
    %v602 = vpack.c.bf16 %v584, %v583
    %v603 = vpack.c.bf16 %v586, %v585
    %v604 = vpack.c.bf16 %v588, %v587
    %v605 = vpack.c.bf16 %v590, %v589
    %v606 = vpack.c.bf16 %v372, %v371
    %v607 = vpack.c.bf16 %v374, %v373
    %v608 = vpack.c.bf16 %v376, %v375
    %v609 = vpack.c.bf16 %v378, %v377
    %614 = vrot.lane.b32.xlu0 %v606, 96
    %v615 = vpop.permute.xlu0 %614
    %616 = vrot.lane.b32.xlu0 %v607, 96
    %v617 = vpop.permute.xlu0 %616
    %618 = vrot.lane.b32.xlu0 %v608, 96
    %v619 = vpop.permute.xlu0 %618
    %620 = vrot.lane.b32.xlu0 %v609, 96
    %v621 = vpop.permute.xlu0 %620
    %vm625 = vcmask 490496
    %v627 = vsel %vm625, %v591, 0
    %v630 = vsel %vm625, %v592, 0
    %v633 = vsel %vm625, %v593, 0
    %v636 = vsel %vm625, %v594, 0
    %v639 = vsel %vm625, %v595, 0
    %v642 = vsel %vm625, %v596, 0
    %v645 = vsel %vm625, %v597, 0
    %v648 = vsel %vm625, %v598, 0
    %v651 = vsel %vm625, %v599, 0
    %v654 = vsel %vm625, %v600, 0
    %v657 = vsel %vm625, %v601, 0
    %v660 = vsel %vm625, %v602, 0
    %v663 = vsel %vm625, %v603, 0
    %v666 = vsel %vm625, %v604, 0
    %v669 = vsel %vm625, %v605, 0
    %vm671 = vcmask 1045504
    %v673 = vsel %vm671, %v621, 0
    %675 = vmatprep.subr.bf16.mxu0 0
    %676 = vmatpush1.bf16.msra.mxu0 %v615
    %677 = vmatprep.subr.bf16.mxu0 0
    %678 = vmatpush1.bf16.msra.mxu0 %v617
    %679 = vmatprep.subr.bf16.mxu0 0
    %680 = vmatpush1.bf16.msra.mxu0 %v619
    %681 = vmatprep.subr.bf16.mxu0 0
    %682 = vmatpush1.bf16.msra.mxu0 %v673
    %683 = vmatprep.subr.bf16.mxu0 0
    %684 = vmatpush1.bf16.msra.mxu0 0
    %685 = vmatprep.subr.bf16.mxu0 0
    %686 = vmatpush1.bf16.msra.mxu0 0
    %687 = vmatprep.subr.bf16.mxu0 0
    %688 = vmatpush1.bf16.msra.mxu0 0
    %689 = vmatprep.subr.bf16.mxu0 0
    %690 = vmatpush1.bf16.msra.mxu0 0
    %691 = vmatprep.subr.bf16.mxu0 0
    %692 = vmatpush1.bf16.msra.mxu0 0
    %693 = vmatprep.subr.bf16.mxu0 0
    %694 = vmatpush1.bf16.msra.mxu0 0
    %695 = vmatprep.subr.bf16.mxu0 0
    %696 = vmatpush1.bf16.msra.mxu0 0
    %697 = vmatprep.subr.bf16.mxu0 0
    %698 = vmatpush1.bf16.msra.mxu0 0
    %699 = vmatprep.subr.bf16.mxu0 0
    %700 = vmatpush1.bf16.msra.mxu0 0
    %701 = vmatprep.subr.bf16.mxu0 0
    %702 = vmatpush1.bf16.msra.mxu0 0
    %703 = vmatprep.subr.bf16.mxu0 0
    %704 = vmatpush1.bf16.msra.mxu0 0
    %705 = vmatprep.subr.bf16.mxu0 0
    %706 = vmatpush1.bf16.msra.mxu0 0
    %707 = vmatprep.mubr.bf16.mxu0 0
    %708 = vmatmul.mubr.bf16.gmra.mrb[0].mxu0 %v627
    %v709 = vpop.f32.mrb[0].mxu0
    %v710 = vadd.f32 0.0, %v709
    %v711 = vpop.f32.mrb[0].mxu0
    %v712 = vpop.f32.mrb[0].mxu0
    %v713 = vadd.f32 0.0, %v712
    %v714 = vpop.f32.mrb[0].mxu0
    %715 = vmatprep.mubr.bf16.mxu0 0
    %716 = vmatmul.mubr.bf16.gmra.mrb[0].mxu0 %v630
    %v717 = vpop.f32.mrb[0].mxu0
    %v718 = vadd.f32 0.0, %v717
    %v719 = vpop.f32.mrb[0].mxu0
    %v720 = vpop.f32.mrb[0].mxu0
    %v721 = vadd.f32 0.0, %v720
    %v722 = vpop.f32.mrb[0].mxu0
    %723 = vmatprep.mubr.bf16.mxu0 0
    %724 = vmatmul.mubr.bf16.gmra.mrb[0].mxu0 %v633
    %v725 = vpop.f32.mrb[0].mxu0
    %v726 = vadd.f32 0.0, %v725
    %v727 = vpop.f32.mrb[0].mxu0
    %v728 = vpop.f32.mrb[0].mxu0
    %v729 = vadd.f32 0.0, %v728
    %v730 = vpop.f32.mrb[0].mxu0
    %731 = vmatprep.mubr.bf16.mxu0 0
    %732 = vmatmul.mubr.bf16.gmra.mrb[0].mxu0 %v636
    %v733 = vpop.f32.mrb[0].mxu0
    %v734 = vadd.f32 0.0, %v733
    %v735 = vpop.f32.mrb[0].mxu0
    %v736 = vpop.f32.mrb[0].mxu0
    %v737 = vadd.f32 0.0, %v736
    %v738 = vpop.f32.mrb[0].mxu0
    %739 = vmatprep.mubr.bf16.mxu0 0
    %740 = vmatmul.mubr.bf16.gmra.mrb[0].mxu0 %v639
    %v741 = vpop.f32.mrb[0].mxu0
    %v742 = vadd.f32 0.0, %v741
    %v743 = vpop.f32.mrb[0].mxu0
    %v744 = vpop.f32.mrb[0].mxu0
    %v745 = vadd.f32 0.0, %v744
    %v746 = vpop.f32.mrb[0].mxu0
    %747 = vmatprep.mubr.bf16.mxu0 0
    %748 = vmatmul.mubr.bf16.gmra.mrb[0].mxu0 %v642
    %v749 = vpop.f32.mrb[0].mxu0
    %v750 = vadd.f32 0.0, %v749
    %v751 = vpop.f32.mrb[0].mxu0
    %v752 = vpop.f32.mrb[0].mxu0
    %v753 = vadd.f32 0.0, %v752
    %v754 = vpop.f32.mrb[0].mxu0
    %755 = vmatprep.mubr.bf16.mxu0 0
    %756 = vmatmul.mubr.bf16.gmra.mrb[0].mxu0 %v645
    %v757 = vpop.f32.mrb[0].mxu0
    %v758 = vadd.f32 0.0, %v757
    %v759 = vpop.f32.mrb[0].mxu0
    %v760 = vpop.f32.mrb[0].mxu0
    %v761 = vadd.f32 0.0, %v760
    %v762 = vpop.f32.mrb[0].mxu0
    %763 = vmatprep.mubr.bf16.mxu0 0
    %764 = vmatmul.mubr.bf16.gmra.mrb[0].mxu0 %v648
    %v765 = vpop.f32.mrb[0].mxu0
    %v766 = vadd.f32 0.0, %v765
    %v767 = vpop.f32.mrb[0].mxu0
    %v768 = vpop.f32.mrb[0].mxu0
    %v769 = vadd.f32 0.0, %v768
    %v770 = vpop.f32.mrb[0].mxu0
    %771 = vmatprep.mubr.bf16.mxu0 0
    %772 = vmatmul.mubr.bf16.gmra.mrb[0].mxu0 %v651
    %v773 = vpop.f32.mrb[0].mxu0
    %v774 = vadd.f32 0.0, %v773
    %v775 = vpop.f32.mrb[0].mxu0
    %v776 = vpop.f32.mrb[0].mxu0
    %v777 = vadd.f32 0.0, %v776
    %v778 = vpop.f32.mrb[0].mxu0
    %779 = vmatprep.mubr.bf16.mxu0 0
    %780 = vmatmul.mubr.bf16.gmra.mrb[0].mxu0 %v654
    %v781 = vpop.f32.mrb[0].mxu0
    %v782 = vadd.f32 0.0, %v781
    %v783 = vpop.f32.mrb[0].mxu0
    %v784 = vpop.f32.mrb[0].mxu0
    %v785 = vadd.f32 0.0, %v784
    %v786 = vpop.f32.mrb[0].mxu0
    %787 = vmatprep.mubr.bf16.mxu0 0
    %788 = vmatmul.mubr.bf16.gmra.mrb[0].mxu0 %v657
    %v789 = vpop.f32.mrb[0].mxu0
    %v790 = vadd.f32 0.0, %v789
    %v791 = vpop.f32.mrb[0].mxu0
    %v792 = vpop.f32.mrb[0].mxu0
    %v793 = vadd.f32 0.0, %v792
    %v794 = vpop.f32.mrb[0].mxu0
    %795 = vmatprep.mubr.bf16.mxu0 0
    %796 = vmatmul.mubr.bf16.gmra.mrb[0].mxu0 %v660
    %v797 = vpop.f32.mrb[0].mxu0
    %v798 = vadd.f32 0.0, %v797
    %v799 = vpop.f32.mrb[0].mxu0
    %v800 = vpop.f32.mrb[0].mxu0
    %v801 = vadd.f32 0.0, %v800
    %v802 = vpop.f32.mrb[0].mxu0
    %803 = vmatprep.mubr.bf16.mxu0 0
    %804 = vmatmul.mubr.bf16.gmra.mrb[0].mxu0 %v663
    %v805 = vpop.f32.mrb[0].mxu0
    %v806 = vadd.f32 0.0, %v805
    %v807 = vpop.f32.mrb[0].mxu0
    %v808 = vpop.f32.mrb[0].mxu0
    %v809 = vadd.f32 0.0, %v808
    %v810 = vpop.f32.mrb[0].mxu0
    %811 = vmatprep.mubr.bf16.mxu0 0
    %812 = vmatmul.mubr.bf16.gmra.mrb[0].mxu0 %v666
    %v813 = vpop.f32.mrb[0].mxu0
    %v814 = vadd.f32 0.0, %v813
    %v815 = vpop.f32.mrb[0].mxu0
    %v816 = vpop.f32.mrb[0].mxu0
    %v817 = vadd.f32 0.0, %v816
    %v818 = vpop.f32.mrb[0].mxu0
    %819 = vmatprep.mubr.bf16.mxu0 0
    %820 = vmatmul.mubr.bf16.gmra.mrb[0].mxu0 %v669
    %v821 = vpop.f32.mrb[0].mxu0
    %v822 = vadd.f32 0.0, %v821
    %v823 = vpop.f32.mrb[0].mxu0
    %v824 = vpop.f32.mrb[0].mxu0
    %v825 = vadd.f32 0.0, %v824
    %v826 = vpop.f32.mrb[0].mxu0
    %827 = vdwg.mxu0
    %v828 = vld [vmem:[%s2] sm:$0xff]
    %v829 = vld [vmem:[%s2 + $0x8] sm:$0xff]
    %v830 = vld [vmem:[%s2 + $0x10] sm:$0xff]
    %v831 = vld [vmem:[%s2 + $0x18] sm:$0xff]
    %v832 = vld [vmem:[%s2 + $0x20] sm:$0xff]
    %v833 = vld [vmem:[%s2 + $0x28] sm:$0xff]
    %v834 = vld [vmem:[%s2 + $0x30] sm:$0xff]
    %v835 = vld [vmem:[%s2 + $0x38] sm:$0xff]
    %v836 = vld [vmem:[%s2 + $0x40] sm:$0xff]
    %v837 = vld [vmem:[%s2 + $0x48] sm:$0xff]
    %v838 = vld [vmem:[%s2 + $0x50] sm:$0xff]
    %v839 = vld [vmem:[%s2 + $0x58] sm:$0xff]
    %v840 = vld [vmem:[%s2 + $0x60] sm:$0xff]
    %v841 = vld [vmem:[%s2 + $0x68] sm:$0xff]
    %v842 = vld [vmem:[%s2 + $0x70] sm:$0xff]
    %v843 = vld [vmem:[%s2 + $0x78] sm:$0xff]
    %v844 = vld [vmem:[%s2 + $0x80] sm:$0xff]
    %v845 = vld [vmem:[%s2 + $0x88] sm:$0xff]
    %v846 = vld [vmem:[%s2 + $0x90] sm:$0xff]
    %v847 = vld [vmem:[%s2 + $0x98] sm:$0xff]
    %v848 = vld [vmem:[%s2 + $0xa0] sm:$0xff]
    %v849 = vld [vmem:[%s2 + $0xa8] sm:$0xff]
    %v850 = vld [vmem:[%s2 + $0xb0] sm:$0xff]
    %v851 = vld [vmem:[%s2 + $0xb8] sm:$0xff]
    %v852 = vld [vmem:[%s2 + $0xc0] sm:$0xff]
    %v853 = vld [vmem:[%s2 + $0xc8] sm:$0xff]
    %v854 = vld [vmem:[%s2 + $0xd0] sm:$0xff]
    %v855 = vld [vmem:[%s2 + $0xd8] sm:$0xff]
    %v856 = vld [vmem:[%s2 + $0xe0] sm:$0xff]
    %v857 = vld [vmem:[%s2 + $0xe8] sm:$0xff]
    %v858 = vld [vmem:[%s9] sm:$0xf]
    %v859 = vld [vmem:[%s9 + $0x4] sm:$0x3]
    %v860 = vpack.c.bf16 %v829, %v828
    %v861 = vpack.c.bf16 %v831, %v830
    %v862 = vpack.c.bf16 %v833, %v832
    %v863 = vpack.c.bf16 %v835, %v834
    %v864 = vpack.c.bf16 %v837, %v836
    %v865 = vpack.c.bf16 %v839, %v838
    %v866 = vpack.c.bf16 %v841, %v840
    %v867 = vpack.c.bf16 %v843, %v842
    %v868 = vpack.c.bf16 %v845, %v844
    %v869 = vpack.c.bf16 %v847, %v846
    %v870 = vpack.c.bf16 %v849, %v848
    %v871 = vpack.c.bf16 %v851, %v850
    %v872 = vpack.c.bf16 %v853, %v852
    %v873 = vpack.c.bf16 %v855, %v854
    %v874 = vpack.c.bf16 %v857, %v856
    %v877 = vunpack.c.l.b16 %v858
    %v878 = vunpack.c.l.b16 %v859
    %v879 = vpack.c.b16 %v878, %v877
    %vm880 = vcmask 97280
    %v882 = vsel %vm880, %v860, 0
    %v885 = vsel %vm880, %v861, 0
    %v888 = vsel %vm880, %v862, 0
    %v891 = vsel %vm880, %v863, 0
    %v894 = vsel %vm880, %v864, 0
    %v897 = vsel %vm880, %v865, 0
    %v900 = vsel %vm880, %v866, 0
    %v903 = vsel %vm880, %v867, 0
    %v906 = vsel %vm880, %v868, 0
    %v909 = vsel %vm880, %v869, 0
    %v912 = vsel %vm880, %v870, 0
    %v915 = vsel %vm880, %v871, 0
    %v918 = vsel %vm880, %v872, 0
    %v921 = vsel %vm880, %v873, 0
    %v924 = vsel %vm880, %v874, 0
    %v927 = vsel %vm671, %v879, 0
    %929 = vmatprep.subr.bf16.mxu0 0
    %930 = vmatpush1.bf16.msra.mxu0 %v927
    %931 = vmatprep.subr.bf16.mxu0 0
    %932 = vmatpush1.bf16.msra.mxu0 0
    %933 = vmatprep.subr.bf16.mxu0 0
    %934 = vmatpush1.bf16.msra.mxu0 0
    %935 = vmatprep.subr.bf16.mxu0 0
    %936 = vmatpush1.bf16.msra.mxu0 0
    %937 = vmatprep.subr.bf16.mxu0 0
    %938 = vmatpush1.bf16.msra.mxu0 0
    %939 = vmatprep.subr.bf16.mxu0 0
    %940 = vmatpush1.bf16.msra.mxu0 0
    %941 = vmatprep.subr.bf16.mxu0 0
    %942 = vmatpush1.bf16.msra.mxu0 0
    %943 = vmatprep.subr.bf16.mxu0 0
    %944 = vmatpush1.bf16.msra.mxu0 0
    %945 = vmatprep.subr.bf16.mxu0 0
    %946 = vmatpush1.bf16.msra.mxu0 0
    %947 = vmatprep.subr.bf16.mxu0 0
    %948 = vmatpush1.bf16.msra.mxu0 0
    %949 = vmatprep.subr.bf16.mxu0 0
    %950 = vmatpush1.bf16.msra.mxu0 0
    %951 = vmatprep.subr.bf16.mxu0 0
    %952 = vmatpush1.bf16.msra.mxu0 0
    %953 = vmatprep.subr.bf16.mxu0 0
    %954 = vmatpush1.bf16.msra.mxu0 0
    %955 = vmatprep.subr.bf16.mxu0 0
    %956 = vmatpush1.bf16.msra.mxu0 0
    %957 = vmatprep.subr.bf16.mxu0 0
    %958 = vmatpush1.bf16.msra.mxu0 0
    %959 = vmatprep.subr.bf16.mxu0 0
    %960 = vmatpush1.bf16.msra.mxu0 0
    %961 = vmatprep.mubr.bf16.mxu0 0
    %962 = vmatmul.mubr.bf16.gmra.mrb[0].mxu0 %v882
    %v963 = vpop.f32.mrb[0].mxu0
    %v964 = vadd.f32 0.0, %v963
    %v965 = vpop.f32.mrb[0].mxu0
    %v966 = vpop.f32.mrb[0].mxu0
    %v967 = vadd.f32 0.0, %v966
    %v968 = vpop.f32.mrb[0].mxu0
    %969 = vmatprep.mubr.bf16.mxu0 0
    %970 = vmatmul.mubr.bf16.gmra.mrb[0].mxu0 %v885
    %v971 = vpop.f32.mrb[0].mxu0
    %v972 = vadd.f32 0.0, %v971
    %v973 = vpop.f32.mrb[0].mxu0
    %v974 = vpop.f32.mrb[0].mxu0
    %v975 = vadd.f32 0.0, %v974
    %v976 = vpop.f32.mrb[0].mxu0
    %977 = vmatprep.mubr.bf16.mxu0 0
    %978 = vmatmul.mubr.bf16.gmra.mrb[0].mxu0 %v888
    %v979 = vpop.f32.mrb[0].mxu0
    %v980 = vadd.f32 0.0, %v979
    %v981 = vpop.f32.mrb[0].mxu0
    %v982 = vpop.f32.mrb[0].mxu0
    %v983 = vadd.f32 0.0, %v982
    %v984 = vpop.f32.mrb[0].mxu0
    %985 = vmatprep.mubr.bf16.mxu0 0
    %986 = vmatmul.mubr.bf16.gmra.mrb[0].mxu0 %v891
    %v987 = vpop.f32.mrb[0].mxu0
    %v988 = vadd.f32 0.0, %v987
    %v989 = vpop.f32.mrb[0].mxu0
    %v990 = vpop.f32.mrb[0].mxu0
    %v991 = vadd.f32 0.0, %v990
    %v992 = vpop.f32.mrb[0].mxu0
    %993 = vmatprep.mubr.bf16.mxu0 0
    %994 = vmatmul.mubr.bf16.gmra.mrb[0].mxu0 %v894
    %v995 = vpop.f32.mrb[0].mxu0
    %v996 = vadd.f32 0.0, %v995
    %v997 = vpop.f32.mrb[0].mxu0
    %v998 = vpop.f32.mrb[0].mxu0
    %v999 = vadd.f32 0.0, %v998
    %v1000 = vpop.f32.mrb[0].mxu0
    %1001 = vmatprep.mubr.bf16.mxu0 0
    %1002 = vmatmul.mubr.bf16.gmra.mrb[0].mxu0 %v897
    %v1003 = vpop.f32.mrb[0].mxu0
    %v1004 = vadd.f32 0.0, %v1003
    %v1005 = vpop.f32.mrb[0].mxu0
    %v1006 = vpop.f32.mrb[0].mxu0
    %v1007 = vadd.f32 0.0, %v1006
    %v1008 = vpop.f32.mrb[0].mxu0
    %1009 = vmatprep.mubr.bf16.mxu0 0
    %1010 = vmatmul.mubr.bf16.gmra.mrb[0].mxu0 %v900
    %v1011 = vpop.f32.mrb[0].mxu0
    %v1012 = vadd.f32 0.0, %v1011
    %v1013 = vpop.f32.mrb[0].mxu0
    %v1014 = vpop.f32.mrb[0].mxu0
    %v1015 = vadd.f32 0.0, %v1014
    %v1016 = vpop.f32.mrb[0].mxu0
    %1017 = vmatprep.mubr.bf16.mxu0 0
    %1018 = vmatmul.mubr.bf16.gmra.mrb[0].mxu0 %v903
    %v1019 = vpop.f32.mrb[0].mxu0
    %v1020 = vadd.f32 0.0, %v1019
    %v1021 = vpop.f32.mrb[0].mxu0
    %v1022 = vpop.f32.mrb[0].mxu0
    %v1023 = vadd.f32 0.0, %v1022
    %v1024 = vpop.f32.mrb[0].mxu0
    %1025 = vmatprep.mubr.bf16.mxu0 0
    %1026 = vmatmul.mubr.bf16.gmra.mrb[0].mxu0 %v906
    %v1027 = vpop.f32.mrb[0].mxu0
    %v1028 = vadd.f32 0.0, %v1027
    %v1029 = vpop.f32.mrb[0].mxu0
    %v1030 = vpop.f32.mrb[0].mxu0
    %v1031 = vadd.f32 0.0, %v1030
    %v1032 = vpop.f32.mrb[0].mxu0
    %1033 = vmatprep.mubr.bf16.mxu0 0
    %1034 = vmatmul.mubr.bf16.gmra.mrb[0].mxu0 %v909
    %v1035 = vpop.f32.mrb[0].mxu0
    %v1036 = vadd.f32 0.0, %v1035
    %v1037 = vpop.f32.mrb[0].mxu0
    %v1038 = vpop.f32.mrb[0].mxu0
    %v1039 = vadd.f32 0.0, %v1038
    %v1040 = vpop.f32.mrb[0].mxu0
    %1041 = vmatprep.mubr.bf16.mxu0 0
    %1042 = vmatmul.mubr.bf16.gmra.mrb[0].mxu0 %v912
    %v1043 = vpop.f32.mrb[0].mxu0
    %v1044 = vadd.f32 0.0, %v1043
    %v1045 = vpop.f32.mrb[0].mxu0
    %v1046 = vpop.f32.mrb[0].mxu0
    %v1047 = vadd.f32 0.0, %v1046
    %v1048 = vpop.f32.mrb[0].mxu0
    %1049 = vmatprep.mubr.bf16.mxu0 0
    %1050 = vmatmul.mubr.bf16.gmra.mrb[0].mxu0 %v915
    %v1051 = vpop.f32.mrb[0].mxu0
    %v1052 = vadd.f32 0.0, %v1051
    %v1053 = vpop.f32.mrb[0].mxu0
    %v1054 = vpop.f32.mrb[0].mxu0
    %v1055 = vadd.f32 0.0, %v1054
    %v1056 = vpop.f32.mrb[0].mxu0
    %1057 = vmatprep.mubr.bf16.mxu0 0
    %1058 = vmatmul.mubr.bf16.gmra.mrb[0].mxu0 %v918
    %v1059 = vpop.f32.mrb[0].mxu0
    %v1060 = vadd.f32 0.0, %v1059
    %v1061 = vpop.f32.mrb[0].mxu0
    %v1062 = vpop.f32.mrb[0].mxu0
    %v1063 = vadd.f32 0.0, %v1062
    %v1064 = vpop.f32.mrb[0].mxu0
    %1065 = vmatprep.mubr.bf16.mxu0 0
    %1066 = vmatmul.mubr.bf16.gmra.mrb[0].mxu0 %v921
    %v1067 = vpop.f32.mrb[0].mxu0
    %v1068 = vadd.f32 0.0, %v1067
    %v1069 = vpop.f32.mrb[0].mxu0
    %v1070 = vpop.f32.mrb[0].mxu0
    %v1071 = vadd.f32 0.0, %v1070
    %v1072 = vpop.f32.mrb[0].mxu0
    %1073 = vmatprep.mubr.bf16.mxu0 0
    %1074 = vmatmul.mubr.bf16.gmra.mrb[0].mxu0 %v924
    %v1075 = vpop.f32.mrb[0].mxu0
    %v1076 = vadd.f32 0.0, %v1075
    %v1077 = vpop.f32.mrb[0].mxu0
    %v1078 = vpop.f32.mrb[0].mxu0
    %v1079 = vadd.f32 0.0, %v1078
    %v1080 = vpop.f32.mrb[0].mxu0
    %1081 = vdwg.mxu0
    %v1082 = vld [vmem:[%s12] sm:$0xf]
    %v1083 = vld [vmem:[%s12 + $0x4] sm:$0xf]
    %v1084 = vld [vmem:[%s12 + $0x8] sm:$0xf]
    %v1085 = vld [vmem:[%s12 + $0xc] sm:$0xf]
    %v1086 = vpack.c.bf16 %v713, %v710
    %v1087 = vpack.c.bf16 %v721, %v718
    %v1088 = vpack.c.bf16 %v729, %v726
    %v1089 = vpack.c.bf16 %v737, %v734
    %v1090 = vpack.c.bf16 %v745, %v742
    %v1091 = vpack.c.bf16 %v753, %v750
    %v1092 = vpack.c.bf16 %v761, %v758
    %v1093 = vpack.c.bf16 %v769, %v766
    %v1094 = vpack.c.bf16 %v777, %v774
    %v1095 = vpack.c.bf16 %v785, %v782
    %v1096 = vpack.c.bf16 %v793, %v790
    %v1097 = vpack.c.bf16 %v801, %v798
    %v1098 = vpack.c.bf16 %v809, %v806
    %v1099 = vpack.c.bf16 %v817, %v814
    %v1100 = vpack.c.bf16 %v825, %v822
    %v1105 = vunpack.c.l.b16 %v1082
    %v1106 = vunpack.c.l.b16 %v1083
    %v1107 = vunpack.c.l.b16 %v1084
    %v1108 = vunpack.c.l.b16 %v1085
    %v1109 = vpack.c.b16 %v1106, %v1105
    %v1110 = vpack.c.b16 %v1108, %v1107
    %v1114 = vsel %vm205, %v1086, 0
    %v1117 = vsel %vm205, %v1087, 0
    %v1120 = vsel %vm205, %v1088, 0
    %v1123 = vsel %vm205, %v1089, 0
    %v1126 = vsel %vm205, %v1090, 0
    %v1129 = vsel %vm205, %v1091, 0
    %v1132 = vsel %vm205, %v1092, 0
    %v1135 = vsel %vm205, %v1093, 0
    %v1138 = vsel %vm205, %v1094, 0
    %v1141 = vsel %vm205, %v1095, 0
    %v1144 = vsel %vm205, %v1096, 0
    %v1147 = vsel %vm205, %v1097, 0
    %v1150 = vsel %vm205, %v1098, 0
    %v1153 = vsel %vm205, %v1099, 0
    %v1156 = vsel %vm205, %v1100, 0
    %1158 = vmatprep.subr.bf16.mxu0 0
    %1159 = vmatpush1.bf16.msra.mxu0 %v1109
    %1160 = vmatprep.subr.bf16.mxu0 0
    %1161 = vmatpush1.bf16.msra.mxu0 %v1110
    %1162 = vmatprep.subr.bf16.mxu0 0
    %1163 = vmatpush1.bf16.msra.mxu0 0
    %1164 = vmatprep.subr.bf16.mxu0 0
    %1165 = vmatpush1.bf16.msra.mxu0 0
    %1166 = vmatprep.subr.bf16.mxu0 0
    %1167 = vmatpush1.bf16.msra.mxu0 0
    %1168 = vmatprep.subr.bf16.mxu0 0
    %1169 = vmatpush1.bf16.msra.mxu0 0
    %1170 = vmatprep.subr.bf16.mxu0 0
    %1171 = vmatpush1.bf16.msra.mxu0 0
    %1172 = vmatprep.subr.bf16.mxu0 0
    %1173 = vmatpush1.bf16.msra.mxu0 0
    %1174 = vmatprep.subr.bf16.mxu0 0
    %1175 = vmatpush1.bf16.msra.mxu0 0
    %1176 = vmatprep.subr.bf16.mxu0 0
    %1177 = vmatpush1.bf16.msra.mxu0 0
    %1178 = vmatprep.subr.bf16.mxu0 0
    %1179 = vmatpush1.bf16.msra.mxu0 0
    %1180 = vmatprep.subr.bf16.mxu0 0
    %1181 = vmatpush1.bf16.msra.mxu0 0
    %1182 = vmatprep.subr.bf16.mxu0 0
    %1183 = vmatpush1.bf16.msra.mxu0 0
    %1184 = vmatprep.subr.bf16.mxu0 0
    %1185 = vmatpush1.bf16.msra.mxu0 0
    %1186 = vmatprep.subr.bf16.mxu0 0
    %1187 = vmatpush1.bf16.msra.mxu0 0
    %1188 = vmatprep.subr.bf16.mxu0 0
    %1189 = vmatpush1.bf16.msra.mxu0 0
    %1190 = vmatprep.mubr.bf16.mxu0 0
    %1191 = vmatmul.mubr.bf16.gmra.mrb[0].mxu0 %v1114
    %v1192 = vpop.f32.mrb[0].mxu0
    %v1193 = vadd.f32 0.0, %v1192
    %v1194 = vpop.f32.mrb[0].mxu0
    %v1195 = vpop.f32.mrb[0].mxu0
    %v1196 = vadd.f32 0.0, %v1195
    %v1197 = vpop.f32.mrb[0].mxu0
    %1198 = vmatprep.mubr.bf16.mxu0 0
    %1199 = vmatmul.mubr.bf16.gmra.mrb[0].mxu0 %v1117
    %v1200 = vpop.f32.mrb[0].mxu0
    %v1201 = vadd.f32 0.0, %v1200
    %v1202 = vpop.f32.mrb[0].mxu0
    %v1203 = vpop.f32.mrb[0].mxu0
    %v1204 = vadd.f32 0.0, %v1203
    %v1205 = vpop.f32.mrb[0].mxu0
    %1206 = vmatprep.mubr.bf16.mxu0 0
    %1207 = vmatmul.mubr.bf16.gmra.mrb[0].mxu0 %v1120
    %v1208 = vpop.f32.mrb[0].mxu0
    %v1209 = vadd.f32 0.0, %v1208
    %v1210 = vpop.f32.mrb[0].mxu0
    %v1211 = vpop.f32.mrb[0].mxu0
    %v1212 = vadd.f32 0.0, %v1211
    %v1213 = vpop.f32.mrb[0].mxu0
    %1214 = vmatprep.mubr.bf16.mxu0 0
    %1215 = vmatmul.mubr.bf16.gmra.mrb[0].mxu0 %v1123
    %v1216 = vpop.f32.mrb[0].mxu0
    %v1217 = vadd.f32 0.0, %v1216
    %v1218 = vpop.f32.mrb[0].mxu0
    %v1219 = vpop.f32.mrb[0].mxu0
    %v1220 = vadd.f32 0.0, %v1219
    %v1221 = vpop.f32.mrb[0].mxu0
    %1222 = vmatprep.mubr.bf16.mxu0 0
    %1223 = vmatmul.mubr.bf16.gmra.mrb[0].mxu0 %v1126
    %v1224 = vpop.f32.mrb[0].mxu0
    %v1225 = vadd.f32 0.0, %v1224
    %v1226 = vpop.f32.mrb[0].mxu0
    %v1227 = vpop.f32.mrb[0].mxu0
    %v1228 = vadd.f32 0.0, %v1227
    %v1229 = vpop.f32.mrb[0].mxu0
    %1230 = vmatprep.mubr.bf16.mxu0 0
    %1231 = vmatmul.mubr.bf16.gmra.mrb[0].mxu0 %v1129
    %v1232 = vpop.f32.mrb[0].mxu0
    %v1233 = vadd.f32 0.0, %v1232
    %v1234 = vpop.f32.mrb[0].mxu0
    %v1235 = vpop.f32.mrb[0].mxu0
    %v1236 = vadd.f32 0.0, %v1235
    %v1237 = vpop.f32.mrb[0].mxu0
    %1238 = vmatprep.mubr.bf16.mxu0 0
    %1239 = vmatmul.mubr.bf16.gmra.mrb[0].mxu0 %v1132
    %v1240 = vpop.f32.mrb[0].mxu0
    %v1241 = vadd.f32 0.0, %v1240
    %v1242 = vpop.f32.mrb[0].mxu0
    %v1243 = vpop.f32.mrb[0].mxu0
    %v1244 = vadd.f32 0.0, %v1243
    %v1245 = vpop.f32.mrb[0].mxu0
    %1246 = vmatprep.mubr.bf16.mxu0 0
    %1247 = vmatmul.mubr.bf16.gmra.mrb[0].mxu0 %v1135
    %v1248 = vpop.f32.mrb[0].mxu0
    %v1249 = vadd.f32 0.0, %v1248
    %v1250 = vpop.f32.mrb[0].mxu0
    %v1251 = vpop.f32.mrb[0].mxu0
    %v1252 = vadd.f32 0.0, %v1251
    %v1253 = vpop.f32.mrb[0].mxu0
    %1254 = vmatprep.mubr.bf16.mxu0 0
    %1255 = vmatmul.mubr.bf16.gmra.mrb[0].mxu0 %v1138
    %v1256 = vpop.f32.mrb[0].mxu0
    %v1257 = vadd.f32 0.0, %v1256
    %v1258 = vpop.f32.mrb[0].mxu0
    %v1259 = vpop.f32.mrb[0].mxu0
    %v1260 = vadd.f32 0.0, %v1259
    %v1261 = vpop.f32.mrb[0].mxu0
    %1262 = vmatprep.mubr.bf16.mxu0 0
    %1263 = vmatmul.mubr.bf16.gmra.mrb[0].mxu0 %v1141
    %v1264 = vpop.f32.mrb[0].mxu0
    %v1265 = vadd.f32 0.0, %v1264
    %v1266 = vpop.f32.mrb[0].mxu0
    %v1267 = vpop.f32.mrb[0].mxu0
    %v1268 = vadd.f32 0.0, %v1267
    %v1269 = vpop.f32.mrb[0].mxu0
    %1270 = vmatprep.mubr.bf16.mxu0 0
    %1271 = vmatmul.mubr.bf16.gmra.mrb[0].mxu0 %v1144
    %v1272 = vpop.f32.mrb[0].mxu0
    %v1273 = vadd.f32 0.0, %v1272
    %v1274 = vpop.f32.mrb[0].mxu0
    %v1275 = vpop.f32.mrb[0].mxu0
    %v1276 = vadd.f32 0.0, %v1275
    %v1277 = vpop.f32.mrb[0].mxu0
    %1278 = vmatprep.mubr.bf16.mxu0 0
    %1279 = vmatmul.mubr.bf16.gmra.mrb[0].mxu0 %v1147
    %v1280 = vpop.f32.mrb[0].mxu0
    %v1281 = vadd.f32 0.0, %v1280
    %v1282 = vpop.f32.mrb[0].mxu0
    %v1283 = vpop.f32.mrb[0].mxu0
    %v1284 = vadd.f32 0.0, %v1283
    %v1285 = vpop.f32.mrb[0].mxu0
    %1286 = vmatprep.mubr.bf16.mxu0 0
    %1287 = vmatmul.mubr.bf16.gmra.mrb[0].mxu0 %v1150
    %v1288 = vpop.f32.mrb[0].mxu0
    %v1289 = vadd.f32 0.0, %v1288
    %v1290 = vpop.f32.mrb[0].mxu0
    %v1291 = vpop.f32.mrb[0].mxu0
    %v1292 = vadd.f32 0.0, %v1291
    %v1293 = vpop.f32.mrb[0].mxu0
    %1294 = vmatprep.mubr.bf16.mxu0 0
    %1295 = vmatmul.mubr.bf16.gmra.mrb[0].mxu0 %v1153
    %v1296 = vpop.f32.mrb[0].mxu0
    %v1297 = vadd.f32 0.0, %v1296
    %v1298 = vpop.f32.mrb[0].mxu0
    %v1299 = vpop.f32.mrb[0].mxu0
    %v1300 = vadd.f32 0.0, %v1299
    %v1301 = vpop.f32.mrb[0].mxu0
    %1302 = vmatprep.mubr.bf16.mxu0 0
    %1303 = vmatmul.mubr.bf16.gmra.mrb[0].mxu0 %v1156
    %v1304 = vpop.f32.mrb[0].mxu0
    %v1305 = vadd.f32 0.0, %v1304
    %v1306 = vpop.f32.mrb[0].mxu0
    %v1307 = vpop.f32.mrb[0].mxu0
    %v1308 = vadd.f32 0.0, %v1307
    %v1309 = vpop.f32.mrb[0].mxu0
    %1310 = vdwg.mxu0
    %v1311 = vmul.f32 %v964, %v1193
    %v1312 = vmul.f32 %v967, %v1196
    %v1313 = vmul.f32 %v972, %v1201
    %v1314 = vmul.f32 %v975, %v1204
    %v1315 = vmul.f32 %v980, %v1209
    %v1316 = vmul.f32 %v983, %v1212
    %v1317 = vmul.f32 %v988, %v1217
    %v1318 = vmul.f32 %v991, %v1220
    %v1319 = vmul.f32 %v996, %v1225
    %v1320 = vmul.f32 %v999, %v1228
    %v1321 = vmul.f32 %v1004, %v1233
    %v1322 = vmul.f32 %v1007, %v1236
    %v1323 = vmul.f32 %v1012, %v1241
    %v1324 = vmul.f32 %v1015, %v1244
    %v1325 = vmul.f32 %v1020, %v1249
    %v1326 = vmul.f32 %v1023, %v1252
    %v1327 = vmul.f32 %v1028, %v1257
    %v1328 = vmul.f32 %v1031, %v1260
    %v1329 = vmul.f32 %v1036, %v1265
    %v1330 = vmul.f32 %v1039, %v1268
    %v1331 = vmul.f32 %v1044, %v1273
    %v1332 = vmul.f32 %v1047, %v1276
    %v1333 = vmul.f32 %v1052, %v1281
    %v1334 = vmul.f32 %v1055, %v1284
    %v1335 = vmul.f32 %v1060, %v1289
    %v1336 = vmul.f32 %v1063, %v1292
    %v1337 = vmul.f32 %v1068, %v1297
    %v1338 = vmul.f32 %v1071, %v1300
    %v1339 = vmul.f32 %v1076, %v1305
    %v1340 = vmul.f32 %v1079, %v1308
    %v1341 = vld [vmem:[%s13] sm:$0xf]
    %v1342 = vld [vmem:[%s13 + $0x4] sm:$0xf]
    %v1343 = vld [vmem:[%s13 + $0x8] sm:$0xf]
    %v1344 = vld [vmem:[%s13 + $0xc] sm:$0xf]
    %v1345 = vld [vmem:[%s13 + $0x10] sm:$0xf]
    %v1346 = vld [vmem:[%s13 + $0x14] sm:$0xf]
    %v1347 = vld [vmem:[%s13 + $0x18] sm:$0xf]
    %v1348 = vld [vmem:[%s13 + $0x1c] sm:$0xf]
    %v1349 = vld [vmem:[%s13 + $0x20] sm:$0xf]
    %v1350 = vld [vmem:[%s13 + $0x24] sm:$0xf]
    %v1351 = vld [vmem:[%s13 + $0x28] sm:$0xf]
    %v1352 = vld [vmem:[%s13 + $0x2c] sm:$0xf]
    %v1353 = vld [vmem:[%s13 + $0x30] sm:$0xf]
    %v1354 = vld [vmem:[%s13 + $0x34] sm:$0xf]
    %v1355 = vld [vmem:[%s13 + $0x38] sm:$0xf]
    %v1356 = vld [vmem:[%s13 + $0x3c] sm:$0xf]
    %v1357 = vpack.c.bf16 %v1312, %v1311
    %v1358 = vpack.c.bf16 %v1314, %v1313
    %v1359 = vpack.c.bf16 %v1316, %v1315
    %v1360 = vpack.c.bf16 %v1318, %v1317
    %v1361 = vpack.c.bf16 %v1320, %v1319
    %v1362 = vpack.c.bf16 %v1322, %v1321
    %v1363 = vpack.c.bf16 %v1324, %v1323
    %v1364 = vpack.c.bf16 %v1326, %v1325
    %v1365 = vpack.c.bf16 %v1328, %v1327
    %v1366 = vpack.c.bf16 %v1330, %v1329
    %v1367 = vpack.c.bf16 %v1332, %v1331
    %v1368 = vpack.c.bf16 %v1334, %v1333
    %v1369 = vpack.c.bf16 %v1336, %v1335
    %v1370 = vpack.c.bf16 %v1338, %v1337
    %v1371 = vpack.c.bf16 %v1340, %v1339
    %v1388 = vunpack.c.l.b16 %v1341
    %v1389 = vunpack.c.l.b16 %v1342
    %v1390 = vunpack.c.l.b16 %v1343
    %v1391 = vunpack.c.l.b16 %v1344
    %v1392 = vunpack.c.l.b16 %v1345
    %v1393 = vunpack.c.l.b16 %v1346
    %v1394 = vunpack.c.l.b16 %v1347
    %v1395 = vunpack.c.l.b16 %v1348
    %v1396 = vunpack.c.l.b16 %v1349
    %v1397 = vunpack.c.l.b16 %v1350
    %v1398 = vunpack.c.l.b16 %v1351
    %v1399 = vunpack.c.l.b16 %v1352
    %v1400 = vunpack.c.l.b16 %v1353
    %v1401 = vunpack.c.l.b16 %v1354
    %v1402 = vunpack.c.l.b16 %v1355
    %v1403 = vunpack.c.l.b16 %v1356
    %v1404 = vpack.c.b16 %v1389, %v1388
    %v1405 = vpack.c.b16 %v1391, %v1390
    %v1406 = vpack.c.b16 %v1393, %v1392
    %v1407 = vpack.c.b16 %v1395, %v1394
    %v1408 = vpack.c.b16 %v1397, %v1396
    %v1409 = vpack.c.b16 %v1399, %v1398
    %v1410 = vpack.c.b16 %v1401, %v1400
    %v1411 = vpack.c.b16 %v1403, %v1402
    %1420 = vmatprep.subr.bf16.mxu0 0
    %1421 = vmatpush1.bf16.msra.mxu0 %v1404
    %1422 = vmatprep.subr.bf16.mxu0 0
    %1423 = vmatpush1.bf16.msra.mxu0 %v1405
    %1424 = vmatprep.subr.bf16.mxu0 0
    %1425 = vmatpush1.bf16.msra.mxu0 %v1406
    %1426 = vmatprep.subr.bf16.mxu0 0
    %1427 = vmatpush1.bf16.msra.mxu0 %v1407
    %1428 = vmatprep.subr.bf16.mxu0 0
    %1429 = vmatpush1.bf16.msra.mxu0 %v1408
    %1430 = vmatprep.subr.bf16.mxu0 0
    %1431 = vmatpush1.bf16.msra.mxu0 %v1409
    %1432 = vmatprep.subr.bf16.mxu0 0
    %1433 = vmatpush1.bf16.msra.mxu0 %v1410
    %1434 = vmatprep.subr.bf16.mxu0 0
    %1435 = vmatpush1.bf16.msra.mxu0 %v1411
    %1436 = vmatprep.subr.bf16.mxu0 0
    %1437 = vmatpush1.bf16.msra.mxu0 0
    %1438 = vmatprep.subr.bf16.mxu0 0
    %1439 = vmatpush1.bf16.msra.mxu0 0
    %1440 = vmatprep.subr.bf16.mxu0 0
    %1441 = vmatpush1.bf16.msra.mxu0 0
    %1442 = vmatprep.subr.bf16.mxu0 0
    %1443 = vmatpush1.bf16.msra.mxu0 0
    %1444 = vmatprep.subr.bf16.mxu0 0
    %1445 = vmatpush1.bf16.msra.mxu0 0
    %1446 = vmatprep.subr.bf16.mxu0 0
    %1447 = vmatpush1.bf16.msra.mxu0 0
    %1448 = vmatprep.subr.bf16.mxu0 0
    %1449 = vmatpush1.bf16.msra.mxu0 0
    %1450 = vmatprep.subr.bf16.mxu0 0
    %1451 = vmatpush1.bf16.msra.mxu0 0
    %1452 = vmatprep.mubr.bf16.mxu0 0
    %1453 = vmatmul.mubr.bf16.gmra.mrb[0].mxu0 %v1357
    %v1454 = vpop.f32.mrb[0].mxu0
    %v1455 = vadd.f32 0.0, %v1454
    %v1456 = vpop.f32.mrb[0].mxu0
    %v1457 = vpop.f32.mrb[0].mxu0
    %v1458 = vadd.f32 0.0, %v1457
    %v1459 = vpop.f32.mrb[0].mxu0
    %1460 = vmatprep.mubr.bf16.mxu0 0
    %1461 = vmatmul.mubr.bf16.gmra.mrb[0].mxu0 %v1358
    %v1462 = vpop.f32.mrb[0].mxu0
    %v1463 = vadd.f32 0.0, %v1462
    %v1464 = vpop.f32.mrb[0].mxu0
    %v1465 = vpop.f32.mrb[0].mxu0
    %v1466 = vadd.f32 0.0, %v1465
    %v1467 = vpop.f32.mrb[0].mxu0
    %1468 = vmatprep.mubr.bf16.mxu0 0
    %1469 = vmatmul.mubr.bf16.gmra.mrb[0].mxu0 %v1359
    %v1470 = vpop.f32.mrb[0].mxu0
    %v1471 = vadd.f32 0.0, %v1470
    %v1472 = vpop.f32.mrb[0].mxu0
    %v1473 = vpop.f32.mrb[0].mxu0
    %v1474 = vadd.f32 0.0, %v1473
    %v1475 = vpop.f32.mrb[0].mxu0
    %1476 = vmatprep.mubr.bf16.mxu0 0
    %1477 = vmatmul.mubr.bf16.gmra.mrb[0].mxu0 %v1360
    %v1478 = vpop.f32.mrb[0].mxu0
    %v1479 = vadd.f32 0.0, %v1478
    %v1480 = vpop.f32.mrb[0].mxu0
    %v1481 = vpop.f32.mrb[0].mxu0
    %v1482 = vadd.f32 0.0, %v1481
    %v1483 = vpop.f32.mrb[0].mxu0
    %1484 = vmatprep.mubr.bf16.mxu0 0
    %1485 = vmatmul.mubr.bf16.gmra.mrb[0].mxu0 %v1361
    %v1486 = vpop.f32.mrb[0].mxu0
    %v1487 = vadd.f32 0.0, %v1486
    %v1488 = vpop.f32.mrb[0].mxu0
    %v1489 = vpop.f32.mrb[0].mxu0
    %v1490 = vadd.f32 0.0, %v1489
    %v1491 = vpop.f32.mrb[0].mxu0
    %1492 = vmatprep.mubr.bf16.mxu0 0
    %1493 = vmatmul.mubr.bf16.gmra.mrb[0].mxu0 %v1362
    %v1494 = vpop.f32.mrb[0].mxu0
    %v1495 = vadd.f32 0.0, %v1494
    %v1496 = vpop.f32.mrb[0].mxu0
    %v1497 = vpop.f32.mrb[0].mxu0
    %v1498 = vadd.f32 0.0, %v1497
    %v1499 = vpop.f32.mrb[0].mxu0
    %1500 = vmatprep.mubr.bf16.mxu0 0
    %1501 = vmatmul.mubr.bf16.gmra.mrb[0].mxu0 %v1363
    %v1502 = vpop.f32.mrb[0].mxu0
    %v1503 = vadd.f32 0.0, %v1502
    %v1504 = vpop.f32.mrb[0].mxu0
    %v1505 = vpop.f32.mrb[0].mxu0
    %v1506 = vadd.f32 0.0, %v1505
    %v1507 = vpop.f32.mrb[0].mxu0
    %1508 = vmatprep.mubr.bf16.mxu0 0
    %1509 = vmatmul.mubr.bf16.gmra.mrb[0].mxu0 %v1364
    %v1510 = vpop.f32.mrb[0].mxu0
    %v1511 = vadd.f32 0.0, %v1510
    %v1512 = vpop.f32.mrb[0].mxu0
    %v1513 = vpop.f32.mrb[0].mxu0
    %v1514 = vadd.f32 0.0, %v1513
    %v1515 = vpop.f32.mrb[0].mxu0
    %1516 = vmatprep.mubr.bf16.mxu0 0
    %1517 = vmatmul.mubr.bf16.gmra.mrb[0].mxu0 %v1365
    %v1518 = vpop.f32.mrb[0].mxu0
    %v1519 = vadd.f32 0.0, %v1518
    %v1520 = vpop.f32.mrb[0].mxu0
    %v1521 = vpop.f32.mrb[0].mxu0
    %v1522 = vadd.f32 0.0, %v1521
    %v1523 = vpop.f32.mrb[0].mxu0
    %1524 = vmatprep.mubr.bf16.mxu0 0
    %1525 = vmatmul.mubr.bf16.gmra.mrb[0].mxu0 %v1366
    %v1526 = vpop.f32.mrb[0].mxu0
    %v1527 = vadd.f32 0.0, %v1526
    %v1528 = vpop.f32.mrb[0].mxu0
    %v1529 = vpop.f32.mrb[0].mxu0
    %v1530 = vadd.f32 0.0, %v1529
    %v1531 = vpop.f32.mrb[0].mxu0
    %1532 = vmatprep.mubr.bf16.mxu0 0
    %1533 = vmatmul.mubr.bf16.gmra.mrb[0].mxu0 %v1367
    %v1534 = vpop.f32.mrb[0].mxu0
    %v1535 = vadd.f32 0.0, %v1534
    %v1536 = vpop.f32.mrb[0].mxu0
    %v1537 = vpop.f32.mrb[0].mxu0
    %v1538 = vadd.f32 0.0, %v1537
    %v1539 = vpop.f32.mrb[0].mxu0
    %1540 = vmatprep.mubr.bf16.mxu0 0
    %1541 = vmatmul.mubr.bf16.gmra.mrb[0].mxu0 %v1368
    %v1542 = vpop.f32.mrb[0].mxu0
    %v1543 = vadd.f32 0.0, %v1542
    %v1544 = vpop.f32.mrb[0].mxu0
    %v1545 = vpop.f32.mrb[0].mxu0
    %v1546 = vadd.f32 0.0, %v1545
    %v1547 = vpop.f32.mrb[0].mxu0
    %1548 = vmatprep.mubr.bf16.mxu0 0
    %1549 = vmatmul.mubr.bf16.gmra.mrb[0].mxu0 %v1369
    %v1550 = vpop.f32.mrb[0].mxu0
    %v1551 = vadd.f32 0.0, %v1550
    %v1552 = vpop.f32.mrb[0].mxu0
    %v1553 = vpop.f32.mrb[0].mxu0
    %v1554 = vadd.f32 0.0, %v1553
    %v1555 = vpop.f32.mrb[0].mxu0
    %1556 = vmatprep.mubr.bf16.mxu0 0
    %1557 = vmatmul.mubr.bf16.gmra.mrb[0].mxu0 %v1370
    %v1558 = vpop.f32.mrb[0].mxu0
    %v1559 = vadd.f32 0.0, %v1558
    %v1560 = vpop.f32.mrb[0].mxu0
    %v1561 = vpop.f32.mrb[0].mxu0
    %v1562 = vadd.f32 0.0, %v1561
    %v1563 = vpop.f32.mrb[0].mxu0
    %1564 = vmatprep.mubr.bf16.mxu0 0
    %1565 = vmatmul.mubr.bf16.gmra.mrb[0].mxu0 %v1371
    %v1566 = vpop.f32.mrb[0].mxu0
    %v1567 = vadd.f32 0.0, %v1566
    %v1568 = vpop.f32.mrb[0].mxu0
    %v1569 = vpop.f32.mrb[0].mxu0
    %v1570 = vadd.f32 0.0, %v1569
    %v1571 = vpop.f32.mrb[0].mxu0
    %1572 = vdwg.mxu0
    %v1573 = vlaneseq
    %v1574 = vshrl.u32 %v1573, 7
    %v1575 = vadd.s32 %v1574, 8
    %v1576 = vadd.s32 %v1574, 16
    %v1577 = vadd.s32 %v1574, 24
    %v1578 = vadd.s32 %v1574, 32
    %v1579 = vadd.s32 %v1574, 40
    %v1580 = vadd.s32 %v1574, 48
    %v1581 = vadd.s32 %v1574, 56
    %v1582 = vld [vmem:[%s4] sm:$0x3]
    %v1583 = vlaneseq
    %v1584 = vshrl.u32 %v1583, 7
    %v1585 = vsub.s32 0, %v1584
    %v1586 = vrot.slane %v1582, %v1585
    %v1587 = vlaneseq
    %v1588 = vshrl.u32 %v1587, 7
    %v1589 = vsub.s32 1, %v1588
    %v1590 = vrot.slane %v1582, %v1589
    %vm1591 = vcmp.eq.s32.totalorder %v1574, %v1586
    %vm1592 = vcmp.eq.s32.totalorder %v1574, %v1590
    %vm1593 = vcmp.eq.s32.totalorder %v1575, %v1586
    %vm1594 = vcmp.eq.s32.totalorder %v1575, %v1590
    %vm1595 = vcmp.eq.s32.totalorder %v1576, %v1586
    %vm1596 = vcmp.eq.s32.totalorder %v1576, %v1590
    %vm1597 = vcmp.eq.s32.totalorder %v1577, %v1586
    %vm1598 = vcmp.eq.s32.totalorder %v1577, %v1590
    %vm1599 = vcmp.eq.s32.totalorder %v1578, %v1586
    %vm1600 = vcmp.eq.s32.totalorder %v1578, %v1590
    %vm1601 = vcmp.eq.s32.totalorder %v1579, %v1586
    %vm1602 = vcmp.eq.s32.totalorder %v1579, %v1590
    %vm1603 = vcmp.eq.s32.totalorder %v1580, %v1586
    %vm1604 = vcmp.eq.s32.totalorder %v1580, %v1590
    %vm1605 = vcmp.eq.s32.totalorder %v1581, %v1586
    %vm1606 = vcmp.eq.s32.totalorder %v1581, %v1590
    %v1607 = vsel %vm1591, 1, 0
    %v1608 = vsel %vm1592, 1, 0
    %v1609 = vsel %vm1593, 1, 0
    %v1610 = vsel %vm1594, 1, 0
    %v1611 = vsel %vm1595, 1, 0
    %v1612 = vsel %vm1596, 1, 0
    %v1613 = vsel %vm1597, 1, 0
    %v1614 = vsel %vm1598, 1, 0
    %v1615 = vsel %vm1599, 1, 0
    %v1616 = vsel %vm1600, 1, 0
    %v1617 = vsel %vm1601, 1, 0
    %v1618 = vsel %vm1602, 1, 0
    %v1619 = vsel %vm1603, 1, 0
    %v1620 = vsel %vm1604, 1, 0
    %v1621 = vsel %vm1605, 1, 0
    %v1622 = vsel %vm1606, 1, 0
    %v1623 = vcvt.s32.f32 %v1607
    %v1624 = vcvt.s32.f32 %v1608
    %v1625 = vcvt.s32.f32 %v1609
    %v1626 = vcvt.s32.f32 %v1610
    %v1627 = vcvt.s32.f32 %v1611
    %v1628 = vcvt.s32.f32 %v1612
    %v1629 = vcvt.s32.f32 %v1613
    %v1630 = vcvt.s32.f32 %v1614
    %v1631 = vcvt.s32.f32 %v1615
    %v1632 = vcvt.s32.f32 %v1616
    %v1633 = vcvt.s32.f32 %v1617
    %v1634 = vcvt.s32.f32 %v1618
    %v1635 = vcvt.s32.f32 %v1619
    %v1636 = vcvt.s32.f32 %v1620
    %v1637 = vcvt.s32.f32 %v1621
    %v1638 = vcvt.s32.f32 %v1622
    %v1639 = vpack.c.bf16 %v1625, %v1623
    %v1640 = vpack.c.bf16 %v1626, %v1624
    %v1641 = vpack.c.bf16 %v1629, %v1627
    %v1642 = vpack.c.bf16 %v1630, %v1628
    %v1643 = vpack.c.bf16 %v1633, %v1631
    %v1644 = vpack.c.bf16 %v1634, %v1632
    %v1645 = vpack.c.bf16 %v1637, %v1635
    %v1646 = vpack.c.bf16 %v1638, %v1636
    %v1647 = vpack.c.bf16 %v1458, %v1455
    %v1648 = vpack.c.bf16 %v1466, %v1463
    %v1649 = vpack.c.bf16 %v1474, %v1471
    %v1650 = vpack.c.bf16 %v1482, %v1479
    %v1651 = vpack.c.bf16 %v1490, %v1487
    %v1652 = vpack.c.bf16 %v1498, %v1495
    %v1653 = vpack.c.bf16 %v1506, %v1503
    %v1654 = vpack.c.bf16 %v1514, %v1511
    %v1655 = vpack.c.bf16 %v1522, %v1519
    %v1656 = vpack.c.bf16 %v1530, %v1527
    %v1657 = vpack.c.bf16 %v1538, %v1535
    %v1658 = vpack.c.bf16 %v1546, %v1543
    %v1659 = vpack.c.bf16 %v1554, %v1551
    %v1660 = vpack.c.bf16 %v1562, %v1559
    %v1661 = vpack.c.bf16 %v1570, %v1567
    %vm1662 = vcmask 916480
    %v1664 = vsel %vm1662, %v1640, 0
    %v1667 = vsel %vm1662, %v1642, 0
    %v1670 = vsel %vm1662, %v1644, 0
    %v1673 = vsel %vm1662, %v1646, 0
    %1675 = vmatprep.subr.bf16.mxu0 0
    %1676 = vmatpush1.bf16.msra.mxu0 %v1647
    %1677 = vmatprep.subr.bf16.mxu0 0
    %1678 = vmatpush1.bf16.msra.mxu0 %v1648
    %1679 = vmatprep.subr.bf16.mxu0 0
    %1680 = vmatpush1.bf16.msra.mxu0 %v1649
    %1681 = vmatprep.subr.bf16.mxu0 0
    %1682 = vmatpush1.bf16.msra.mxu0 %v1650
    %1683 = vmatprep.subr.bf16.mxu0 0
    %1684 = vmatpush1.bf16.msra.mxu0 %v1651
    %1685 = vmatprep.subr.bf16.mxu0 0
    %1686 = vmatpush1.bf16.msra.mxu0 %v1652
    %1687 = vmatprep.subr.bf16.mxu0 0
    %1688 = vmatpush1.bf16.msra.mxu0 %v1653
    %1689 = vmatprep.subr.bf16.mxu0 0
    %1690 = vmatpush1.bf16.msra.mxu0 %v1654
    %1691 = vmatprep.subr.bf16.mxu0 0
    %1692 = vmatpush1.bf16.msra.mxu0 %v1655
    %1693 = vmatprep.subr.bf16.mxu0 0
    %1694 = vmatpush1.bf16.msra.mxu0 %v1656
    %1695 = vmatprep.subr.bf16.mxu0 0
    %1696 = vmatpush1.bf16.msra.mxu0 %v1657
    %1697 = vmatprep.subr.bf16.mxu0 0
    %1698 = vmatpush1.bf16.msra.mxu0 %v1658
    %1699 = vmatprep.subr.bf16.mxu0 0
    %1700 = vmatpush1.bf16.msra.mxu0 %v1659
    %1701 = vmatprep.subr.bf16.mxu0 0
    %1702 = vmatpush1.bf16.msra.mxu0 %v1660
    %1703 = vmatprep.subr.bf16.mxu0 0
    %1704 = vmatpush1.bf16.msra.mxu0 %v1661
    %1705 = vmatprep.subr.bf16.mxu0 0
    %1706 = vmatpush1.bf16.msra.mxu0 0
    %1707 = vmatprep.mubr.bf16.mxu0 %v1664
    %1708 = vmatmul.mubr.bf16.gmra.mrb[0].mxu0 %v1639
    %v1709 = vpop.f32.mrb[0].mxu0
    %v1710 = vadd.f32 0.0, %v1709
    %v1711 = vpop.f32.mrb[0].mxu0
    %v1712 = vpop.f32.mrb[0].mxu0
    %v1713 = vadd.f32 0.0, %v1712
    %v1714 = vpop.f32.mrb[0].mxu0
    %1715 = vmatprep.mubr.bf16.mxu0 %v1667
    %1716 = vmatmul.mubr.bf16.gmra.mrb[0].mxu0 %v1641
    %v1717 = vpop.f32.mrb[0].mxu0
    %v1718 = vadd.f32 0.0, %v1717
    %v1719 = vpop.f32.mrb[0].mxu0
    %v1720 = vpop.f32.mrb[0].mxu0
    %v1721 = vadd.f32 0.0, %v1720
    %v1722 = vpop.f32.mrb[0].mxu0
    %1723 = vmatprep.mubr.bf16.mxu0 %v1670
    %1724 = vmatmul.mubr.bf16.gmra.mrb[0].mxu0 %v1643
    %v1725 = vpop.f32.mrb[0].mxu0
    %v1726 = vadd.f32 0.0, %v1725
    %v1727 = vpop.f32.mrb[0].mxu0
    %v1728 = vpop.f32.mrb[0].mxu0
    %v1729 = vadd.f32 0.0, %v1728
    %v1730 = vpop.f32.mrb[0].mxu0
    %1731 = vmatprep.mubr.bf16.mxu0 %v1673
    %1732 = vmatmul.mubr.bf16.gmra.mrb[0].mxu0 %v1645
    %v1733 = vpop.f32.mrb[0].mxu0
    %v1734 = vadd.f32 0.0, %v1733
    %v1735 = vpop.f32.mrb[0].mxu0
    %v1736 = vpop.f32.mrb[0].mxu0
    %v1737 = vadd.f32 0.0, %v1736
    %v1738 = vpop.f32.mrb[0].mxu0
    %1739 = vdwg.mxu0
    %v1740 = vadd.f32 %v331, %v1710
    %v1741 = vadd.f32 %v332, %v1713
    %v1742 = vadd.f32 %v333, %v1718
    %v1743 = vadd.f32 %v334, %v1721
    %v1744 = vadd.f32 %v335, %v1726
    %v1745 = vadd.f32 %v336, %v1729
    %v1746 = vadd.f32 %v337, %v1734
    %v1747 = vadd.f32 %v338, %v1737
    %v1748 = vld [vmem:[%s14] sm:$0xf]
    %v1749 = vld [vmem:[%s14 + $0x4] sm:$0xf]
    %v1750 = vld [vmem:[%s14 + $0x8] sm:$0xf]
    %v1751 = vld [vmem:[%s14 + $0xc] sm:$0xf]
    %v1752 = vpack.c.bf16 %v1741, %v1740
    %v1753 = vpack.c.bf16 %v1743, %v1742
    %v1754 = vpack.c.bf16 %v1745, %v1744
    %v1755 = vpack.c.bf16 %v1747, %v1746
    %v1756 = vld [vmem:[%s15] sm:$0x1]
    %v1758 = vlaneseq
    %v1759 = vshrl.u32 %v1758, 7
    %v1760 = vsub.s32 0, %v1759
    %v1761 = vrot.slane %v1756, %v1760
    %v1767 = vunpack.c.l.b16 %v1748
    %v1768 = vunpack.c.l.b16 %v1749
    %v1769 = vunpack.c.l.b16 %v1750
    %v1770 = vunpack.c.l.b16 %v1751
    %v1771 = vpack.c.b16 %v1768, %v1767
    %v1772 = vpack.c.b16 %v1770, %v1769
    %v1776 = vsel %vm205, %v1752, 0
    %v1779 = vsel %vm205, %v1753, 0
    %v1782 = vsel %vm205, %v1754, 0
    %v1785 = vsel %vm205, %v1755, 0
    %1787 = vmatprep.subr.bf16.mxu0 0
    %1788 = vmatpush1.bf16.msra.mxu0 %v1771
    %1789 = vmatprep.subr.bf16.mxu0 0
    %1790 = vmatpush1.bf16.msra.mxu0 %v1772
    %1791 = vmatprep.subr.bf16.mxu0 0
    %1792 = vmatpush1.bf16.msra.mxu0 0
    %1793 = vmatprep.subr.bf16.mxu0 0
    %1794 = vmatpush1.bf16.msra.mxu0 0
    %1795 = vmatprep.subr.bf16.mxu0 0
    %1796 = vmatpush1.bf16.msra.mxu0 0
    %1797 = vmatprep.subr.bf16.mxu0 0
    %1798 = vmatpush1.bf16.msra.mxu0 0
    %1799 = vmatprep.subr.bf16.mxu0 0
    %1800 = vmatpush1.bf16.msra.mxu0 0
    %1801 = vmatprep.subr.bf16.mxu0 0
    %1802 = vmatpush1.bf16.msra.mxu0 0
    %1803 = vmatprep.subr.bf16.mxu0 0
    %1804 = vmatpush1.bf16.msra.mxu0 0
    %1805 = vmatprep.subr.bf16.mxu0 0
    %1806 = vmatpush1.bf16.msra.mxu0 0
    %1807 = vmatprep.subr.bf16.mxu0 0
    %1808 = vmatpush1.bf16.msra.mxu0 0
    %1809 = vmatprep.subr.bf16.mxu0 0
    %1810 = vmatpush1.bf16.msra.mxu0 0
    %1811 = vmatprep.subr.bf16.mxu0 0
    %1812 = vmatpush1.bf16.msra.mxu0 0
    %1813 = vmatprep.subr.bf16.mxu0 0
    %1814 = vmatpush1.bf16.msra.mxu0 0
    %1815 = vmatprep.subr.bf16.mxu0 0
    %1816 = vmatpush1.bf16.msra.mxu0 0
    %1817 = vmatprep.subr.bf16.mxu0 0
    %1818 = vmatpush1.bf16.msra.mxu0 0
    %1819 = vmatprep.mubr.bf16.mxu0 0
    %1820 = vmatmul.mubr.bf16.gmra.mrb[0].mxu0 %v1776
    %v1821 = vpop.f32.mrb[0].mxu0
    %v1822 = vadd.f32 %v1761, %v1821
    %v1823 = vpop.f32.mrb[0].mxu0
    %v1824 = vpop.f32.mrb[0].mxu0
    %v1825 = vadd.f32 %v1761, %v1824
    %v1826 = vpop.f32.mrb[0].mxu0
    %1827 = vmatprep.mubr.bf16.mxu0 0
    %1828 = vmatmul.mubr.bf16.gmra.mrb[0].mxu0 %v1779
    %v1829 = vpop.f32.mrb[0].mxu0
    %v1830 = vadd.f32 %v1761, %v1829
    %v1831 = vpop.f32.mrb[0].mxu0
    %v1832 = vpop.f32.mrb[0].mxu0
    %v1833 = vadd.f32 %v1761, %v1832
    %v1834 = vpop.f32.mrb[0].mxu0
    %1835 = vmatprep.mubr.bf16.mxu0 0
    %1836 = vmatmul.mubr.bf16.gmra.mrb[0].mxu0 %v1782
    %v1837 = vpop.f32.mrb[0].mxu0
    %v1838 = vadd.f32 %v1761, %v1837
    %v1839 = vpop.f32.mrb[0].mxu0
    %v1840 = vpop.f32.mrb[0].mxu0
    %v1841 = vadd.f32 %v1761, %v1840
    %v1842 = vpop.f32.mrb[0].mxu0
    %1843 = vmatprep.mubr.bf16.mxu0 0
    %1844 = vmatmul.mubr.bf16.gmra.mrb[0].mxu0 %v1785
    %v1845 = vpop.f32.mrb[0].mxu0
    %v1846 = vadd.f32 %v1761, %v1845
    %v1847 = vpop.f32.mrb[0].mxu0
    %v1848 = vpop.f32.mrb[0].mxu0
    %v1849 = vadd.f32 %v1761, %v1848
    %v1850 = vpop.f32.mrb[0].mxu0
    %1851 = vdwg.mxu0
    %v1852 = vxor.u32 %v1822, 2147483648
    %v1853 = vxor.u32 %v1825, 2147483648
    %v1854 = vxor.u32 %v1830, 2147483648
    %v1855 = vxor.u32 %v1833, 2147483648
    %v1856 = vxor.u32 %v1838, 2147483648
    %v1857 = vxor.u32 %v1841, 2147483648
    %v1858 = vxor.u32 %v1846, 2147483648
    %v1859 = vxor.u32 %v1849, 2147483648
    %v1860 = vmul.f32 %v1852, 1.442695
    %v1861 = vpow.pop %v1860
    %v1862 = vmul.f32 %v1853, 1.442695
    %v1863 = vpow.pop %v1862
    %v1864 = vmul.f32 %v1854, 1.442695
    %v1865 = vpow.pop %v1864
    %v1866 = vmul.f32 %v1855, 1.442695
    %v1867 = vpow.pop %v1866
    %v1868 = vmul.f32 %v1856, 1.442695
    %v1869 = vpow.pop %v1868
    %v1870 = vmul.f32 %v1857, 1.442695
    %v1871 = vpow.pop %v1870
    %v1872 = vmul.f32 %v1858, 1.442695
    %v1873 = vpow.pop %v1872
    %v1874 = vmul.f32 %v1859, 1.442695
    %v1875 = vpow.pop %v1874
    %v1876 = vadd.f32 %v1861, 1.0
    %v1877 = vadd.f32 %v1863, 1.0
    %v1878 = vadd.f32 %v1865, 1.0
    %v1879 = vadd.f32 %v1867, 1.0
    %v1880 = vadd.f32 %v1869, 1.0
    %v1881 = vadd.f32 %v1871, 1.0
    %v1882 = vadd.f32 %v1873, 1.0
    %v1883 = vadd.f32 %v1875, 1.0
    %v1884 = vrcp.pop %v1876
    %v1885 = vmul.f32 1.0, %v1884
    %v1886 = vrcp.pop %v1877
    %v1887 = vmul.f32 1.0, %v1886
    %v1888 = vrcp.pop %v1878
    %v1889 = vmul.f32 1.0, %v1888
    %v1890 = vrcp.pop %v1879
    %v1891 = vmul.f32 1.0, %v1890
    %v1892 = vrcp.pop %v1880
    %v1893 = vmul.f32 1.0, %v1892
    %v1894 = vrcp.pop %v1881
    %v1895 = vmul.f32 1.0, %v1894
    %v1896 = vrcp.pop %v1882
    %v1897 = vmul.f32 1.0, %v1896
    %v1898 = vrcp.pop %v1883
    %v1899 = vmul.f32 1.0, %v1898
    %v1900 = vmul.f32 %v1822, %v1885
    %v1901 = vmul.f32 %v1825, %v1887
    %v1902 = vmul.f32 %v1830, %v1889
    %v1903 = vmul.f32 %v1833, %v1891
    %v1904 = vmul.f32 %v1838, %v1893
    %v1905 = vmul.f32 %v1841, %v1895
    %v1906 = vmul.f32 %v1846, %v1897
    %v1907 = vmul.f32 %v1849, %v1899
    %1908 = vst.msk [vmem:[#allocation2] sm:$0xff] %vm205, %v1900
    %1909 = vst.msk [vmem:[#allocation2 + $0x8] sm:$0xff] %vm205, %v1901
    %1910 = vst.msk [vmem:[#allocation2 + $0x10] sm:$0xff] %vm205, %v1902
    %1911 = vst.msk [vmem:[#allocation2 + $0x18] sm:$0xff] %vm205, %v1903
    %1912 = vst.msk [vmem:[#allocation2 + $0x20] sm:$0xff] %vm205, %v1904
    %1913 = vst.msk [vmem:[#allocation2 + $0x28] sm:$0xff] %vm205, %v1905
    %1914 = vst.msk [vmem:[#allocation2 + $0x30] sm:$0xff] %vm205, %v1906
    %vm1915 = vcmask 257024
    %1916 = vst.msk [vmem:[#allocation2 + $0x38] sm:$0xf] %vm1915, %v1907
    %v1917 = vld [vmem:[%s7] sm:$0x3]
    %v1918 = vld [vmem:[%s5] sm:$0x1]
    %v1919 = vld [vmem:[%s6] sm:$0x1]
    %v1920 = vld [vmem:[%s16] sm:$0x3]
    %v1922 = vsel %vm109, %v1920, 0
    %1924 = vmatprep.subr.bf16.mxu0 0
    %1925 = vmatpush1.bf16.msra.mxu0 %v1922
    %1926 = vmatprep.subr.bf16.mxu0 0
    %1927 = vmatpush1.bf16.msra.mxu0 0
    %1928 = vmatprep.subr.bf16.mxu0 0
    %1929 = vmatpush1.bf16.msra.mxu0 0
    %1930 = vmatprep.subr.bf16.mxu0 0
    %1931 = vmatpush1.bf16.msra.mxu0 0
    %1932 = vmatprep.subr.bf16.mxu0 0
    %1933 = vmatpush1.bf16.msra.mxu0 0
    %1934 = vmatprep.subr.bf16.mxu0 0
    %1935 = vmatpush1.bf16.msra.mxu0 0
    %1936 = vmatprep.subr.bf16.mxu0 0
    %1937 = vmatpush1.bf16.msra.mxu0 0
    %1938 = vmatprep.subr.bf16.mxu0 0
    %1939 = vmatpush1.bf16.msra.mxu0 0
    %1940 = vmatprep.subr.bf16.mxu0 0
    %1941 = vmatpush1.bf16.msra.mxu0 0
    %1942 = vmatprep.subr.bf16.mxu0 0
    %1943 = vmatpush1.bf16.msra.mxu0 0
    %1944 = vmatprep.subr.bf16.mxu0 0
    %1945 = vmatpush1.bf16.msra.mxu0 0
    %1946 = vmatprep.subr.bf16.mxu0 0
    %1947 = vmatpush1.bf16.msra.mxu0 0
    %1948 = vmatprep.subr.bf16.mxu0 0
    %1949 = vmatpush1.bf16.msra.mxu0 0
    %1950 = vmatprep.subr.bf16.mxu0 0
    %1951 = vmatpush1.bf16.msra.mxu0 0
    %1952 = vmatprep.subr.bf16.mxu0 0
    %1953 = vmatpush1.bf16.msra.mxu0 0
    %1954 = vmatprep.subr.bf16.mxu0 0
    %1955 = vmatpush1.bf16.msra.mxu0 0
    %1956 = vmatprep.mubr.bf16.mxu0 0
    %1957 = vmatmul.mubr.bf16.gmra.mrb[0].mxu0 %v98
    %v1958 = vpop.f32.mrb[0].mxu0
    %v1959 = vadd.f32 0.0, %v1958
    %v1960 = vpop.f32.mrb[0].mxu0
    %v1961 = vpop.f32.mrb[0].mxu0
    %v1962 = vadd.f32 0.0, %v1961
    %v1963 = vpop.f32.mrb[0].mxu0
    %1964 = vmatprep.mubr.bf16.mxu0 0
    %1965 = vmatmul.mubr.bf16.gmra.mrb[0].mxu0 %v101
    %v1966 = vpop.f32.mrb[0].mxu0
    %v1967 = vadd.f32 0.0, %v1966
    %v1968 = vpop.f32.mrb[0].mxu0
    %v1969 = vpop.f32.mrb[0].mxu0
    %v1970 = vadd.f32 0.0, %v1969
    %v1971 = vpop.f32.mrb[0].mxu0
    %1972 = vmatprep.mubr.bf16.mxu0 0
    %1973 = vmatmul.mubr.bf16.gmra.mrb[0].mxu0 %v104
    %v1974 = vpop.f32.mrb[0].mxu0
    %v1975 = vadd.f32 0.0, %v1974
    %v1976 = vpop.f32.mrb[0].mxu0
    %v1977 = vpop.f32.mrb[0].mxu0
    %v1978 = vadd.f32 0.0, %v1977
    %v1979 = vpop.f32.mrb[0].mxu0
    %1980 = vmatprep.mubr.bf16.mxu0 0
    %1981 = vmatmul.mubr.bf16.gmra.mrb[0].mxu0 %v107
    %v1982 = vpop.f32.mrb[0].mxu0
    %v1983 = vadd.f32 0.0, %v1982
    %v1984 = vpop.f32.mrb[0].mxu0
    %v1985 = vpop.f32.mrb[0].mxu0
    %v1986 = vadd.f32 0.0, %v1985
    %v1987 = vpop.f32.mrb[0].mxu0
    %1988 = vdwg.mxu0
    %v1989 = vmul.f32 %v1959, %v1900
    %v1990 = vmul.f32 %v1962, %v1901
    %v1991 = vmul.f32 %v1967, %v1902
    %v1992 = vmul.f32 %v1970, %v1903
    %v1993 = vmul.f32 %v1975, %v1904
    %v1994 = vmul.f32 %v1978, %v1905
    %v1995 = vmul.f32 %v1983, %v1906
    %v1996 = vmul.f32 %v1986, %v1907
    %v1997 = vlaneseq
    %v1998 = vshrl.u32 %v1997, 7
    %v1999 = vsub.s32 0, %v1998
    %v2000 = vrot.slane %v1918, %v1999
    %vm2001 = vcmp.eq.s32.totalorder %v1574, %v2000
    %vm2002 = vcmp.eq.s32.totalorder %v1575, %v2000
    %v2003 = vsel %vm2001, 1, 0
    %v2004 = vsel %vm2002, 1, 0
    %v2005 = vcvt.s32.f32 %v2003
    %v2006 = vcvt.s32.f32 %v2004
    %v2007 = vpack.c.bf16 %v2006, %v2005
    %v2008 = vpack.c.bf16 %v1990, %v1989
    %v2009 = vpack.c.bf16 %v1992, %v1991
    %v2010 = vpack.c.bf16 %v1994, %v1993
    %v2011 = vpack.c.bf16 %v1996, %v1995
    %v2013 = vsel %vm625, %v2007, 0
    %v2016 = vsel %vm671, %v2011, 0
    %2018 = vmatprep.subr.bf16.mxu0 0
    %2019 = vmatpush1.bf16.msra.mxu0 %v2008
    %2020 = vmatprep.subr.bf16.mxu0 0
    %2021 = vmatpush1.bf16.msra.mxu0 %v2009
    %2022 = vmatprep.subr.bf16.mxu0 0
    %2023 = vmatpush1.bf16.msra.mxu0 %v2010
    %2024 = vmatprep.subr.bf16.mxu0 0
    %2025 = vmatpush1.bf16.msra.mxu0 %v2016
    %2026 = vmatprep.subr.bf16.mxu0 0
    %2027 = vmatpush1.bf16.msra.mxu0 0
    %2028 = vmatprep.subr.bf16.mxu0 0
    %2029 = vmatpush1.bf16.msra.mxu0 0
    %2030 = vmatprep.subr.bf16.mxu0 0
    %2031 = vmatpush1.bf16.msra.mxu0 0
    %2032 = vmatprep.subr.bf16.mxu0 0
    %2033 = vmatpush1.bf16.msra.mxu0 0
    %2034 = vmatprep.subr.bf16.mxu0 0
    %2035 = vmatpush1.bf16.msra.mxu0 0
    %2036 = vmatprep.subr.bf16.mxu0 0
    %2037 = vmatpush1.bf16.msra.mxu0 0
    %2038 = vmatprep.subr.bf16.mxu0 0
    %2039 = vmatpush1.bf16.msra.mxu0 0
    %2040 = vmatprep.subr.bf16.mxu0 0
    %2041 = vmatpush1.bf16.msra.mxu0 0
    %2042 = vmatprep.subr.bf16.mxu0 0
    %2043 = vmatpush1.bf16.msra.mxu0 0
    %2044 = vmatprep.subr.bf16.mxu0 0
    %2045 = vmatpush1.bf16.msra.mxu0 0
    %2046 = vmatprep.subr.bf16.mxu0 0
    %2047 = vmatpush1.bf16.msra.mxu0 0
    %2048 = vmatprep.subr.bf16.mxu0 0
    %2049 = vmatpush1.bf16.msra.mxu0 0
    %2050 = vmatprep.mubr.bf16.mxu0 0
    %2051 = vmatmul.mubr.bf16.gmra.mrb[0].mxu0 %v2013
    %v2052 = vpop.f32.mrb[0].mxu0
    %v2053 = vadd.f32 0.0, %v2052
    %v2054 = vpop.f32.mrb[0].mxu0
    %v2055 = vpop.f32.mrb[0].mxu0
    %v2056 = vadd.f32 0.0, %v2055
    %v2057 = vpop.f32.mrb[0].mxu0
    %2058 = vdwg.mxu0
    %v2059 = vld [vmem:[%s17] sm:$0xf]
    %v2060 = vld [vmem:[%s17 + $0x4] sm:$0xf]
    %v2061 = vld [vmem:[%s17 + $0x8] sm:$0xf]
    %v2062 = vld [vmem:[%s17 + $0xc] sm:$0xf]
    %v2063 = vpack.c.bf16 %v2056, %v2053
    %v2064 = vld [vmem:[%s18] sm:$0x1]
    %v2066 = vlaneseq
    %v2067 = vshrl.u32 %v2066, 7
    %v2068 = vsub.s32 0, %v2067
    %v2069 = vrot.slane %v2064, %v2068
    %v2075 = vunpack.c.l.b16 %v2059
    %v2076 = vunpack.c.l.b16 %v2060
    %v2077 = vunpack.c.l.b16 %v2061
    %v2078 = vunpack.c.l.b16 %v2062
    %v2079 = vpack.c.b16 %v2076, %v2075
    %v2080 = vpack.c.b16 %v2078, %v2077
    %v2084 = vsel %vm205, %v2063, 0
    %2086 = vmatprep.subr.bf16.mxu0 0
    %2087 = vmatpush1.bf16.msra.mxu0 %v2079
    %2088 = vmatprep.subr.bf16.mxu0 0
    %2089 = vmatpush1.bf16.msra.mxu0 %v2080
    %2090 = vmatprep.subr.bf16.mxu0 0
    %2091 = vmatpush1.bf16.msra.mxu0 0
    %2092 = vmatprep.subr.bf16.mxu0 0
    %2093 = vmatpush1.bf16.msra.mxu0 0
    %2094 = vmatprep.subr.bf16.mxu0 0
    %2095 = vmatpush1.bf16.msra.mxu0 0
    %2096 = vmatprep.subr.bf16.mxu0 0
    %2097 = vmatpush1.bf16.msra.mxu0 0
    %2098 = vmatprep.subr.bf16.mxu0 0
    %2099 = vmatpush1.bf16.msra.mxu0 0
    %2100 = vmatprep.subr.bf16.mxu0 0
    %2101 = vmatpush1.bf16.msra.mxu0 0
    %2102 = vmatprep.subr.bf16.mxu0 0
    %2103 = vmatpush1.bf16.msra.mxu0 0
    %2104 = vmatprep.subr.bf16.mxu0 0
    %2105 = vmatpush1.bf16.msra.mxu0 0
    %2106 = vmatprep.subr.bf16.mxu0 0
    %2107 = vmatpush1.bf16.msra.mxu0 0
    %2108 = vmatprep.subr.bf16.mxu0 0
    %2109 = vmatpush1.bf16.msra.mxu0 0
    %2110 = vmatprep.subr.bf16.mxu0 0
    %2111 = vmatpush1.bf16.msra.mxu0 0
    %2112 = vmatprep.subr.bf16.mxu0 0
    %2113 = vmatpush1.bf16.msra.mxu0 0
    %2114 = vmatprep.subr.bf16.mxu0 0
    %2115 = vmatpush1.bf16.msra.mxu0 0
    %2116 = vmatprep.subr.bf16.mxu0 0
    %2117 = vmatpush1.bf16.msra.mxu0 0
    %2118 = vmatprep.mubr.bf16.mxu0 0
    %2119 = vmatmul.mubr.bf16.gmra.mrb[0].mxu0 %v2084
    %v2120 = vpop.f32.mrb[0].mxu0
    %v2121 = vadd.f32 %v2069, %v2120
    %v2122 = vpop.f32.mrb[0].mxu0
    %v2123 = vpop.f32.mrb[0].mxu0
    %v2124 = vadd.f32 %v2069, %v2123
    %v2125 = vpop.f32.mrb[0].mxu0
    %2126 = vdwg.mxu0
    %v2127 = vxor.u32 %v2121, 2147483648
    %v2128 = vxor.u32 %v2124, 2147483648
    %v2129 = vmul.f32 %v2127, 1.442695
    %v2130 = vpow.pop %v2129
    %v2131 = vmul.f32 %v2128, 1.442695
    %v2132 = vpow.pop %v2131
    %v2133 = vadd.f32 %v2130, 1.0
    %v2134 = vadd.f32 %v2132, 1.0
    %v2135 = vrcp.pop %v2133
    %v2136 = vmul.f32 1.0, %v2135
    %v2137 = vrcp.pop %v2134
    %v2138 = vmul.f32 1.0, %v2137
    %v2139 = vmul.f32 %v2121, %v2136
    %v2140 = vmul.f32 %v2124, %v2138
    %v2141 = vld [vmem:[%s19] sm:$0xf]
    %v2142 = vld [vmem:[%s19 + $0x4] sm:$0xf]
    %v2143 = vld [vmem:[%s19 + $0x8] sm:$0xf]
    %v2144 = vld [vmem:[%s19 + $0xc] sm:$0xf]
    %v2145 = vpack.c.bf16 %v2140, %v2139
    %v2146 = vld [vmem:[%s20] sm:$0x1]
    %v2148 = vlaneseq
    %v2149 = vshrl.u32 %v2148, 7
    %v2150 = vsub.s32 0, %v2149
    %v2151 = vrot.slane %v2146, %v2150
    %v2157 = vunpack.c.l.b16 %v2141
    %v2158 = vunpack.c.l.b16 %v2142
    %v2159 = vunpack.c.l.b16 %v2143
    %v2160 = vunpack.c.l.b16 %v2144
    %v2161 = vpack.c.b16 %v2158, %v2157
    %v2162 = vpack.c.b16 %v2160, %v2159
    %v2166 = vsel %vm205, %v2145, 0
    %2168 = vmatprep.subr.bf16.mxu0 0
    %2169 = vmatpush1.bf16.msra.mxu0 %v2161
    %2170 = vmatprep.subr.bf16.mxu0 0
    %2171 = vmatpush1.bf16.msra.mxu0 %v2162
    %2172 = vmatprep.subr.bf16.mxu0 0
    %2173 = vmatpush1.bf16.msra.mxu0 0
    %2174 = vmatprep.subr.bf16.mxu0 0
    %2175 = vmatpush1.bf16.msra.mxu0 0
    %2176 = vmatprep.subr.bf16.mxu0 0
    %2177 = vmatpush1.bf16.msra.mxu0 0
    %2178 = vmatprep.subr.bf16.mxu0 0
    %2179 = vmatpush1.bf16.msra.mxu0 0
    %2180 = vmatprep.subr.bf16.mxu0 0
    %2181 = vmatpush1.bf16.msra.mxu0 0
    %2182 = vmatprep.subr.bf16.mxu0 0
    %2183 = vmatpush1.bf16.msra.mxu0 0
    %2184 = vmatprep.subr.bf16.mxu0 0
    %2185 = vmatpush1.bf16.msra.mxu0 0
    %2186 = vmatprep.subr.bf16.mxu0 0
    %2187 = vmatpush1.bf16.msra.mxu0 0
    %2188 = vmatprep.subr.bf16.mxu0 0
    %2189 = vmatpush1.bf16.msra.mxu0 0
    %2190 = vmatprep.subr.bf16.mxu0 0
    %2191 = vmatpush1.bf16.msra.mxu0 0
    %2192 = vmatprep.subr.bf16.mxu0 0
    %2193 = vmatpush1.bf16.msra.mxu0 0
    %2194 = vmatprep.subr.bf16.mxu0 0
    %2195 = vmatpush1.bf16.msra.mxu0 0
    %2196 = vmatprep.subr.bf16.mxu0 0
    %2197 = vmatpush1.bf16.msra.mxu0 0
    %2198 = vmatprep.subr.bf16.mxu0 0
    %2199 = vmatpush1.bf16.msra.mxu0 0
    %2200 = vmatprep.mubr.bf16.mxu0 0
    %2201 = vmatmul.mubr.bf16.gmra.mrb[0].mxu0 %v2166
    %v2202 = vpop.f32.mrb[0].mxu0
    %v2203 = vadd.f32 %v2151, %v2202
    %v2204 = vpop.f32.mrb[0].mxu0
    %v2205 = vpop.f32.mrb[0].mxu0
    %v2206 = vadd.f32 %v2151, %v2205
    %v2207 = vpop.f32.mrb[0].mxu0
    %2208 = vdwg.mxu0
    %v2209 = vxor.u32 %v2203, 2147483648
    %v2210 = vxor.u32 %v2206, 2147483648
    %v2211 = vmul.f32 %v2209, 1.442695
    %v2212 = vpow.pop %v2211
    %v2213 = vmul.f32 %v2210, 1.442695
    %v2214 = vpow.pop %v2213
    %v2215 = vadd.f32 %v2212, 1.0
    %v2216 = vadd.f32 %v2214, 1.0
    %v2217 = vrcp.pop %v2215
    %v2218 = vmul.f32 1.0, %v2217
    %v2219 = vrcp.pop %v2216
    %v2220 = vmul.f32 1.0, %v2219
    %v2221 = vmul.f32 %v2203, %v2218
    %v2222 = vmul.f32 %v2206, %v2220
    %v2223 = vld [vmem:[%s21] sm:$0xf]
    %v2224 = vld [vmem:[%s21 + $0x4] sm:$0xf]
    %v2225 = vld [vmem:[%s21 + $0x8] sm:$0xf]
    %v2226 = vld [vmem:[%s21 + $0xc] sm:$0xf]
    %v2227 = vpack.c.bf16 %v2222, %v2221
    %v2232 = vunpack.c.l.b16 %v2223
    %v2233 = vunpack.c.l.b16 %v2224
    %v2234 = vunpack.c.l.b16 %v2225
    %v2235 = vunpack.c.l.b16 %v2226
    %v2236 = vpack.c.b16 %v2233, %v2232
    %v2237 = vpack.c.b16 %v2235, %v2234
    %v2241 = vsel %vm205, %v2227, 0
    %2243 = vmatprep.subr.bf16.mxu0 0
    %2244 = vmatpush1.bf16.msra.mxu0 %v2236
    %2245 = vmatprep.subr.bf16.mxu0 0
    %2246 = vmatpush1.bf16.msra.mxu0 %v2237
    %2247 = vmatprep.subr.bf16.mxu0 0
    %2248 = vmatpush1.bf16.msra.mxu0 0
    %2249 = vmatprep.subr.bf16.mxu0 0
    %2250 = vmatpush1.bf16.msra.mxu0 0
    %2251 = vmatprep.subr.bf16.mxu0 0
    %2252 = vmatpush1.bf16.msra.mxu0 0
    %2253 = vmatprep.subr.bf16.mxu0 0
    %2254 = vmatpush1.bf16.msra.mxu0 0
    %2255 = vmatprep.subr.bf16.mxu0 0
    %2256 = vmatpush1.bf16.msra.mxu0 0
    %2257 = vmatprep.subr.bf16.mxu0 0
    %2258 = vmatpush1.bf16.msra.mxu0 0
    %2259 = vmatprep.subr.bf16.mxu0 0
    %2260 = vmatpush1.bf16.msra.mxu0 0
    %2261 = vmatprep.subr.bf16.mxu0 0
    %2262 = vmatpush1.bf16.msra.mxu0 0
    %2263 = vmatprep.subr.bf16.mxu0 0
    %2264 = vmatpush1.bf16.msra.mxu0 0
    %2265 = vmatprep.subr.bf16.mxu0 0
    %2266 = vmatpush1.bf16.msra.mxu0 0
    %2267 = vmatprep.subr.bf16.mxu0 0
    %2268 = vmatpush1.bf16.msra.mxu0 0
    %2269 = vmatprep.subr.bf16.mxu0 0
    %2270 = vmatpush1.bf16.msra.mxu0 0
    %2271 = vmatprep.subr.bf16.mxu0 0
    %2272 = vmatpush1.bf16.msra.mxu0 0
    %2273 = vmatprep.subr.bf16.mxu0 0
    %2274 = vmatpush1.bf16.msra.mxu0 0
    %2275 = vmatprep.mubr.bf16.mxu0 0
    %2276 = vmatmul.mubr.bf16.gmra.mrb[0].mxu0 %v2241
    %v2277 = vpop.f32.mrb[0].mxu0
    %v2278 = vadd.f32 0.0, %v2277
    %v2279 = vpop.f32.mrb[0].mxu0
    %v2280 = vpop.f32.mrb[0].mxu0
    %v2281 = vadd.f32 0.0, %v2280
    %v2282 = vpop.f32.mrb[0].mxu0
    %2283 = vdwg.mxu0
    %v2284 = vlaneseq
    %v2285 = vshrl.u32 %v2284, 7
    %v2286 = vsub.s32 0, %v2285
    %v2287 = vrot.slane %v1919, %v2286
    %vm2288 = vcmp.eq.s32.totalorder %v1574, %v2287
    %v2289 = vsel %vm2288, 1, 0
    %v2290 = vcvt.s32.f32 %v2289
    %v2291 = vpack.c.bf16 %v2290, %v2290
    %v2292 = vpack.c.bf16 %v2281, %v2278
    %v2294 = vsel %vm880, %v2291, 0
    %v2297 = vsel %vm671, %v2292, 0
    %2299 = vmatprep.subr.bf16.mxu0 0
    %2300 = vmatpush1.bf16.msra.mxu0 %v2297
    %2301 = vmatprep.subr.bf16.mxu0 0
    %2302 = vmatpush1.bf16.msra.mxu0 0
    %2303 = vmatprep.subr.bf16.mxu0 0
    %2304 = vmatpush1.bf16.msra.mxu0 0
    %2305 = vmatprep.subr.bf16.mxu0 0
    %2306 = vmatpush1.bf16.msra.mxu0 0
    %2307 = vmatprep.subr.bf16.mxu0 0
    %2308 = vmatpush1.bf16.msra.mxu0 0
    %2309 = vmatprep.subr.bf16.mxu0 0
    %2310 = vmatpush1.bf16.msra.mxu0 0
    %2311 = vmatprep.subr.bf16.mxu0 0
    %2312 = vmatpush1.bf16.msra.mxu0 0
    %2313 = vmatprep.subr.bf16.mxu0 0
    %2314 = vmatpush1.bf16.msra.mxu0 0
    %2315 = vmatprep.subr.bf16.mxu0 0
    %2316 = vmatpush1.bf16.msra.mxu0 0
    %2317 = vmatprep.subr.bf16.mxu0 0
    %2318 = vmatpush1.bf16.msra.mxu0 0
    %2319 = vmatprep.subr.bf16.mxu0 0
    %2320 = vmatpush1.bf16.msra.mxu0 0
    %2321 = vmatprep.subr.bf16.mxu0 0
    %2322 = vmatpush1.bf16.msra.mxu0 0
    %2323 = vmatprep.subr.bf16.mxu0 0
    %2324 = vmatpush1.bf16.msra.mxu0 0
    %2325 = vmatprep.subr.bf16.mxu0 0
    %2326 = vmatpush1.bf16.msra.mxu0 0
    %2327 = vmatprep.subr.bf16.mxu0 0
    %2328 = vmatpush1.bf16.msra.mxu0 0
    %2329 = vmatprep.subr.bf16.mxu0 0
    %2330 = vmatpush1.bf16.msra.mxu0 0
    %2331 = vmatprep.mubr.bf16.mxu0 0
    %2332 = vmatmul.mubr.bf16.gmra.mrb[0].mxu0 %v2294
    %v2333 = vpop.f32.mrb[0].mxu0
    %v2334 = vadd.f32 0.0, %v2333
    %v2335 = vpop.f32.mrb[0].mxu0
    %v2336 = vpop.f32.mrb[0].mxu0
    %v2337 = vpop.f32.mrb[0].mxu0
    %2338 = vdwg.mxu0
    %v2339 = vadd.f32 %v1917, %v2334
    %vm2340 = vcmask 123904
    %2341 = vst.msk [vmem:[%s23] sm:$0x3] %vm2340, %v2339
    // Predicated region
    $region90: #{fwd.4} parent=1 // pred_check
      _
    $region91: #{fwd.4} parent=1 // pred_check_branch
      %2343 = sbr.rel (0) target = $region93
    $region92: #{fwd.4} parent=1 // pred_region
      %s2345 = ssub.s32 1024, 1024
      %2346 = vsyncadd [#allocation3], %s2345
      %s2347 = sshll.u32 [#allocation2], 4
      %s2348 = int_to_ptr.vmem [resolvable:$true] %s2347
      %2353 = dma.vmem_to_hbm [thread:$0]  %s2348, 1024, %s22, [#allocation3], 128, 128, 8
    $region93: #{fwd.4} parent=1 // pred_fallthru
      _
    // Predicated region
    $region94: #{fwd.4} parent=1 // pred_check
      _
    $region95: #{fwd.4} parent=1 // pred_check_branch
      %2355 = sbr.rel (0) target = $region97
    $region96: #{fwd.4} parent=1 // pred_region
      _
    $region97: #{fwd.4} parent=1 // pred_fallthru
      _
    // Predicated region
    $region98: #{fwd.4} parent=1 // pred_check
      _
    $region99: #{fwd.4} parent=1 // pred_check_branch
      %2357 = sbr.rel (0) target = $region101
    $region100: #{fwd.4} parent=1 // pred_region
      %2358 = dma.done [#allocation3], 1024
    $region101: #{fwd.4} parent=1 // pred_fallthru
      _
    // Predicated region
    $region102: #{fwd.4} parent=1 // pred_check
      _
    $region103: #{fwd.4} parent=1 // pred_check_branch
      %2360 = sbr.rel (0) target = $region105
    $region104: #{fwd.4} parent=1 // pred_region
      _
    $region105: #{fwd.4} parent=1 // pred_fallthru
      _
    %2361 = vsyncpa [#allocation3], 1

</llo_original>
